<compile_context>
chip_gen: v7x
topology: tpu7x:2x2x1
jax: 0.10.0
libtpu: 0.0.40
codegen_flags: <defaults>
</compile_context>

<pallas_src>
import functools
import math

import jax
import jax.numpy as jnp
from jax import lax
from jax.experimental import pallas as pl
from jax.experimental.pallas import tpu as pltpu

HIDDEN = 128           # config.hidden_size (768 in the original module)
NUM_HEADS = 4          # config.num_attention_heads
NUM_LAYERS = 2         # config.num_hidden_layers
INTERMEDIATE = 256     # config.intermediate_size
GCN_HIDDEN = 48        # hard-coded 48 in GCN_Layer (zero-padded to 128 lanes)
HEAD_HIDDEN = HIDDEN // 2
LN_EPS = 1e-12         # BertLayerNorm eps


# ----------------------------------------------------------------------------
# Packed-parameter layouts (shared by prepare_params and the kernel)
# ----------------------------------------------------------------------------
def _blob_a_layout():
    """All matmul weights with input dim = HIDDEN, stacked along columns (bf16)."""
    segs = [("gobj_w1", HIDDEN), ("gobj_w2", HIDDEN),
            ("gocr_w1", HIDDEN), ("gocr_w2", HIDDEN),
            ("afc_w1", HIDDEN), ("gfc_w1", HIDDEN)]
    for l in range(NUM_LAYERS):
        segs += [(f"wqkv{l}", 3 * HIDDEN), (f"wo{l}", HIDDEN), (f"wi{l}", INTERMEDIATE)]
    offs, off = {}, 0
    for name, w in segs:
        offs[name] = (off, w)
        off += w
    return offs, off


W_A_OFFSETS, W_A_COLS = _blob_a_layout()          # (128, 2304) bf16


def _bias_layout():
    """All biases / LN params / 1-wide head weights, one zero-padded row each (f32)."""
    rows = ["gobj_b1", "gobj_b2", "gocr_b1", "gocr_b2",
            "afc_b1", "afc_w2", "afc_b2", "gfc_b1", "gfc_w2", "gfc_b2"]
    for l in range(NUM_LAYERS):
        rows += [f"bqkv{l}", f"bo{l}", f"g1_{l}", f"be1_{l}",
                 f"bi{l}", f"bf{l}", f"g2_{l}", f"be2_{l}"]
    return {n: i for i, n in enumerate(rows)}, len(rows)


BIAS_ROWS, NUM_BIAS_ROWS = _bias_layout()         # (26, 384) f32
BIAS_WIDTH = 3 * HIDDEN


# ----------------------------------------------------------------------------
# In-kernel helpers
# ----------------------------------------------------------------------------
def _mm(a, b):
    """MXU matmul: bf16 operands, f32 accumulation."""
    return jnp.dot(a.astype(jnp.bfloat16), b.astype(jnp.bfloat16),
                   preferred_element_type=jnp.float32)


def _bmm(a, b):
    """Batched (single leading batch dim) MXU matmul, f32 accumulation."""
    return jnp.einsum("bij,bjk->bik",
                      a.astype(jnp.bfloat16), b.astype(jnp.bfloat16),
                      preferred_element_type=jnp.float32)


def _layer_norm(x, gamma, beta):
    mu = jnp.mean(x, axis=-1, keepdims=True)
    d = x - mu
    var = jnp.mean(d * d, axis=-1, keepdims=True)
    return d * lax.rsqrt(var + LN_EPS) * gamma + beta


def _softmax_last(x):
    m = jnp.max(x, axis=-1, keepdims=True)
    e = jnp.exp(x - m)
    return e * pl.reciprocal(jnp.sum(e, axis=-1, keepdims=True), approx=True)


def _elu(x):
    return jnp.where(x > 0, x, jnp.exp(x) - 1.0)


def _sigmoid(x):
    return 1.0 / (1.0 + jnp.exp(-x))


# ----------------------------------------------------------------------------
# Fused forward kernel
# ----------------------------------------------------------------------------
def _fused_kernel(emb_ref, mask_ref, objrel_ref, ocrrel_ref,
                  wa_ref, wb_ref, bias_ref,
                  out_ref, gcn_ref, conf_ref,
                  *, batch, len_vis, len_text, num_heads, num_layers):
    B = batch
    Lv, Lt = len_vis, len_text
    Lc = Lv + Lt
    H = HIDDEN
    nh = num_heads
    dh = H // nh
    scale = 1.0 / math.sqrt(dh)

    # --- packed-parameter accessors (static offsets, 128-aligned lane slices) ---
    def wa(name):
        off, width = W_A_OFFSETS[name]
        return wa_ref[:, off:off + width]

    def brow(name, width=HIDDEN):
        r = BIAS_ROWS[name]
        return bias_ref[r:r + 1, :width]            # (1, width) f32

    def bscalar(name):
        r = BIAS_ROWS[name]
        return bias_ref[r:r + 1, 0:1]                # (1, 1) f32

    emb = emb_ref[...]                               # (B, Lc, H) = [visual | text]
    vis_in = emb[:, :Lv, :]
    text_in = emb[:, Lv:, :]

    # ----- GCN layers: relu(adj @ relu(adj @ (x W1 + b1)) W2 + b2) ---------------
    if Lv == Lt:
        # batch the two GCNs' adjacency matmuls together along the batch dim
        L = Lv
        adj = jnp.concatenate([objrel_ref[...], ocrrel_ref[...]], axis=0)     # (2B,L,L)
        h1 = jnp.concatenate([
            (_mm(vis_in.reshape(B * L, H), wa("gobj_w1")) + brow("gobj_b1")
             ).reshape(B, L, H),
            (_mm(text_in.reshape(B * L, H), wa("gocr_w1")) + brow("gocr_b1")
             ).reshape(B, L, H),
        ], axis=0)                                                            # (2B,L,H)
        h1 = jnp.maximum(_bmm(adj, h1), 0.0)
        h2 = jnp.concatenate([
            (_mm(h1[:B].reshape(B * L, H), wa("gobj_w2")) + brow("gobj_b2")
             ).reshape(B, L, H),
            (_mm(h1[B:].reshape(B * L, H), wa("gocr_w2")) + brow("gocr_b2")
             ).reshape(B, L, H),
        ], axis=0)
        h2 = jnp.maximum(_bmm(adj, h2), 0.0)                                  # (2B,L,H)
        gcn_full = jnp.concatenate([h2[:B], h2[B:]], axis=1)                  # (B,Lc,H)
    else:
        def gcn(x, adj, w1, b1, w2, b2):
            L = x.shape[1]
            a = (_mm(x.reshape(B * L, H), w1) + b1).reshape(B, L, H)
            a = jnp.maximum(_bmm(adj, a), 0.0)
            c = (_mm(a.reshape(B * L, H), w2) + b2).reshape(B, L, H)
            return jnp.maximum(_bmm(adj, c), 0.0)

        vis_gcn = gcn(vis_in, objrel_ref[...], wa("gobj_w1"), brow("gobj_b1"),
                      wa("gobj_w2"), brow("gobj_b2"))
        ocr_gcn = gcn(text_in, ocrrel_ref[...], wa("gocr_w1"), brow("gocr_b1"),
                      wa("gocr_w2"), brow("gocr_b2"))
        gcn_full = jnp.concatenate([vis_gcn, ocr_gcn], axis=1)

    gcn_ref[...] = gcn_full
    x0 = emb + gcn_full                              # (B, Lc, H) = [vis1 | text1]

    # ----- MLP heads: Linear -> ELU -> (1-wide Linear on the VPU) ----------------
    def head(x, w1_name, b1_name, w2_name, b2_name):
        L = x.shape[1]
        h = _elu(_mm(x.reshape(B * L, H), wa(w1_name)) + brow(b1_name))   # (B*L, 128)
        h = h.reshape(B, L, H)
        return jnp.sum(h * brow(w2_name), axis=-1) + bscalar(b2_name)     # (B, L)

    conf1 = head(x0[:, Lv:, :], "afc_w1", "afc_b1", "afc_w2", "afc_b2")

    # ----- BERT encoder over [visual | text] -------------------------------------
    mask = mask_ref[...]                                                  # (B, Lc)
    bias_full = jnp.broadcast_to(((1.0 - mask) * -10000.0)[:, None, :],
                                 (B, Lc, Lc))                             # hoisted once

    x2 = x0.reshape(B * Lc, H)
    for l in range(num_layers):
        # fused QKV projection: one (B*Lc,128)@(128,384) matmul
        qkv = _mm(x2, wa(f"wqkv{l}")) + brow(f"bqkv{l}", 3 * H)           # (B*Lc, 384)
        q3 = qkv[:, :H].reshape(B, Lc, H)
        k3 = qkv[:, H:2 * H].reshape(B, Lc, H)
        v3 = qkv[:, 2 * H:].reshape(B, Lc, H)

        ctx_heads = []
        for hh in range(nh):                          # static loop, nh = 4
            sl = slice(hh * dh, (hh + 1) * dh)
            s = jnp.einsum("bqd,bkd->bqk",
                           q3[:, :, sl].astype(jnp.bfloat16),
                           k3[:, :, sl].astype(jnp.bfloat16),
                           preferred_element_type=jnp.float32) * scale + bias_full
            p = _softmax_last(s)
            ctx_heads.append(jnp.einsum("bqk,bkd->bqd",
                                        p.astype(jnp.bfloat16),
                                        v3[:, :, sl].astype(jnp.bfloat16),
                                        preferred_element_type=jnp.float32))
        ctx = jnp.concatenate(ctx_heads, axis=-1).reshape(B * Lc, H)

        attn = _mm(ctx, wa(f"wo{l}")) + brow(f"bo{l}")
        h1 = _layer_norm(attn + x2, brow(f"g1_{l}"), brow(f"be1_{l}"))

        # TODO(synk): BERT reference is exact erf-GELU; tanh approximation is used for
        # guaranteed Mosaic lowering (max abs deviation ~1e-3).
        inter = jax.nn.gelu(_mm(h1, wa(f"wi{l}")) + brow(f"bi{l}", INTERMEDIATE),
                            approximate=True)
        wf = wb_ref[:, l * H:(l + 1) * H]
        ff = _mm(inter, wf) + brow(f"bf{l}")
        x2 = _layer_norm(ff + h1, brow(f"g2_{l}"), brow(f"be2_{l}"))

    out_full = x0 + jnp.tanh(x2.reshape(B, Lc, H))    # [vis_out | text_out]
    out_ref[...] = out_full

    conf2 = _sigmoid(head(out_full[:, Lv:, :], "gfc_w1", "gfc_b1", "gfc_w2", "gfc_b2"))

    # lane-dense padded confidence output: rows [0:B]=conf1, [B:2B]=conf2
    conf_ref[...] = jnp.zeros_like(conf_ref)
    conf_ref[:B, :Lt] = conf1
    conf_ref[B:, :Lt] = conf2


def _full_spec(shape):
    nd = len(shape)
    return pl.BlockSpec(shape, lambda *_: (0,) * nd)


# ----------------------------------------------------------------------------
# Transformer1.forward wrapper (single fused pallas_call)
# ----------------------------------------------------------------------------
def transformer1_forward(params, text_emb, text_mask, visual_emb, visual_mask,
                         obj_relation, ocr_relation):
    B, Lt, H = text_emb.shape
    Lv = visual_emb.shape[1]
    Lc = Lv + Lt

    emb = jnp.concatenate([visual_emb, text_emb], axis=1)        # (B, Lc, H)
    mask = jnp.concatenate([visual_mask, text_mask], axis=1)     # (B, Lc)

    inputs = (emb, mask, obj_relation, ocr_relation,
              params["w_a"], params["w_b"], params["bias"])

    out_shapes = (
        jax.ShapeDtypeStruct((B, Lc, H), jnp.float32),      # [vis_out | text_out]
        jax.ShapeDtypeStruct((B, Lc, H), jnp.float32),      # [vis_gcn | ocr_gcn]
        jax.ShapeDtypeStruct((2 * B, 128), jnp.float32),    # padded [conf1; conf2]
    )

    kernel = functools.partial(_fused_kernel, batch=B, len_vis=Lv, len_text=Lt,
                               num_heads=NUM_HEADS, num_layers=NUM_LAYERS)

    out_full, gcn_full, conf = pl.pallas_call(
        kernel,
        grid=(1,),
        out_shape=out_shapes,
        in_specs=[_full_spec(x.shape) for x in inputs],
        out_specs=tuple(_full_spec(s.shape) for s in out_shapes),
        compiler_params=pltpu.CompilerParams(
            dimension_semantics=("arbitrary",),
            vmem_limit_bytes=32 * 1024 * 1024),
    )(*inputs)

    visual_out = out_full[:, :Lv, :]
    text_out = out_full[:, Lv:, :]
    visual_gcn = gcn_full[:, :Lv, :]
    ocr_gcn = gcn_full[:, Lv:, :]
    conf1 = conf[:B, :Lt]
    conf2 = conf[B:, :Lt]
    return visual_out, text_out, visual_gcn, ocr_gcn, conf1, conf2


# ----------------------------------------------------------------------------
# Parameter construction
# ----------------------------------------------------------------------------
def init_params(key):
    """Natural (PyTorch-like) float32 parameters."""
    keys = iter(jax.random.split(key, 64))

    def linear(fan_in, fan_out):
        bound = 1.0 / math.sqrt(fan_in)
        w = jax.random.uniform(next(keys), (fan_in, fan_out), jnp.float32, -bound, bound)
        b = jax.random.uniform(next(keys), (1, fan_out), jnp.float32, -bound, bound)
        return w, b

    def gcn():
        w1, b1 = linear(HIDDEN, GCN_HIDDEN)
        w2, b2 = linear(GCN_HIDDEN, HIDDEN)
        return dict(w1=w1, b1=b1, w2=w2, b2=b2)

    def head():
        w1, b1 = linear(HIDDEN, HEAD_HIDDEN)
        w2, b2 = linear(HEAD_HIDDEN, 1)
        return dict(w1=w1, b1=b1, w2=w2, b2=b2)

    def bert_layer():
        wq, bq = linear(HIDDEN, HIDDEN)
        wk, bk = linear(HIDDEN, HIDDEN)
        wv, bv = linear(HIDDEN, HIDDEN)
        wo, bo = linear(HIDDEN, HIDDEN)
        wi, bi = linear(HIDDEN, INTERMEDIATE)
        wf, bf = linear(INTERMEDIATE, HIDDEN)
        ones = jnp.ones((1, HIDDEN), jnp.float32)
        zeros = jnp.zeros((1, HIDDEN), jnp.float32)
        return dict(wq=wq, bq=bq, wk=wk, bk=bk, wv=wv, bv=bv, wo=wo, bo=bo,
                    g1=ones, be1=zeros, wi=wi, bi=bi, wf=wf, bf=bf,
                    g2=ones, be2=zeros)

    return dict(gcn_obj=gcn(), gcn_ocr=gcn(), anchor_fc=head(), graph_fc=head(),
                t2t=[bert_layer() for _ in range(NUM_LAYERS)])


def prepare_params(p):
    """One-time packing into three kernel-resident blobs (math-identical zero padding)."""
    wa = jnp.zeros((HIDDEN, W_A_COLS), jnp.float32)

    def put_a(blob, name, w):
        off, _ = W_A_OFFSETS[name]
        return blob.at[:w.shape[0], off:off + w.shape[1]].set(w)

    wa = put_a(wa, "gobj_w1", p["gcn_obj"]["w1"])
    wa = put_a(wa, "gobj_w2", p["gcn_obj"]["w2"])
    wa = put_a(wa, "gocr_w1", p["gcn_ocr"]["w1"])
    wa = put_a(wa, "gocr_w2", p["gcn_ocr"]["w2"])
    wa = put_a(wa, "afc_w1", p["anchor_fc"]["w1"])
    wa = put_a(wa, "gfc_w1", p["graph_fc"]["w1"])

    wb = jnp.zeros((INTERMEDIATE, NUM_LAYERS * HIDDEN), jnp.float32)

    bias = jnp.zeros((NUM_BIAS_ROWS, BIAS_WIDTH), jnp.float32)

    def put_b(blob, name, v):
        v = jnp.asarray(v, jnp.float32).reshape(-1)
        return blob.at[BIAS_ROWS[name], :v.shape[0]].set(v)

    bias = put_b(bias, "gobj_b1", p["gcn_obj"]["b1"])
    bias = put_b(bias, "gobj_b2", p["gcn_obj"]["b2"])
    bias = put_b(bias, "gocr_b1", p["gcn_ocr"]["b1"])
    bias = put_b(bias, "gocr_b2", p["gcn_ocr"]["b2"])
    bias = put_b(bias, "afc_b1", p["anchor_fc"]["b1"])
    bias = put_b(bias, "afc_w2", p["anchor_fc"]["w2"])   # (64,1) -> 64-wide row
    bias = put_b(bias, "afc_b2", p["anchor_fc"]["b2"])
    bias = put_b(bias, "gfc_b1", p["graph_fc"]["b1"])
    bias = put_b(bias, "gfc_w2", p["graph_fc"]["w2"])
    bias = put_b(bias, "gfc_b2", p["graph_fc"]["b2"])

    for l, layer in enumerate(p["t2t"]):
        wqkv = jnp.concatenate([layer["wq"], layer["wk"], layer["wv"]], axis=1)
        wa = put_a(wa, f"wqkv{l}", wqkv)
        wa = put_a(wa, f"wo{l}", layer["wo"])
        wa = put_a(wa, f"wi{l}", layer["wi"])
        wb = wb.at[:, l * HIDDEN:(l + 1) * HIDDEN].set(layer["wf"])

        bqkv = jnp.concatenate([layer["bq"], layer["bk"], layer["bv"]], axis=1)
        bias = put_b(bias, f"bqkv{l}", bqkv)
        bias = put_b(bias, f"bo{l}", layer["bo"])
        bias = put_b(bias, f"g1_{l}", layer["g1"])
        bias = put_b(bias, f"be1_{l}", layer["be1"])
        bias = put_b(bias, f"bi{l}", layer["bi"])
        bias = put_b(bias, f"bf{l}", layer["bf"])
        bias = put_b(bias, f"g2_{l}", layer["g2"])
        bias = put_b(bias, f"be2_{l}", layer["be2"])

    return dict(w_a=wa.astype(jnp.bfloat16), w_b=wb.astype(jnp.bfloat16), bias=bias)


if __name__ == "__main__":
    key = jax.random.PRNGKey(0)
    kp, kd = jax.random.split(key)
    params = prepare_params(init_params(kp))

    B, Lv, Lt = 2, 8, 8
    ks = jax.random.split(kd, 4)
    text_emb = jax.random.normal(ks[0], (B, Lt, HIDDEN), jnp.float32)
    visual_emb = jax.random.normal(ks[1], (B, Lv, HIDDEN), jnp.float32)
    text_mask = jnp.ones((B, Lt), jnp.float32).at[:, -2:].set(0.0)
    visual_mask = jnp.ones((B, Lv), jnp.float32)
    obj_relation = jax.nn.softmax(jax.random.normal(ks[2], (B, Lv, Lv)), axis=-1)
    ocr_relation = jax.nn.softmax(jax.random.normal(ks[3], (B, Lt, Lt)), axis=-1)

    outs = transformer1_forward(params, text_emb, text_mask, visual_emb,
                                visual_mask, obj_relation, ocr_relation)
    jax.block_until_ready(outs)
    print("KERNEL_OK")
</pallas_src>

<mosaic_0001>
module attributes {stable_mosaic.version = 11 : i64} {
  func.func @_fused_kernel(%arg0: i32, %arg1: memref<2x16x128xf32, #tpu.memory_space<vmem>>, %arg2: memref<2x16xf32, #tpu.memory_space<vmem>>, %arg3: memref<2x8x8xf32, #tpu.memory_space<vmem>>, %arg4: memref<2x8x8xf32, #tpu.memory_space<vmem>>, %arg5: memref<128x2304xbf16, #tpu.memory_space<vmem>>, %arg6: memref<256x256xbf16, #tpu.memory_space<vmem>>, %arg7: memref<26x384xf32, #tpu.memory_space<vmem>>, %arg8: memref<2x16x128xf32, #tpu.memory_space<vmem>>, %arg9: memref<2x16x128xf32, #tpu.memory_space<vmem>>, %arg10: memref<4x128xf32, #tpu.memory_space<vmem>>) attributes {dimension_semantics = [#tpu.dimension_semantics<arbitrary>], iteration_bounds = array<i64: 1>, scalar_prefetch = 0 : i64, scratch_operands = 0 : i64, tpu.core_type = #tpu.core_type<tc>, window_params = [{pipeline_mode = #tpu.pipeline_mode<synchronous>, transform_indices = @transform_0, window_bounds = array<i64: 2, 16, 128>}, {pipeline_mode = #tpu.pipeline_mode<synchronous>, transform_indices = @transform_1, window_bounds = array<i64: 2, 16>}, {pipeline_mode = #tpu.pipeline_mode<synchronous>, transform_indices = @transform_2, window_bounds = array<i64: 2, 8, 8>}, {pipeline_mode = #tpu.pipeline_mode<synchronous>, transform_indices = @transform_3, window_bounds = array<i64: 2, 8, 8>}, {pipeline_mode = #tpu.pipeline_mode<synchronous>, transform_indices = @transform_4, window_bounds = array<i64: 128, 2304>}, {pipeline_mode = #tpu.pipeline_mode<synchronous>, transform_indices = @transform_5, window_bounds = array<i64: 256, 256>}, {pipeline_mode = #tpu.pipeline_mode<synchronous>, transform_indices = @transform_6, window_bounds = array<i64: 26, 384>}, {pipeline_mode = #tpu.pipeline_mode<synchronous>, transform_indices = @transform_7, window_bounds = array<i64: 2, 16, 128>}, {pipeline_mode = #tpu.pipeline_mode<synchronous>, transform_indices = @transform_8, window_bounds = array<i64: 2, 16, 128>}, {pipeline_mode = #tpu.pipeline_mode<synchronous>, transform_indices = @transform_9, window_bounds = array<i64: 4, 128>}]} {
    %c0 = arith.constant 0 : index
    %c0_0 = arith.constant 0 : index
    %c0_1 = arith.constant 0 : index
    %0 = vector.load %arg1[%c0, %c0_0, %c0_1] : memref<2x16x128xf32, #tpu.memory_space<vmem>>, vector<2x16x128xf32>
    %1 = vector.extract_strided_slice %0 {offsets = [0, 0, 0], sizes = [2, 8, 128], strides = [1, 1, 1]} : vector<2x16x128xf32> to vector<2x8x128xf32>
    %2 = vector.extract_strided_slice %0 {offsets = [0, 8, 0], sizes = [2, 8, 128], strides = [1, 1, 1]} : vector<2x16x128xf32> to vector<2x8x128xf32>
    %c0_2 = arith.constant 0 : index
    %c0_3 = arith.constant 0 : index
    %c0_4 = arith.constant 0 : index
    %3 = vector.load %arg3[%c0_2, %c0_3, %c0_4] : memref<2x8x8xf32, #tpu.memory_space<vmem>>, vector<2x8x8xf32>
    %c0_5 = arith.constant 0 : index
    %c0_6 = arith.constant 0 : index
    %c0_7 = arith.constant 0 : index
    %4 = vector.load %arg4[%c0_5, %c0_6, %c0_7] : memref<2x8x8xf32, #tpu.memory_space<vmem>>, vector<2x8x8xf32>
    %5 = tpu.concatenate %3, %4 in 0 : vector<2x8x8xf32>, vector<2x8x8xf32> -> vector<4x8x8xf32>
    %6 = vector.shape_cast %1 : vector<2x8x128xf32> to vector<16x128xf32>
    %c0_8 = arith.constant 0 : index
    %c0_9 = arith.constant 0 : index
    %7 = vector.load %arg5[%c0_8, %c0_9] : memref<128x2304xbf16, #tpu.memory_space<vmem>>, vector<128x128xbf16>
    %8 = arith.truncf %6 : vector<16x128xf32> to vector<16x128xbf16>
    %cst = arith.constant dense<0.000000e+00> : vector<16x128xf32>
    %9 = tpu.matmul %8, %7, %cst {dimension_numbers = #tpu.dot_dimension_numbers<[1], [0], [0], [1], [0, 0, 1, 1], [], []>} : vector<16x128xbf16>, vector<128x128xbf16>, vector<16x128xf32> -> vector<16x128xf32>
    %c0_10 = arith.constant 0 : index
    %c0_11 = arith.constant 0 : index
    %10 = vector.load %arg7[%c0_10, %c0_11] : memref<26x384xf32, #tpu.memory_space<vmem>>, vector<1x128xf32>
    %11 = vector.broadcast %10 : vector<1x128xf32> to vector<16x128xf32>
    %12 = arith.addf %9, %11 : vector<16x128xf32>
    %13 = vector.shape_cast %12 : vector<16x128xf32> to vector<2x8x128xf32>
    %14 = vector.shape_cast %2 : vector<2x8x128xf32> to vector<16x128xf32>
    %c0_12 = arith.constant 0 : index
    %c256 = arith.constant 256 : index
    %15 = vector.load %arg5[%c0_12, %c256] : memref<128x2304xbf16, #tpu.memory_space<vmem>>, vector<128x128xbf16>
    %16 = arith.truncf %14 : vector<16x128xf32> to vector<16x128xbf16>
    %cst_13 = arith.constant dense<0.000000e+00> : vector<16x128xf32>
    %17 = tpu.matmul %16, %15, %cst_13 {dimension_numbers = #tpu.dot_dimension_numbers<[1], [0], [0], [1], [0, 0, 1, 1], [], []>} : vector<16x128xbf16>, vector<128x128xbf16>, vector<16x128xf32> -> vector<16x128xf32>
    %c2 = arith.constant 2 : index
    %c0_14 = arith.constant 0 : index
    %18 = vector.load %arg7[%c2, %c0_14] : memref<26x384xf32, #tpu.memory_space<vmem>>, vector<1x128xf32>
    %19 = vector.broadcast %18 : vector<1x128xf32> to vector<16x128xf32>
    %20 = arith.addf %17, %19 : vector<16x128xf32>
    %21 = vector.shape_cast %20 : vector<16x128xf32> to vector<2x8x128xf32>
    %22 = tpu.concatenate %13, %21 in 0 : vector<2x8x128xf32>, vector<2x8x128xf32> -> vector<4x8x128xf32>
    %23 = arith.truncf %5 : vector<4x8x8xf32> to vector<4x8x8xbf16>
    %24 = arith.truncf %22 : vector<4x8x128xf32> to vector<4x8x128xbf16>
    "tpu.trace_start"() <{level = 10 : i32, message = "bij,bjk->bik"}> : () -> ()
    %cst_15 = arith.constant dense<0.000000e+00> : vector<4x8x128xf32>
    %25 = tpu.matmul %23, %24, %cst_15 {dimension_numbers = #tpu.dot_dimension_numbers<[2], [1], [1], [2], [0, 0, 0, 1, 1, 2], [0], [0]>} : vector<4x8x8xbf16>, vector<4x8x128xbf16>, vector<4x8x128xf32> -> vector<4x8x128xf32>
    "tpu.trace_stop"() : () -> ()
    %cst_16 = arith.constant 0.000000e+00 : f32
    %26 = vector.broadcast %cst_16 : f32 to vector<4x8x128xf32>
    %27 = arith.maximumf %25, %26 : vector<4x8x128xf32>
    %28 = vector.extract_strided_slice %27 {offsets = [0, 0, 0], sizes = [2, 8, 128], strides = [1, 1, 1]} : vector<4x8x128xf32> to vector<2x8x128xf32>
    %29 = vector.shape_cast %28 : vector<2x8x128xf32> to vector<16x128xf32>
    %c0_17 = arith.constant 0 : index
    %c128 = arith.constant 128 : index
    %30 = vector.load %arg5[%c0_17, %c128] : memref<128x2304xbf16, #tpu.memory_space<vmem>>, vector<128x128xbf16>
    %31 = arith.truncf %29 : vector<16x128xf32> to vector<16x128xbf16>
    %cst_18 = arith.constant dense<0.000000e+00> : vector<16x128xf32>
    %32 = tpu.matmul %31, %30, %cst_18 {dimension_numbers = #tpu.dot_dimension_numbers<[1], [0], [0], [1], [0, 0, 1, 1], [], []>} : vector<16x128xbf16>, vector<128x128xbf16>, vector<16x128xf32> -> vector<16x128xf32>
    %c1 = arith.constant 1 : index
    %c0_19 = arith.constant 0 : index
    %33 = vector.load %arg7[%c1, %c0_19] : memref<26x384xf32, #tpu.memory_space<vmem>>, vector<1x128xf32>
    %34 = vector.broadcast %33 : vector<1x128xf32> to vector<16x128xf32>
    %35 = arith.addf %32, %34 : vector<16x128xf32>
    %36 = vector.shape_cast %35 : vector<16x128xf32> to vector<2x8x128xf32>
    %37 = vector.extract_strided_slice %27 {offsets = [2, 0, 0], sizes = [2, 8, 128], strides = [1, 1, 1]} : vector<4x8x128xf32> to vector<2x8x128xf32>
    %38 = vector.shape_cast %37 : vector<2x8x128xf32> to vector<16x128xf32>
    %c0_20 = arith.constant 0 : index
    %c384 = arith.constant 384 : index
    %39 = vector.load %arg5[%c0_20, %c384] : memref<128x2304xbf16, #tpu.memory_space<vmem>>, vector<128x128xbf16>
    %40 = arith.truncf %38 : vector<16x128xf32> to vector<16x128xbf16>
    %cst_21 = arith.constant dense<0.000000e+00> : vector<16x128xf32>
    %41 = tpu.matmul %40, %39, %cst_21 {dimension_numbers = #tpu.dot_dimension_numbers<[1], [0], [0], [1], [0, 0, 1, 1], [], []>} : vector<16x128xbf16>, vector<128x128xbf16>, vector<16x128xf32> -> vector<16x128xf32>
    %c3 = arith.constant 3 : index
    %c0_22 = arith.constant 0 : index
    %42 = vector.load %arg7[%c3, %c0_22] : memref<26x384xf32, #tpu.memory_space<vmem>>, vector<1x128xf32>
    %43 = vector.broadcast %42 : vector<1x128xf32> to vector<16x128xf32>
    %44 = arith.addf %41, %43 : vector<16x128xf32>
    %45 = vector.shape_cast %44 : vector<16x128xf32> to vector<2x8x128xf32>
    %46 = tpu.concatenate %36, %45 in 0 : vector<2x8x128xf32>, vector<2x8x128xf32> -> vector<4x8x128xf32>
    %47 = arith.truncf %5 : vector<4x8x8xf32> to vector<4x8x8xbf16>
    %48 = arith.truncf %46 : vector<4x8x128xf32> to vector<4x8x128xbf16>
    "tpu.trace_start"() <{level = 10 : i32, message = "bij,bjk->bik"}> : () -> ()
    %cst_23 = arith.constant dense<0.000000e+00> : vector<4x8x128xf32>
    %49 = tpu.matmul %47, %48, %cst_23 {dimension_numbers = #tpu.dot_dimension_numbers<[2], [1], [1], [2], [0, 0, 0, 1, 1, 2], [0], [0]>} : vector<4x8x8xbf16>, vector<4x8x128xbf16>, vector<4x8x128xf32> -> vector<4x8x128xf32>
    "tpu.trace_stop"() : () -> ()
    %cst_24 = arith.constant 0.000000e+00 : f32
    %50 = vector.broadcast %cst_24 : f32 to vector<4x8x128xf32>
    %51 = arith.maximumf %49, %50 : vector<4x8x128xf32>
    %52 = vector.extract_strided_slice %51 {offsets = [0, 0, 0], sizes = [2, 8, 128], strides = [1, 1, 1]} : vector<4x8x128xf32> to vector<2x8x128xf32>
    %53 = vector.extract_strided_slice %51 {offsets = [2, 0, 0], sizes = [2, 8, 128], strides = [1, 1, 1]} : vector<4x8x128xf32> to vector<2x8x128xf32>
    %54 = tpu.concatenate %52, %53 in 1 : vector<2x8x128xf32>, vector<2x8x128xf32> -> vector<2x16x128xf32>
    %c0_25 = arith.constant 0 : index
    %c0_26 = arith.constant 0 : index
    %c0_27 = arith.constant 0 : index
    %55 = vector.load %arg9[%c0_25, %c0_26, %c0_27] : memref<2x16x128xf32, #tpu.memory_space<vmem>>, vector<2x16x128xf32>
    tpu.vector_store %arg9[%c0_25, %c0_26, %c0_27], %54 {strides = array<i32>} : memref<2x16x128xf32, #tpu.memory_space<vmem>>, vector<2x16x128xf32>,
    %56 = arith.addf %0, %54 : vector<2x16x128xf32>
    %57 = vector.extract_strided_slice %56 {offsets = [0, 8, 0], sizes = [2, 8, 128], strides = [1, 1, 1]} : vector<2x16x128xf32> to vector<2x8x128xf32>
    %58 = vector.shape_cast %57 : vector<2x8x128xf32> to vector<16x128xf32>
    %c0_28 = arith.constant 0 : index
    %c512 = arith.constant 512 : index
    %59 = vector.load %arg5[%c0_28, %c512] : memref<128x2304xbf16, #tpu.memory_space<vmem>>, vector<128x128xbf16>
    %60 = arith.truncf %58 : vector<16x128xf32> to vector<16x128xbf16>
    %cst_29 = arith.constant dense<0.000000e+00> : vector<16x128xf32>
    %61 = tpu.matmul %60, %59, %cst_29 {dimension_numbers = #tpu.dot_dimension_numbers<[1], [0], [0], [1], [0, 0, 1, 1], [], []>} : vector<16x128xbf16>, vector<128x128xbf16>, vector<16x128xf32> -> vector<16x128xf32>
    %c4 = arith.constant 4 : index
    %c0_30 = arith.constant 0 : index
    %62 = vector.load %arg7[%c4, %c0_30] : memref<26x384xf32, #tpu.memory_space<vmem>>, vector<1x128xf32>
    %63 = vector.broadcast %62 : vector<1x128xf32> to vector<16x128xf32>
    %64 = arith.addf %61, %63 : vector<16x128xf32>
    %cst_31 = arith.constant 0.000000e+00 : f32
    %65 = vector.broadcast %cst_31 : f32 to vector<16x128xf32>
    %66 = arith.cmpf ogt, %64, %65 : vector<16x128xf32>
    %67 = math.exp %64 : vector<16x128xf32>
    %cst_32 = arith.constant 1.000000e+00 : f32
    %68 = vector.broadcast %cst_32 : f32 to vector<16x128xf32>
    %69 = arith.subf %67, %68 : vector<16x128xf32>
    %70 = arith.select %66, %64, %69 : vector<16x128xi1>, vector<16x128xf32>
    %71 = vector.shape_cast %70 : vector<16x128xf32> to vector<2x8x128xf32>
    %c5 = arith.constant 5 : index
    %c0_33 = arith.constant 0 : index
    %72 = vector.load %arg7[%c5, %c0_33] : memref<26x384xf32, #tpu.memory_space<vmem>>, vector<1x128xf32>
    %73 = vector.shape_cast %72 : vector<1x128xf32> to vector<1x1x128xf32>
    %74 = vector.broadcast %73 : vector<1x1x128xf32> to vector<2x8x128xf32>
    %75 = arith.mulf %71, %74 : vector<2x8x128xf32>
    %cst_34 = arith.constant dense<0.000000e+00> : vector<2x8xf32>
    %76 = vector.multi_reduction <add>, %75, %cst_34 [2] : vector<2x8x128xf32> to vector<2x8xf32>
    %c6 = arith.constant 6 : index
    %c0_35 = arith.constant 0 : index
    %77 = vector.load %arg7[%c6, %c0_35] : memref<26x384xf32, #tpu.memory_space<vmem>>, vector<1x1xf32>
    %78 = vector.broadcast %77 : vector<1x1xf32> to vector<2x8xf32>
    %79 = arith.addf %76, %78 : vector<2x8xf32>
    %c0_36 = arith.constant 0 : index
    %c0_37 = arith.constant 0 : index
    %80 = vector.load %arg2[%c0_36, %c0_37] : memref<2x16xf32, #tpu.memory_space<vmem>>, vector<2x16xf32>
    %cst_38 = arith.constant 1.000000e+00 : f32
    %81 = vector.broadcast %cst_38 : f32 to vector<2x16xf32>
    %82 = arith.subf %81, %80 : vector<2x16xf32>
    %cst_39 = arith.constant -1.000000e+04 : f32
    %83 = vector.broadcast %cst_39 : f32 to vector<2x16xf32>
    %84 = arith.mulf %82, %83 : vector<2x16xf32>
    %85 = vector.shape_cast %84 : vector<2x16xf32> to vector<2x1x16xf32>
    %86 = vector.shape_cast %85 : vector<2x1x16xf32> to vector<2x1x16xf32>
    %87 = vector.broadcast %86 : vector<2x1x16xf32> to vector<2x16x16xf32>
    %88 = vector.shape_cast %56 : vector<2x16x128xf32> to vector<32x128xf32>
    %c0_40 = arith.constant 0 : index
    %c768 = arith.constant 768 : index
    %89 = vector.load %arg5[%c0_40, %c768] : memref<128x2304xbf16, #tpu.memory_space<vmem>>, vector<128x384xbf16>
    %90 = arith.truncf %88 : vector<32x128xf32> to vector<32x128xbf16>
    %cst_41 = arith.constant dense<0.000000e+00> : vector<32x384xf32>
    %91 = tpu.matmul %90, %89, %cst_41 {dimension_numbers = #tpu.dot_dimension_numbers<[1], [0], [0], [1], [0, 0, 1, 1], [], []>} : vector<32x128xbf16>, vector<128x384xbf16>, vector<32x384xf32> -> vector<32x384xf32>
    %c10 = arith.constant 10 : index
    %c0_42 = arith.constant 0 : index
    %92 = vector.load %arg7[%c10, %c0_42] : memref<26x384xf32, #tpu.memory_space<vmem>>, vector<1x384xf32>
    %93 = vector.broadcast %92 : vector<1x384xf32> to vector<32x384xf32>
    %94 = arith.addf %91, %93 : vector<32x384xf32>
    %95 = vector.extract_strided_slice %94 {offsets = [0, 0], sizes = [32, 128], strides = [1, 1]} : vector<32x384xf32> to vector<32x128xf32>
    %96 = vector.shape_cast %95 : vector<32x128xf32> to vector<2x16x128xf32>
    %97 = vector.extract_strided_slice %94 {offsets = [0, 128], sizes = [32, 128], strides = [1, 1]} : vector<32x384xf32> to vector<32x128xf32>
    %98 = vector.shape_cast %97 : vector<32x128xf32> to vector<2x16x128xf32>
    %99 = vector.extract_strided_slice %94 {offsets = [0, 256], sizes = [32, 128], strides = [1, 1]} : vector<32x384xf32> to vector<32x128xf32>
    %100 = vector.shape_cast %99 : vector<32x128xf32> to vector<2x16x128xf32>
    %101 = vector.extract_strided_slice %96 {offsets = [0, 0, 0], sizes = [2, 16, 32], strides = [1, 1, 1]} : vector<2x16x128xf32> to vector<2x16x32xf32>
    %102 = arith.truncf %101 : vector<2x16x32xf32> to vector<2x16x32xbf16>
    %103 = vector.extract_strided_slice %98 {offsets = [0, 0, 0], sizes = [2, 16, 32], strides = [1, 1, 1]} : vector<2x16x128xf32> to vector<2x16x32xf32>
    %104 = arith.truncf %103 : vector<2x16x32xf32> to vector<2x16x32xbf16>
    "tpu.trace_start"() <{level = 10 : i32, message = "bqd,bkd->bqk"}> : () -> ()
    %cst_43 = arith.constant dense<0.000000e+00> : vector<2x16x16xf32>
    %105 = tpu.matmul %102, %104, %cst_43 {dimension_numbers = #tpu.dot_dimension_numbers<[2], [2], [1], [1], [0, 0, 0, 1, 1, 1], [0], [0]>} : vector<2x16x32xbf16>, vector<2x16x32xbf16>, vector<2x16x16xf32> -> vector<2x16x16xf32>
    "tpu.trace_stop"() : () -> ()
    %cst_44 = arith.constant 0.176776692 : f32
    %106 = vector.broadcast %cst_44 : f32 to vector<2x16x16xf32>
    %107 = arith.mulf %105, %106 : vector<2x16x16xf32>
    %108 = arith.addf %107, %87 : vector<2x16x16xf32>
    %cst_45 = arith.constant dense<0xFF800000> : vector<2x16xf32>
    %109 = vector.multi_reduction <maximumf>, %108, %cst_45 [2] : vector<2x16x16xf32> to vector<2x16xf32>
    %110 = vector.shape_cast %109 : vector<2x16xf32> to vector<2x16x1xf32>
    %111 = vector.broadcast %110 : vector<2x16x1xf32> to vector<2x16x16xf32>
    %112 = arith.subf %108, %111 : vector<2x16x16xf32>
    %113 = math.exp %112 : vector<2x16x16xf32>
    %cst_46 = arith.constant dense<0.000000e+00> : vector<2x16xf32>
    %114 = vector.multi_reduction <add>, %113, %cst_46 [2] : vector<2x16x16xf32> to vector<2x16xf32>
    %115 = vector.shape_cast %114 : vector<2x16xf32> to vector<2x16x1xf32>
    %116 = tpu.reciprocal %115 {approx = true} : vector<2x16x1xf32> -> vector<2x16x1xf32>
    %117 = vector.broadcast %116 : vector<2x16x1xf32> to vector<2x16x16xf32>
    %118 = arith.mulf %113, %117 : vector<2x16x16xf32>
    %119 = arith.truncf %118 : vector<2x16x16xf32> to vector<2x16x16xbf16>
    %120 = vector.extract_strided_slice %100 {offsets = [0, 0, 0], sizes = [2, 16, 32], strides = [1, 1, 1]} : vector<2x16x128xf32> to vector<2x16x32xf32>
    %121 = arith.truncf %120 : vector<2x16x32xf32> to vector<2x16x32xbf16>
    "tpu.trace_start"() <{level = 10 : i32, message = "bqk,bkd->bqd"}> : () -> ()
    %cst_47 = arith.constant dense<0.000000e+00> : vector<2x16x32xf32>
    %122 = tpu.matmul %119, %121, %cst_47 {dimension_numbers = #tpu.dot_dimension_numbers<[2], [1], [1], [2], [0, 0, 0, 1, 1, 2], [0], [0]>} : vector<2x16x16xbf16>, vector<2x16x32xbf16>, vector<2x16x32xf32> -> vector<2x16x32xf32>
    "tpu.trace_stop"() : () -> ()
    %123 = vector.extract_strided_slice %96 {offsets = [0, 0, 32], sizes = [2, 16, 32], strides = [1, 1, 1]} : vector<2x16x128xf32> to vector<2x16x32xf32>
    %124 = arith.truncf %123 : vector<2x16x32xf32> to vector<2x16x32xbf16>
    %125 = vector.extract_strided_slice %98 {offsets = [0, 0, 32], sizes = [2, 16, 32], strides = [1, 1, 1]} : vector<2x16x128xf32> to vector<2x16x32xf32>
    %126 = arith.truncf %125 : vector<2x16x32xf32> to vector<2x16x32xbf16>
    "tpu.trace_start"() <{level = 10 : i32, message = "bqd,bkd->bqk"}> : () -> ()
    %cst_48 = arith.constant dense<0.000000e+00> : vector<2x16x16xf32>
    %127 = tpu.matmul %124, %126, %cst_48 {dimension_numbers = #tpu.dot_dimension_numbers<[2], [2], [1], [1], [0, 0, 0, 1, 1, 1], [0], [0]>} : vector<2x16x32xbf16>, vector<2x16x32xbf16>, vector<2x16x16xf32> -> vector<2x16x16xf32>
    "tpu.trace_stop"() : () -> ()
    %cst_49 = arith.constant 0.176776692 : f32
    %128 = vector.broadcast %cst_49 : f32 to vector<2x16x16xf32>
    %129 = arith.mulf %127, %128 : vector<2x16x16xf32>
    %130 = arith.addf %129, %87 : vector<2x16x16xf32>
    %cst_50 = arith.constant dense<0xFF800000> : vector<2x16xf32>
    %131 = vector.multi_reduction <maximumf>, %130, %cst_50 [2] : vector<2x16x16xf32> to vector<2x16xf32>
    %132 = vector.shape_cast %131 : vector<2x16xf32> to vector<2x16x1xf32>
    %133 = vector.broadcast %132 : vector<2x16x1xf32> to vector<2x16x16xf32>
    %134 = arith.subf %130, %133 : vector<2x16x16xf32>
    %135 = math.exp %134 : vector<2x16x16xf32>
    %cst_51 = arith.constant dense<0.000000e+00> : vector<2x16xf32>
    %136 = vector.multi_reduction <add>, %135, %cst_51 [2] : vector<2x16x16xf32> to vector<2x16xf32>
    %137 = vector.shape_cast %136 : vector<2x16xf32> to vector<2x16x1xf32>
    %138 = tpu.reciprocal %137 {approx = true} : vector<2x16x1xf32> -> vector<2x16x1xf32>
    %139 = vector.broadcast %138 : vector<2x16x1xf32> to vector<2x16x16xf32>
    %140 = arith.mulf %135, %139 : vector<2x16x16xf32>
    %141 = arith.truncf %140 : vector<2x16x16xf32> to vector<2x16x16xbf16>
    %142 = vector.extract_strided_slice %100 {offsets = [0, 0, 32], sizes = [2, 16, 32], strides = [1, 1, 1]} : vector<2x16x128xf32> to vector<2x16x32xf32>
    %143 = arith.truncf %142 : vector<2x16x32xf32> to vector<2x16x32xbf16>
    "tpu.trace_start"() <{level = 10 : i32, message = "bqk,bkd->bqd"}> : () -> ()
    %cst_52 = arith.constant dense<0.000000e+00> : vector<2x16x32xf32>
    %144 = tpu.matmul %141, %143, %cst_52 {dimension_numbers = #tpu.dot_dimension_numbers<[2], [1], [1], [2], [0, 0, 0, 1, 1, 2], [0], [0]>} : vector<2x16x16xbf16>, vector<2x16x32xbf16>, vector<2x16x32xf32> -> vector<2x16x32xf32>
    "tpu.trace_stop"() : () -> ()
    %145 = vector.extract_strided_slice %96 {offsets = [0, 0, 64], sizes = [2, 16, 32], strides = [1, 1, 1]} : vector<2x16x128xf32> to vector<2x16x32xf32>
    %146 = arith.truncf %145 : vector<2x16x32xf32> to vector<2x16x32xbf16>
    %147 = vector.extract_strided_slice %98 {offsets = [0, 0, 64], sizes = [2, 16, 32], strides = [1, 1, 1]} : vector<2x16x128xf32> to vector<2x16x32xf32>
    %148 = arith.truncf %147 : vector<2x16x32xf32> to vector<2x16x32xbf16>
    "tpu.trace_start"() <{level = 10 : i32, message = "bqd,bkd->bqk"}> : () -> ()
    %cst_53 = arith.constant dense<0.000000e+00> : vector<2x16x16xf32>
    %149 = tpu.matmul %146, %148, %cst_53 {dimension_numbers = #tpu.dot_dimension_numbers<[2], [2], [1], [1], [0, 0, 0, 1, 1, 1], [0], [0]>} : vector<2x16x32xbf16>, vector<2x16x32xbf16>, vector<2x16x16xf32> -> vector<2x16x16xf32>
    "tpu.trace_stop"() : () -> ()
    %cst_54 = arith.constant 0.176776692 : f32
    %150 = vector.broadcast %cst_54 : f32 to vector<2x16x16xf32>
    %151 = arith.mulf %149, %150 : vector<2x16x16xf32>
    %152 = arith.addf %151, %87 : vector<2x16x16xf32>
    %cst_55 = arith.constant dense<0xFF800000> : vector<2x16xf32>
    %153 = vector.multi_reduction <maximumf>, %152, %cst_55 [2] : vector<2x16x16xf32> to vector<2x16xf32>
    %154 = vector.shape_cast %153 : vector<2x16xf32> to vector<2x16x1xf32>
    %155 = vector.broadcast %154 : vector<2x16x1xf32> to vector<2x16x16xf32>
    %156 = arith.subf %152, %155 : vector<2x16x16xf32>
    %157 = math.exp %156 : vector<2x16x16xf32>
    %cst_56 = arith.constant dense<0.000000e+00> : vector<2x16xf32>
    %158 = vector.multi_reduction <add>, %157, %cst_56 [2] : vector<2x16x16xf32> to vector<2x16xf32>
    %159 = vector.shape_cast %158 : vector<2x16xf32> to vector<2x16x1xf32>
    %160 = tpu.reciprocal %159 {approx = true} : vector<2x16x1xf32> -> vector<2x16x1xf32>
    %161 = vector.broadcast %160 : vector<2x16x1xf32> to vector<2x16x16xf32>
    %162 = arith.mulf %157, %161 : vector<2x16x16xf32>
    %163 = arith.truncf %162 : vector<2x16x16xf32> to vector<2x16x16xbf16>
    %164 = vector.extract_strided_slice %100 {offsets = [0, 0, 64], sizes = [2, 16, 32], strides = [1, 1, 1]} : vector<2x16x128xf32> to vector<2x16x32xf32>
    %165 = arith.truncf %164 : vector<2x16x32xf32> to vector<2x16x32xbf16>
    "tpu.trace_start"() <{level = 10 : i32, message = "bqk,bkd->bqd"}> : () -> ()
    %cst_57 = arith.constant dense<0.000000e+00> : vector<2x16x32xf32>
    %166 = tpu.matmul %163, %165, %cst_57 {dimension_numbers = #tpu.dot_dimension_numbers<[2], [1], [1], [2], [0, 0, 0, 1, 1, 2], [0], [0]>} : vector<2x16x16xbf16>, vector<2x16x32xbf16>, vector<2x16x32xf32> -> vector<2x16x32xf32>
    "tpu.trace_stop"() : () -> ()
    %167 = vector.extract_strided_slice %96 {offsets = [0, 0, 96], sizes = [2, 16, 32], strides = [1, 1, 1]} : vector<2x16x128xf32> to vector<2x16x32xf32>
    %168 = arith.truncf %167 : vector<2x16x32xf32> to vector<2x16x32xbf16>
    %169 = vector.extract_strided_slice %98 {offsets = [0, 0, 96], sizes = [2, 16, 32], strides = [1, 1, 1]} : vector<2x16x128xf32> to vector<2x16x32xf32>
    %170 = arith.truncf %169 : vector<2x16x32xf32> to vector<2x16x32xbf16>
    "tpu.trace_start"() <{level = 10 : i32, message = "bqd,bkd->bqk"}> : () -> ()
    %cst_58 = arith.constant dense<0.000000e+00> : vector<2x16x16xf32>
    %171 = tpu.matmul %168, %170, %cst_58 {dimension_numbers = #tpu.dot_dimension_numbers<[2], [2], [1], [1], [0, 0, 0, 1, 1, 1], [0], [0]>} : vector<2x16x32xbf16>, vector<2x16x32xbf16>, vector<2x16x16xf32> -> vector<2x16x16xf32>
    "tpu.trace_stop"() : () -> ()
    %cst_59 = arith.constant 0.176776692 : f32
    %172 = vector.broadcast %cst_59 : f32 to vector<2x16x16xf32>
    %173 = arith.mulf %171, %172 : vector<2x16x16xf32>
    %174 = arith.addf %173, %87 : vector<2x16x16xf32>
    %cst_60 = arith.constant dense<0xFF800000> : vector<2x16xf32>
    %175 = vector.multi_reduction <maximumf>, %174, %cst_60 [2] : vector<2x16x16xf32> to vector<2x16xf32>
    %176 = vector.shape_cast %175 : vector<2x16xf32> to vector<2x16x1xf32>
    %177 = vector.broadcast %176 : vector<2x16x1xf32> to vector<2x16x16xf32>
    %178 = arith.subf %174, %177 : vector<2x16x16xf32>
    %179 = math.exp %178 : vector<2x16x16xf32>
    %cst_61 = arith.constant dense<0.000000e+00> : vector<2x16xf32>
    %180 = vector.multi_reduction <add>, %179, %cst_61 [2] : vector<2x16x16xf32> to vector<2x16xf32>
    %181 = vector.shape_cast %180 : vector<2x16xf32> to vector<2x16x1xf32>
    %182 = tpu.reciprocal %181 {approx = true} : vector<2x16x1xf32> -> vector<2x16x1xf32>
    %183 = vector.broadcast %182 : vector<2x16x1xf32> to vector<2x16x16xf32>
    %184 = arith.mulf %179, %183 : vector<2x16x16xf32>
    %185 = arith.truncf %184 : vector<2x16x16xf32> to vector<2x16x16xbf16>
    %186 = vector.extract_strided_slice %100 {offsets = [0, 0, 96], sizes = [2, 16, 32], strides = [1, 1, 1]} : vector<2x16x128xf32> to vector<2x16x32xf32>
    %187 = arith.truncf %186 : vector<2x16x32xf32> to vector<2x16x32xbf16>
    "tpu.trace_start"() <{level = 10 : i32, message = "bqk,bkd->bqd"}> : () -> ()
    %cst_62 = arith.constant dense<0.000000e+00> : vector<2x16x32xf32>
    %188 = tpu.matmul %185, %187, %cst_62 {dimension_numbers = #tpu.dot_dimension_numbers<[2], [1], [1], [2], [0, 0, 0, 1, 1, 2], [0], [0]>} : vector<2x16x16xbf16>, vector<2x16x32xbf16>, vector<2x16x32xf32> -> vector<2x16x32xf32>
    "tpu.trace_stop"() : () -> ()
    %189 = tpu.concatenate %122, %144, %166, %188 in 2 : vector<2x16x32xf32>, vector<2x16x32xf32>, vector<2x16x32xf32>, vector<2x16x32xf32> -> vector<2x16x128xf32>
    %190 = vector.shape_cast %189 : vector<2x16x128xf32> to vector<32x128xf32>
    %c0_63 = arith.constant 0 : index
    %c1152 = arith.constant 1152 : index
    %191 = vector.load %arg5[%c0_63, %c1152] : memref<128x2304xbf16, #tpu.memory_space<vmem>>, vector<128x128xbf16>
    %192 = arith.truncf %190 : vector<32x128xf32> to vector<32x128xbf16>
    %cst_64 = arith.constant dense<0.000000e+00> : vector<32x128xf32>
    %193 = tpu.matmul %192, %191, %cst_64 {dimension_numbers = #tpu.dot_dimension_numbers<[1], [0], [0], [1], [0, 0, 1, 1], [], []>} : vector<32x128xbf16>, vector<128x128xbf16>, vector<32x128xf32> -> vector<32x128xf32>
    %c11 = arith.constant 11 : index
    %c0_65 = arith.constant 0 : index
    %194 = vector.load %arg7[%c11, %c0_65] : memref<26x384xf32, #tpu.memory_space<vmem>>, vector<1x128xf32>
    %195 = vector.broadcast %194 : vector<1x128xf32> to vector<32x128xf32>
    %196 = arith.addf %193, %195 : vector<32x128xf32>
    %197 = arith.addf %196, %88 : vector<32x128xf32>
    %c12 = arith.constant 12 : index
    %c0_66 = arith.constant 0 : index
    %198 = vector.load %arg7[%c12, %c0_66] : memref<26x384xf32, #tpu.memory_space<vmem>>, vector<1x128xf32>
    %c13 = arith.constant 13 : index
    %c0_67 = arith.constant 0 : index
    %199 = vector.load %arg7[%c13, %c0_67] : memref<26x384xf32, #tpu.memory_space<vmem>>, vector<1x128xf32>
    %cst_68 = arith.constant dense<0.000000e+00> : vector<32xf32>
    %200 = vector.multi_reduction <add>, %197, %cst_68 [1] : vector<32x128xf32> to vector<32xf32>
    %201 = vector.shape_cast %200 : vector<32xf32> to vector<32x1xf32>
    %cst_69 = arith.constant 1.280000e+02 : f32
    %202 = vector.broadcast %cst_69 : f32 to vector<32x1xf32>
    %203 = arith.divf %201, %202 : vector<32x1xf32>
    %204 = vector.broadcast %203 : vector<32x1xf32> to vector<32x128xf32>
    %205 = arith.subf %197, %204 : vector<32x128xf32>
    %206 = arith.mulf %205, %205 : vector<32x128xf32>
    %cst_70 = arith.constant dense<0.000000e+00> : vector<32xf32>
    %207 = vector.multi_reduction <add>, %206, %cst_70 [1] : vector<32x128xf32> to vector<32xf32>
    %208 = vector.shape_cast %207 : vector<32xf32> to vector<32x1xf32>
    %cst_71 = arith.constant 1.280000e+02 : f32
    %209 = vector.broadcast %cst_71 : f32 to vector<32x1xf32>
    %210 = arith.divf %208, %209 : vector<32x1xf32>
    %cst_72 = arith.constant 9.99999996E-13 : f32
    %211 = vector.broadcast %cst_72 : f32 to vector<32x1xf32>
    %212 = arith.addf %210, %211 : vector<32x1xf32>
    %213 = math.rsqrt %212 : vector<32x1xf32>
    %214 = vector.broadcast %213 : vector<32x1xf32> to vector<32x128xf32>
    %215 = arith.mulf %205, %214 : vector<32x128xf32>
    %216 = vector.broadcast %198 : vector<1x128xf32> to vector<32x128xf32>
    %217 = arith.mulf %215, %216 : vector<32x128xf32>
    %218 = vector.broadcast %199 : vector<1x128xf32> to vector<32x128xf32>
    %219 = arith.addf %217, %218 : vector<32x128xf32>
    %c0_73 = arith.constant 0 : index
    %c1280 = arith.constant 1280 : index
    %220 = vector.load %arg5[%c0_73, %c1280] : memref<128x2304xbf16, #tpu.memory_space<vmem>>, vector<128x256xbf16>
    %221 = arith.truncf %219 : vector<32x128xf32> to vector<32x128xbf16>
    %cst_74 = arith.constant dense<0.000000e+00> : vector<32x256xf32>
    %222 = tpu.matmul %221, %220, %cst_74 {dimension_numbers = #tpu.dot_dimension_numbers<[1], [0], [0], [1], [0, 0, 1, 1], [], []>} : vector<32x128xbf16>, vector<128x256xbf16>, vector<32x256xf32> -> vector<32x256xf32>
    %c14 = arith.constant 14 : index
    %c0_75 = arith.constant 0 : index
    %223 = vector.load %arg7[%c14, %c0_75] : memref<26x384xf32, #tpu.memory_space<vmem>>, vector<1x256xf32>
    %224 = vector.broadcast %223 : vector<1x256xf32> to vector<32x256xf32>
    %225 = arith.addf %222, %224 : vector<32x256xf32>
    %226 = arith.mulf %225, %225 : vector<32x256xf32>
    %227 = arith.mulf %225, %226 : vector<32x256xf32>
    %cst_76 = arith.constant 4.471500e-02 : f32
    %228 = vector.broadcast %cst_76 : f32 to vector<32x256xf32>
    %229 = arith.mulf %228, %227 : vector<32x256xf32>
    %230 = arith.addf %225, %229 : vector<32x256xf32>
    %cst_77 = arith.constant 0.797884583 : f32
    %231 = vector.broadcast %cst_77 : f32 to vector<32x256xf32>
    %232 = arith.mulf %231, %230 : vector<32x256xf32>
    %233 = math.tanh %232 : vector<32x256xf32>
    %cst_78 = arith.constant 1.000000e+00 : f32
    %234 = vector.broadcast %cst_78 : f32 to vector<32x256xf32>
    %235 = arith.addf %234, %233 : vector<32x256xf32>
    %cst_79 = arith.constant 5.000000e-01 : f32
    %236 = vector.broadcast %cst_79 : f32 to vector<32x256xf32>
    %237 = arith.mulf %236, %235 : vector<32x256xf32>
    %238 = arith.mulf %225, %237 : vector<32x256xf32>
    %c0_80 = arith.constant 0 : index
    %c0_81 = arith.constant 0 : index
    %239 = vector.load %arg6[%c0_80, %c0_81] : memref<256x256xbf16, #tpu.memory_space<vmem>>, vector<256x128xbf16>
    %240 = arith.truncf %238 : vector<32x256xf32> to vector<32x256xbf16>
    %cst_82 = arith.constant dense<0.000000e+00> : vector<32x128xf32>
    %241 = tpu.matmul %240, %239, %cst_82 {dimension_numbers = #tpu.dot_dimension_numbers<[1], [0], [0], [1], [0, 0, 1, 1], [], []>} : vector<32x256xbf16>, vector<256x128xbf16>, vector<32x128xf32> -> vector<32x128xf32>
    %c15 = arith.constant 15 : index
    %c0_83 = arith.constant 0 : index
    %242 = vector.load %arg7[%c15, %c0_83] : memref<26x384xf32, #tpu.memory_space<vmem>>, vector<1x128xf32>
    %243 = vector.broadcast %242 : vector<1x128xf32> to vector<32x128xf32>
    %244 = arith.addf %241, %243 : vector<32x128xf32>
    %245 = arith.addf %244, %219 : vector<32x128xf32>
    %c16 = arith.constant 16 : index
    %c0_84 = arith.constant 0 : index
    %246 = vector.load %arg7[%c16, %c0_84] : memref<26x384xf32, #tpu.memory_space<vmem>>, vector<1x128xf32>
    %c17 = arith.constant 17 : index
    %c0_85 = arith.constant 0 : index
    %247 = vector.load %arg7[%c17, %c0_85] : memref<26x384xf32, #tpu.memory_space<vmem>>, vector<1x128xf32>
    %cst_86 = arith.constant dense<0.000000e+00> : vector<32xf32>
    %248 = vector.multi_reduction <add>, %245, %cst_86 [1] : vector<32x128xf32> to vector<32xf32>
    %249 = vector.shape_cast %248 : vector<32xf32> to vector<32x1xf32>
    %cst_87 = arith.constant 1.280000e+02 : f32
    %250 = vector.broadcast %cst_87 : f32 to vector<32x1xf32>
    %251 = arith.divf %249, %250 : vector<32x1xf32>
    %252 = vector.broadcast %251 : vector<32x1xf32> to vector<32x128xf32>
    %253 = arith.subf %245, %252 : vector<32x128xf32>
    %254 = arith.mulf %253, %253 : vector<32x128xf32>
    %cst_88 = arith.constant dense<0.000000e+00> : vector<32xf32>
    %255 = vector.multi_reduction <add>, %254, %cst_88 [1] : vector<32x128xf32> to vector<32xf32>
    %256 = vector.shape_cast %255 : vector<32xf32> to vector<32x1xf32>
    %cst_89 = arith.constant 1.280000e+02 : f32
    %257 = vector.broadcast %cst_89 : f32 to vector<32x1xf32>
    %258 = arith.divf %256, %257 : vector<32x1xf32>
    %cst_90 = arith.constant 9.99999996E-13 : f32
    %259 = vector.broadcast %cst_90 : f32 to vector<32x1xf32>
    %260 = arith.addf %258, %259 : vector<32x1xf32>
    %261 = math.rsqrt %260 : vector<32x1xf32>
    %262 = vector.broadcast %261 : vector<32x1xf32> to vector<32x128xf32>
    %263 = arith.mulf %253, %262 : vector<32x128xf32>
    %264 = vector.broadcast %246 : vector<1x128xf32> to vector<32x128xf32>
    %265 = arith.mulf %263, %264 : vector<32x128xf32>
    %266 = vector.broadcast %247 : vector<1x128xf32> to vector<32x128xf32>
    %267 = arith.addf %265, %266 : vector<32x128xf32>
    %c0_91 = arith.constant 0 : index
    %c1536 = arith.constant 1536 : index
    %268 = vector.load %arg5[%c0_91, %c1536] : memref<128x2304xbf16, #tpu.memory_space<vmem>>, vector<128x384xbf16>
    %269 = arith.truncf %267 : vector<32x128xf32> to vector<32x128xbf16>
    %cst_92 = arith.constant dense<0.000000e+00> : vector<32x384xf32>
    %270 = tpu.matmul %269, %268, %cst_92 {dimension_numbers = #tpu.dot_dimension_numbers<[1], [0], [0], [1], [0, 0, 1, 1], [], []>} : vector<32x128xbf16>, vector<128x384xbf16>, vector<32x384xf32> -> vector<32x384xf32>
    %c18 = arith.constant 18 : index
    %c0_93 = arith.constant 0 : index
    %271 = vector.load %arg7[%c18, %c0_93] : memref<26x384xf32, #tpu.memory_space<vmem>>, vector<1x384xf32>
    %272 = vector.broadcast %271 : vector<1x384xf32> to vector<32x384xf32>
    %273 = arith.addf %270, %272 : vector<32x384xf32>
    %274 = vector.extract_strided_slice %273 {offsets = [0, 0], sizes = [32, 128], strides = [1, 1]} : vector<32x384xf32> to vector<32x128xf32>
    %275 = vector.shape_cast %274 : vector<32x128xf32> to vector<2x16x128xf32>
    %276 = vector.extract_strided_slice %273 {offsets = [0, 128], sizes = [32, 128], strides = [1, 1]} : vector<32x384xf32> to vector<32x128xf32>
    %277 = vector.shape_cast %276 : vector<32x128xf32> to vector<2x16x128xf32>
    %278 = vector.extract_strided_slice %273 {offsets = [0, 256], sizes = [32, 128], strides = [1, 1]} : vector<32x384xf32> to vector<32x128xf32>
    %279 = vector.shape_cast %278 : vector<32x128xf32> to vector<2x16x128xf32>
    %280 = vector.extract_strided_slice %275 {offsets = [0, 0, 0], sizes = [2, 16, 32], strides = [1, 1, 1]} : vector<2x16x128xf32> to vector<2x16x32xf32>
    %281 = arith.truncf %280 : vector<2x16x32xf32> to vector<2x16x32xbf16>
    %282 = vector.extract_strided_slice %277 {offsets = [0, 0, 0], sizes = [2, 16, 32], strides = [1, 1, 1]} : vector<2x16x128xf32> to vector<2x16x32xf32>
    %283 = arith.truncf %282 : vector<2x16x32xf32> to vector<2x16x32xbf16>
    "tpu.trace_start"() <{level = 10 : i32, message = "bqd,bkd->bqk"}> : () -> ()
    %cst_94 = arith.constant dense<0.000000e+00> : vector<2x16x16xf32>
    %284 = tpu.matmul %281, %283, %cst_94 {dimension_numbers = #tpu.dot_dimension_numbers<[2], [2], [1], [1], [0, 0, 0, 1, 1, 1], [0], [0]>} : vector<2x16x32xbf16>, vector<2x16x32xbf16>, vector<2x16x16xf32> -> vector<2x16x16xf32>
    "tpu.trace_stop"() : () -> ()
    %cst_95 = arith.constant 0.176776692 : f32
    %285 = vector.broadcast %cst_95 : f32 to vector<2x16x16xf32>
    %286 = arith.mulf %284, %285 : vector<2x16x16xf32>
    %287 = arith.addf %286, %87 : vector<2x16x16xf32>
    %cst_96 = arith.constant dense<0xFF800000> : vector<2x16xf32>
    %288 = vector.multi_reduction <maximumf>, %287, %cst_96 [2] : vector<2x16x16xf32> to vector<2x16xf32>
    %289 = vector.shape_cast %288 : vector<2x16xf32> to vector<2x16x1xf32>
    %290 = vector.broadcast %289 : vector<2x16x1xf32> to vector<2x16x16xf32>
    %291 = arith.subf %287, %290 : vector<2x16x16xf32>
    %292 = math.exp %291 : vector<2x16x16xf32>
    %cst_97 = arith.constant dense<0.000000e+00> : vector<2x16xf32>
    %293 = vector.multi_reduction <add>, %292, %cst_97 [2] : vector<2x16x16xf32> to vector<2x16xf32>
    %294 = vector.shape_cast %293 : vector<2x16xf32> to vector<2x16x1xf32>
    %295 = tpu.reciprocal %294 {approx = true} : vector<2x16x1xf32> -> vector<2x16x1xf32>
    %296 = vector.broadcast %295 : vector<2x16x1xf32> to vector<2x16x16xf32>
    %297 = arith.mulf %292, %296 : vector<2x16x16xf32>
    %298 = arith.truncf %297 : vector<2x16x16xf32> to vector<2x16x16xbf16>
    %299 = vector.extract_strided_slice %279 {offsets = [0, 0, 0], sizes = [2, 16, 32], strides = [1, 1, 1]} : vector<2x16x128xf32> to vector<2x16x32xf32>
    %300 = arith.truncf %299 : vector<2x16x32xf32> to vector<2x16x32xbf16>
    "tpu.trace_start"() <{level = 10 : i32, message = "bqk,bkd->bqd"}> : () -> ()
    %cst_98 = arith.constant dense<0.000000e+00> : vector<2x16x32xf32>
    %301 = tpu.matmul %298, %300, %cst_98 {dimension_numbers = #tpu.dot_dimension_numbers<[2], [1], [1], [2], [0, 0, 0, 1, 1, 2], [0], [0]>} : vector<2x16x16xbf16>, vector<2x16x32xbf16>, vector<2x16x32xf32> -> vector<2x16x32xf32>
    "tpu.trace_stop"() : () -> ()
    %302 = vector.extract_strided_slice %275 {offsets = [0, 0, 32], sizes = [2, 16, 32], strides = [1, 1, 1]} : vector<2x16x128xf32> to vector<2x16x32xf32>
    %303 = arith.truncf %302 : vector<2x16x32xf32> to vector<2x16x32xbf16>
    %304 = vector.extract_strided_slice %277 {offsets = [0, 0, 32], sizes = [2, 16, 32], strides = [1, 1, 1]} : vector<2x16x128xf32> to vector<2x16x32xf32>
    %305 = arith.truncf %304 : vector<2x16x32xf32> to vector<2x16x32xbf16>
    "tpu.trace_start"() <{level = 10 : i32, message = "bqd,bkd->bqk"}> : () -> ()
    %cst_99 = arith.constant dense<0.000000e+00> : vector<2x16x16xf32>
    %306 = tpu.matmul %303, %305, %cst_99 {dimension_numbers = #tpu.dot_dimension_numbers<[2], [2], [1], [1], [0, 0, 0, 1, 1, 1], [0], [0]>} : vector<2x16x32xbf16>, vector<2x16x32xbf16>, vector<2x16x16xf32> -> vector<2x16x16xf32>
    "tpu.trace_stop"() : () -> ()
    %cst_100 = arith.constant 0.176776692 : f32
    %307 = vector.broadcast %cst_100 : f32 to vector<2x16x16xf32>
    %308 = arith.mulf %306, %307 : vector<2x16x16xf32>
    %309 = arith.addf %308, %87 : vector<2x16x16xf32>
    %cst_101 = arith.constant dense<0xFF800000> : vector<2x16xf32>
    %310 = vector.multi_reduction <maximumf>, %309, %cst_101 [2] : vector<2x16x16xf32> to vector<2x16xf32>
    %311 = vector.shape_cast %310 : vector<2x16xf32> to vector<2x16x1xf32>
    %312 = vector.broadcast %311 : vector<2x16x1xf32> to vector<2x16x16xf32>
    %313 = arith.subf %309, %312 : vector<2x16x16xf32>
    %314 = math.exp %313 : vector<2x16x16xf32>
    %cst_102 = arith.constant dense<0.000000e+00> : vector<2x16xf32>
    %315 = vector.multi_reduction <add>, %314, %cst_102 [2] : vector<2x16x16xf32> to vector<2x16xf32>
    %316 = vector.shape_cast %315 : vector<2x16xf32> to vector<2x16x1xf32>
    %317 = tpu.reciprocal %316 {approx = true} : vector<2x16x1xf32> -> vector<2x16x1xf32>
    %318 = vector.broadcast %317 : vector<2x16x1xf32> to vector<2x16x16xf32>
    %319 = arith.mulf %314, %318 : vector<2x16x16xf32>
    %320 = arith.truncf %319 : vector<2x16x16xf32> to vector<2x16x16xbf16>
    %321 = vector.extract_strided_slice %279 {offsets = [0, 0, 32], sizes = [2, 16, 32], strides = [1, 1, 1]} : vector<2x16x128xf32> to vector<2x16x32xf32>
    %322 = arith.truncf %321 : vector<2x16x32xf32> to vector<2x16x32xbf16>
    "tpu.trace_start"() <{level = 10 : i32, message = "bqk,bkd->bqd"}> : () -> ()
    %cst_103 = arith.constant dense<0.000000e+00> : vector<2x16x32xf32>
    %323 = tpu.matmul %320, %322, %cst_103 {dimension_numbers = #tpu.dot_dimension_numbers<[2], [1], [1], [2], [0, 0, 0, 1, 1, 2], [0], [0]>} : vector<2x16x16xbf16>, vector<2x16x32xbf16>, vector<2x16x32xf32> -> vector<2x16x32xf32>
    "tpu.trace_stop"() : () -> ()
    %324 = vector.extract_strided_slice %275 {offsets = [0, 0, 64], sizes = [2, 16, 32], strides = [1, 1, 1]} : vector<2x16x128xf32> to vector<2x16x32xf32>
    %325 = arith.truncf %324 : vector<2x16x32xf32> to vector<2x16x32xbf16>
    %326 = vector.extract_strided_slice %277 {offsets = [0, 0, 64], sizes = [2, 16, 32], strides = [1, 1, 1]} : vector<2x16x128xf32> to vector<2x16x32xf32>
    %327 = arith.truncf %326 : vector<2x16x32xf32> to vector<2x16x32xbf16>
    "tpu.trace_start"() <{level = 10 : i32, message = "bqd,bkd->bqk"}> : () -> ()
    %cst_104 = arith.constant dense<0.000000e+00> : vector<2x16x16xf32>
    %328 = tpu.matmul %325, %327, %cst_104 {dimension_numbers = #tpu.dot_dimension_numbers<[2], [2], [1], [1], [0, 0, 0, 1, 1, 1], [0], [0]>} : vector<2x16x32xbf16>, vector<2x16x32xbf16>, vector<2x16x16xf32> -> vector<2x16x16xf32>
    "tpu.trace_stop"() : () -> ()
    %cst_105 = arith.constant 0.176776692 : f32
    %329 = vector.broadcast %cst_105 : f32 to vector<2x16x16xf32>
    %330 = arith.mulf %328, %329 : vector<2x16x16xf32>
    %331 = arith.addf %330, %87 : vector<2x16x16xf32>
    %cst_106 = arith.constant dense<0xFF800000> : vector<2x16xf32>
    %332 = vector.multi_reduction <maximumf>, %331, %cst_106 [2] : vector<2x16x16xf32> to vector<2x16xf32>
    %333 = vector.shape_cast %332 : vector<2x16xf32> to vector<2x16x1xf32>
    %334 = vector.broadcast %333 : vector<2x16x1xf32> to vector<2x16x16xf32>
    %335 = arith.subf %331, %334 : vector<2x16x16xf32>
    %336 = math.exp %335 : vector<2x16x16xf32>
    %cst_107 = arith.constant dense<0.000000e+00> : vector<2x16xf32>
    %337 = vector.multi_reduction <add>, %336, %cst_107 [2] : vector<2x16x16xf32> to vector<2x16xf32>
    %338 = vector.shape_cast %337 : vector<2x16xf32> to vector<2x16x1xf32>
    %339 = tpu.reciprocal %338 {approx = true} : vector<2x16x1xf32> -> vector<2x16x1xf32>
    %340 = vector.broadcast %339 : vector<2x16x1xf32> to vector<2x16x16xf32>
    %341 = arith.mulf %336, %340 : vector<2x16x16xf32>
    %342 = arith.truncf %341 : vector<2x16x16xf32> to vector<2x16x16xbf16>
    %343 = vector.extract_strided_slice %279 {offsets = [0, 0, 64], sizes = [2, 16, 32], strides = [1, 1, 1]} : vector<2x16x128xf32> to vector<2x16x32xf32>
    %344 = arith.truncf %343 : vector<2x16x32xf32> to vector<2x16x32xbf16>
    "tpu.trace_start"() <{level = 10 : i32, message = "bqk,bkd->bqd"}> : () -> ()
    %cst_108 = arith.constant dense<0.000000e+00> : vector<2x16x32xf32>
    %345 = tpu.matmul %342, %344, %cst_108 {dimension_numbers = #tpu.dot_dimension_numbers<[2], [1], [1], [2], [0, 0, 0, 1, 1, 2], [0], [0]>} : vector<2x16x16xbf16>, vector<2x16x32xbf16>, vector<2x16x32xf32> -> vector<2x16x32xf32>
    "tpu.trace_stop"() : () -> ()
    %346 = vector.extract_strided_slice %275 {offsets = [0, 0, 96], sizes = [2, 16, 32], strides = [1, 1, 1]} : vector<2x16x128xf32> to vector<2x16x32xf32>
    %347 = arith.truncf %346 : vector<2x16x32xf32> to vector<2x16x32xbf16>
    %348 = vector.extract_strided_slice %277 {offsets = [0, 0, 96], sizes = [2, 16, 32], strides = [1, 1, 1]} : vector<2x16x128xf32> to vector<2x16x32xf32>
    %349 = arith.truncf %348 : vector<2x16x32xf32> to vector<2x16x32xbf16>
    "tpu.trace_start"() <{level = 10 : i32, message = "bqd,bkd->bqk"}> : () -> ()
    %cst_109 = arith.constant dense<0.000000e+00> : vector<2x16x16xf32>
    %350 = tpu.matmul %347, %349, %cst_109 {dimension_numbers = #tpu.dot_dimension_numbers<[2], [2], [1], [1], [0, 0, 0, 1, 1, 1], [0], [0]>} : vector<2x16x32xbf16>, vector<2x16x32xbf16>, vector<2x16x16xf32> -> vector<2x16x16xf32>
    "tpu.trace_stop"() : () -> ()
    %cst_110 = arith.constant 0.176776692 : f32
    %351 = vector.broadcast %cst_110 : f32 to vector<2x16x16xf32>
    %352 = arith.mulf %350, %351 : vector<2x16x16xf32>
    %353 = arith.addf %352, %87 : vector<2x16x16xf32>
    %cst_111 = arith.constant dense<0xFF800000> : vector<2x16xf32>
    %354 = vector.multi_reduction <maximumf>, %353, %cst_111 [2] : vector<2x16x16xf32> to vector<2x16xf32>
    %355 = vector.shape_cast %354 : vector<2x16xf32> to vector<2x16x1xf32>
    %356 = vector.broadcast %355 : vector<2x16x1xf32> to vector<2x16x16xf32>
    %357 = arith.subf %353, %356 : vector<2x16x16xf32>
    %358 = math.exp %357 : vector<2x16x16xf32>
    %cst_112 = arith.constant dense<0.000000e+00> : vector<2x16xf32>
    %359 = vector.multi_reduction <add>, %358, %cst_112 [2] : vector<2x16x16xf32> to vector<2x16xf32>
    %360 = vector.shape_cast %359 : vector<2x16xf32> to vector<2x16x1xf32>
    %361 = tpu.reciprocal %360 {approx = true} : vector<2x16x1xf32> -> vector<2x16x1xf32>
    %362 = vector.broadcast %361 : vector<2x16x1xf32> to vector<2x16x16xf32>
    %363 = arith.mulf %358, %362 : vector<2x16x16xf32>
    %364 = arith.truncf %363 : vector<2x16x16xf32> to vector<2x16x16xbf16>
    %365 = vector.extract_strided_slice %279 {offsets = [0, 0, 96], sizes = [2, 16, 32], strides = [1, 1, 1]} : vector<2x16x128xf32> to vector<2x16x32xf32>
    %366 = arith.truncf %365 : vector<2x16x32xf32> to vector<2x16x32xbf16>
    "tpu.trace_start"() <{level = 10 : i32, message = "bqk,bkd->bqd"}> : () -> ()
    %cst_113 = arith.constant dense<0.000000e+00> : vector<2x16x32xf32>
    %367 = tpu.matmul %364, %366, %cst_113 {dimension_numbers = #tpu.dot_dimension_numbers<[2], [1], [1], [2], [0, 0, 0, 1, 1, 2], [0], [0]>} : vector<2x16x16xbf16>, vector<2x16x32xbf16>, vector<2x16x32xf32> -> vector<2x16x32xf32>
    "tpu.trace_stop"() : () -> ()
    %368 = tpu.concatenate %301, %323, %345, %367 in 2 : vector<2x16x32xf32>, vector<2x16x32xf32>, vector<2x16x32xf32>, vector<2x16x32xf32> -> vector<2x16x128xf32>
    %369 = vector.shape_cast %368 : vector<2x16x128xf32> to vector<32x128xf32>
    %c0_114 = arith.constant 0 : index
    %c1920 = arith.constant 1920 : index
    %370 = vector.load %arg5[%c0_114, %c1920] : memref<128x2304xbf16, #tpu.memory_space<vmem>>, vector<128x128xbf16>
    %371 = arith.truncf %369 : vector<32x128xf32> to vector<32x128xbf16>
    %cst_115 = arith.constant dense<0.000000e+00> : vector<32x128xf32>
    %372 = tpu.matmul %371, %370, %cst_115 {dimension_numbers = #tpu.dot_dimension_numbers<[1], [0], [0], [1], [0, 0, 1, 1], [], []>} : vector<32x128xbf16>, vector<128x128xbf16>, vector<32x128xf32> -> vector<32x128xf32>
    %c19 = arith.constant 19 : index
    %c0_116 = arith.constant 0 : index
    %373 = vector.load %arg7[%c19, %c0_116] : memref<26x384xf32, #tpu.memory_space<vmem>>, vector<1x128xf32>
    %374 = vector.broadcast %373 : vector<1x128xf32> to vector<32x128xf32>
    %375 = arith.addf %372, %374 : vector<32x128xf32>
    %376 = arith.addf %375, %267 : vector<32x128xf32>
    %c20 = arith.constant 20 : index
    %c0_117 = arith.constant 0 : index
    %377 = vector.load %arg7[%c20, %c0_117] : memref<26x384xf32, #tpu.memory_space<vmem>>, vector<1x128xf32>
    %c21 = arith.constant 21 : index
    %c0_118 = arith.constant 0 : index
    %378 = vector.load %arg7[%c21, %c0_118] : memref<26x384xf32, #tpu.memory_space<vmem>>, vector<1x128xf32>
    %cst_119 = arith.constant dense<0.000000e+00> : vector<32xf32>
    %379 = vector.multi_reduction <add>, %376, %cst_119 [1] : vector<32x128xf32> to vector<32xf32>
    %380 = vector.shape_cast %379 : vector<32xf32> to vector<32x1xf32>
    %cst_120 = arith.constant 1.280000e+02 : f32
    %381 = vector.broadcast %cst_120 : f32 to vector<32x1xf32>
    %382 = arith.divf %380, %381 : vector<32x1xf32>
    %383 = vector.broadcast %382 : vector<32x1xf32> to vector<32x128xf32>
    %384 = arith.subf %376, %383 : vector<32x128xf32>
    %385 = arith.mulf %384, %384 : vector<32x128xf32>
    %cst_121 = arith.constant dense<0.000000e+00> : vector<32xf32>
    %386 = vector.multi_reduction <add>, %385, %cst_121 [1] : vector<32x128xf32> to vector<32xf32>
    %387 = vector.shape_cast %386 : vector<32xf32> to vector<32x1xf32>
    %cst_122 = arith.constant 1.280000e+02 : f32
    %388 = vector.broadcast %cst_122 : f32 to vector<32x1xf32>
    %389 = arith.divf %387, %388 : vector<32x1xf32>
    %cst_123 = arith.constant 9.99999996E-13 : f32
    %390 = vector.broadcast %cst_123 : f32 to vector<32x1xf32>
    %391 = arith.addf %389, %390 : vector<32x1xf32>
    %392 = math.rsqrt %391 : vector<32x1xf32>
    %393 = vector.broadcast %392 : vector<32x1xf32> to vector<32x128xf32>
    %394 = arith.mulf %384, %393 : vector<32x128xf32>
    %395 = vector.broadcast %377 : vector<1x128xf32> to vector<32x128xf32>
    %396 = arith.mulf %394, %395 : vector<32x128xf32>
    %397 = vector.broadcast %378 : vector<1x128xf32> to vector<32x128xf32>
    %398 = arith.addf %396, %397 : vector<32x128xf32>
    %c0_124 = arith.constant 0 : index
    %c2048 = arith.constant 2048 : index
    %399 = vector.load %arg5[%c0_124, %c2048] : memref<128x2304xbf16, #tpu.memory_space<vmem>>, vector<128x256xbf16>
    %400 = arith.truncf %398 : vector<32x128xf32> to vector<32x128xbf16>
    %cst_125 = arith.constant dense<0.000000e+00> : vector<32x256xf32>
    %401 = tpu.matmul %400, %399, %cst_125 {dimension_numbers = #tpu.dot_dimension_numbers<[1], [0], [0], [1], [0, 0, 1, 1], [], []>} : vector<32x128xbf16>, vector<128x256xbf16>, vector<32x256xf32> -> vector<32x256xf32>
    %c22 = arith.constant 22 : index
    %c0_126 = arith.constant 0 : index
    %402 = vector.load %arg7[%c22, %c0_126] : memref<26x384xf32, #tpu.memory_space<vmem>>, vector<1x256xf32>
    %403 = vector.broadcast %402 : vector<1x256xf32> to vector<32x256xf32>
    %404 = arith.addf %401, %403 : vector<32x256xf32>
    %405 = arith.mulf %404, %404 : vector<32x256xf32>
    %406 = arith.mulf %404, %405 : vector<32x256xf32>
    %cst_127 = arith.constant 4.471500e-02 : f32
    %407 = vector.broadcast %cst_127 : f32 to vector<32x256xf32>
    %408 = arith.mulf %407, %406 : vector<32x256xf32>
    %409 = arith.addf %404, %408 : vector<32x256xf32>
    %cst_128 = arith.constant 0.797884583 : f32
    %410 = vector.broadcast %cst_128 : f32 to vector<32x256xf32>
    %411 = arith.mulf %410, %409 : vector<32x256xf32>
    %412 = math.tanh %411 : vector<32x256xf32>
    %cst_129 = arith.constant 1.000000e+00 : f32
    %413 = vector.broadcast %cst_129 : f32 to vector<32x256xf32>
    %414 = arith.addf %413, %412 : vector<32x256xf32>
    %cst_130 = arith.constant 5.000000e-01 : f32
    %415 = vector.broadcast %cst_130 : f32 to vector<32x256xf32>
    %416 = arith.mulf %415, %414 : vector<32x256xf32>
    %417 = arith.mulf %404, %416 : vector<32x256xf32>
    %c0_131 = arith.constant 0 : index
    %c128_132 = arith.constant 128 : index
    %418 = vector.load %arg6[%c0_131, %c128_132] : memref<256x256xbf16, #tpu.memory_space<vmem>>, vector<256x128xbf16>
    %419 = arith.truncf %417 : vector<32x256xf32> to vector<32x256xbf16>
    %cst_133 = arith.constant dense<0.000000e+00> : vector<32x128xf32>
    %420 = tpu.matmul %419, %418, %cst_133 {dimension_numbers = #tpu.dot_dimension_numbers<[1], [0], [0], [1], [0, 0, 1, 1], [], []>} : vector<32x256xbf16>, vector<256x128xbf16>, vector<32x128xf32> -> vector<32x128xf32>
    %c23 = arith.constant 23 : index
    %c0_134 = arith.constant 0 : index
    %421 = vector.load %arg7[%c23, %c0_134] : memref<26x384xf32, #tpu.memory_space<vmem>>, vector<1x128xf32>
    %422 = vector.broadcast %421 : vector<1x128xf32> to vector<32x128xf32>
    %423 = arith.addf %420, %422 : vector<32x128xf32>
    %424 = arith.addf %423, %398 : vector<32x128xf32>
    %c24 = arith.constant 24 : index
    %c0_135 = arith.constant 0 : index
    %425 = vector.load %arg7[%c24, %c0_135] : memref<26x384xf32, #tpu.memory_space<vmem>>, vector<1x128xf32>
    %c25 = arith.constant 25 : index
    %c0_136 = arith.constant 0 : index
    %426 = vector.load %arg7[%c25, %c0_136] : memref<26x384xf32, #tpu.memory_space<vmem>>, vector<1x128xf32>
    %cst_137 = arith.constant dense<0.000000e+00> : vector<32xf32>
    %427 = vector.multi_reduction <add>, %424, %cst_137 [1] : vector<32x128xf32> to vector<32xf32>
    %428 = vector.shape_cast %427 : vector<32xf32> to vector<32x1xf32>
    %cst_138 = arith.constant 1.280000e+02 : f32
    %429 = vector.broadcast %cst_138 : f32 to vector<32x1xf32>
    %430 = arith.divf %428, %429 : vector<32x1xf32>
    %431 = vector.broadcast %430 : vector<32x1xf32> to vector<32x128xf32>
    %432 = arith.subf %424, %431 : vector<32x128xf32>
    %433 = arith.mulf %432, %432 : vector<32x128xf32>
    %cst_139 = arith.constant dense<0.000000e+00> : vector<32xf32>
    %434 = vector.multi_reduction <add>, %433, %cst_139 [1] : vector<32x128xf32> to vector<32xf32>
    %435 = vector.shape_cast %434 : vector<32xf32> to vector<32x1xf32>
    %cst_140 = arith.constant 1.280000e+02 : f32
    %436 = vector.broadcast %cst_140 : f32 to vector<32x1xf32>
    %437 = arith.divf %435, %436 : vector<32x1xf32>
    %cst_141 = arith.constant 9.99999996E-13 : f32
    %438 = vector.broadcast %cst_141 : f32 to vector<32x1xf32>
    %439 = arith.addf %437, %438 : vector<32x1xf32>
    %440 = math.rsqrt %439 : vector<32x1xf32>
    %441 = vector.broadcast %440 : vector<32x1xf32> to vector<32x128xf32>
    %442 = arith.mulf %432, %441 : vector<32x128xf32>
    %443 = vector.broadcast %425 : vector<1x128xf32> to vector<32x128xf32>
    %444 = arith.mulf %442, %443 : vector<32x128xf32>
    %445 = vector.broadcast %426 : vector<1x128xf32> to vector<32x128xf32>
    %446 = arith.addf %444, %445 : vector<32x128xf32>
    %447 = vector.shape_cast %446 : vector<32x128xf32> to vector<2x16x128xf32>
    %448 = math.tanh %447 : vector<2x16x128xf32>
    %449 = arith.addf %56, %448 : vector<2x16x128xf32>
    %c0_142 = arith.constant 0 : index
    %c0_143 = arith.constant 0 : index
    %c0_144 = arith.constant 0 : index
    %450 = vector.load %arg8[%c0_142, %c0_143, %c0_144] : memref<2x16x128xf32, #tpu.memory_space<vmem>>, vector<2x16x128xf32>
    tpu.vector_store %arg8[%c0_142, %c0_143, %c0_144], %449 {strides = array<i32>} : memref<2x16x128xf32, #tpu.memory_space<vmem>>, vector<2x16x128xf32>,
    %451 = vector.extract_strided_slice %449 {offsets = [0, 8, 0], sizes = [2, 8, 128], strides = [1, 1, 1]} : vector<2x16x128xf32> to vector<2x8x128xf32>
    %452 = vector.shape_cast %451 : vector<2x8x128xf32> to vector<16x128xf32>
    %c0_145 = arith.constant 0 : index
    %c640 = arith.constant 640 : index
    %453 = vector.load %arg5[%c0_145, %c640] : memref<128x2304xbf16, #tpu.memory_space<vmem>>, vector<128x128xbf16>
    %454 = arith.truncf %452 : vector<16x128xf32> to vector<16x128xbf16>
    %cst_146 = arith.constant dense<0.000000e+00> : vector<16x128xf32>
    %455 = tpu.matmul %454, %453, %cst_146 {dimension_numbers = #tpu.dot_dimension_numbers<[1], [0], [0], [1], [0, 0, 1, 1], [], []>} : vector<16x128xbf16>, vector<128x128xbf16>, vector<16x128xf32> -> vector<16x128xf32>
    %c7 = arith.constant 7 : index
    %c0_147 = arith.constant 0 : index
    %456 = vector.load %arg7[%c7, %c0_147] : memref<26x384xf32, #tpu.memory_space<vmem>>, vector<1x128xf32>
    %457 = vector.broadcast %456 : vector<1x128xf32> to vector<16x128xf32>
    %458 = arith.addf %455, %457 : vector<16x128xf32>
    %cst_148 = arith.constant 0.000000e+00 : f32
    %459 = vector.broadcast %cst_148 : f32 to vector<16x128xf32>
    %460 = arith.cmpf ogt, %458, %459 : vector<16x128xf32>
    %461 = math.exp %458 : vector<16x128xf32>
    %cst_149 = arith.constant 1.000000e+00 : f32
    %462 = vector.broadcast %cst_149 : f32 to vector<16x128xf32>
    %463 = arith.subf %461, %462 : vector<16x128xf32>
    %464 = arith.select %460, %458, %463 : vector<16x128xi1>, vector<16x128xf32>
    %465 = vector.shape_cast %464 : vector<16x128xf32> to vector<2x8x128xf32>
    %c8 = arith.constant 8 : index
    %c0_150 = arith.constant 0 : index
    %466 = vector.load %arg7[%c8, %c0_150] : memref<26x384xf32, #tpu.memory_space<vmem>>, vector<1x128xf32>
    %467 = vector.shape_cast %466 : vector<1x128xf32> to vector<1x1x128xf32>
    %468 = vector.broadcast %467 : vector<1x1x128xf32> to vector<2x8x128xf32>
    %469 = arith.mulf %465, %468 : vector<2x8x128xf32>
    %cst_151 = arith.constant dense<0.000000e+00> : vector<2x8xf32>
    %470 = vector.multi_reduction <add>, %469, %cst_151 [2] : vector<2x8x128xf32> to vector<2x8xf32>
    %c9 = arith.constant 9 : index
    %c0_152 = arith.constant 0 : index
    %471 = vector.load %arg7[%c9, %c0_152] : memref<26x384xf32, #tpu.memory_space<vmem>>, vector<1x1xf32>
    %472 = vector.broadcast %471 : vector<1x1xf32> to vector<2x8xf32>
    %473 = arith.addf %470, %472 : vector<2x8xf32>
    %cst_153 = arith.constant 0.000000e+00 : f32
    %474 = vector.broadcast %cst_153 : f32 to vector<2x8xf32>
    %475 = arith.subf %474, %473 : vector<2x8xf32>
    %476 = math.exp %475 : vector<2x8xf32>
    %cst_154 = arith.constant 1.000000e+00 : f32
    %477 = vector.broadcast %cst_154 : f32 to vector<2x8xf32>
    %478 = arith.addf %477, %476 : vector<2x8xf32>
    %cst_155 = arith.constant 1.000000e+00 : f32
    %479 = vector.broadcast %cst_155 : f32 to vector<2x8xf32>
    %480 = arith.divf %479, %478 : vector<2x8xf32>
    %cst_156 = arith.constant 0.000000e+00 : f32
    %481 = vector.broadcast %cst_156 : f32 to vector<4x128xf32>
    %c0_157 = arith.constant 0 : index
    %c0_158 = arith.constant 0 : index
    %482 = vector.load %arg10[%c0_157, %c0_158] : memref<4x128xf32, #tpu.memory_space<vmem>>, vector<4x128xf32>
    tpu.vector_store %arg10[%c0_157, %c0_158], %481 {strides = array<i32>} : memref<4x128xf32, #tpu.memory_space<vmem>>, vector<4x128xf32>,
    %c0_159 = arith.constant 0 : index
    %c0_160 = arith.constant 0 : index
    %483 = vector.load %arg10[%c0_159, %c0_160] : memref<4x128xf32, #tpu.memory_space<vmem>>, vector<2x8xf32>
    tpu.vector_store %arg10[%c0_159, %c0_160], %79 {strides = array<i32>} : memref<4x128xf32, #tpu.memory_space<vmem>>, vector<2x8xf32>,
    %c2_161 = arith.constant 2 : index
    %c0_162 = arith.constant 0 : index
    %484 = vector.load %arg10[%c2_161, %c0_162] : memref<4x128xf32, #tpu.memory_space<vmem>>, vector<2x8xf32>
    tpu.vector_store %arg10[%c2_161, %c0_162], %480 {strides = array<i32>} : memref<4x128xf32, #tpu.memory_space<vmem>>, vector<2x8xf32>,
    return
  }
  func.func @transform_0(%arg0: i32) -> (i32, i32, i32) {
    %c0_i32 = arith.constant 0 : i32
    %c0_i32_0 = arith.constant 0 : i32
    %c0_i32_1 = arith.constant 0 : i32
    %c0_i32_2 = arith.constant 0 : i32
    return %c0_i32, %c0_i32_0, %c0_i32_1 : i32, i32, i32
  }
  func.func @transform_1(%arg0: i32) -> (i32, i32) {
    %c0_i32 = arith.constant 0 : i32
    %c0_i32_0 = arith.constant 0 : i32
    %c0_i32_1 = arith.constant 0 : i32
    return %c0_i32, %c0_i32_0 : i32, i32
  }
  func.func @transform_2(%arg0: i32) -> (i32, i32, i32) {
    %c0_i32 = arith.constant 0 : i32
    %c0_i32_0 = arith.constant 0 : i32
    %c0_i32_1 = arith.constant 0 : i32
    %c0_i32_2 = arith.constant 0 : i32
    return %c0_i32, %c0_i32_0, %c0_i32_1 : i32, i32, i32
  }
  func.func @transform_3(%arg0: i32) -> (i32, i32, i32) {
    %c0_i32 = arith.constant 0 : i32
    %c0_i32_0 = arith.constant 0 : i32
    %c0_i32_1 = arith.constant 0 : i32
    %c0_i32_2 = arith.constant 0 : i32
    return %c0_i32, %c0_i32_0, %c0_i32_1 : i32, i32, i32
  }
  func.func @transform_4(%arg0: i32) -> (i32, i32) {
    %c0_i32 = arith.constant 0 : i32
    %c0_i32_0 = arith.constant 0 : i32
    %c0_i32_1 = arith.constant 0 : i32
    return %c0_i32, %c0_i32_0 : i32, i32
  }
  func.func @transform_5(%arg0: i32) -> (i32, i32) {
    %c0_i32 = arith.constant 0 : i32
    %c0_i32_0 = arith.constant 0 : i32
    %c0_i32_1 = arith.constant 0 : i32
    return %c0_i32, %c0_i32_0 : i32, i32
  }
  func.func @transform_6(%arg0: i32) -> (i32, i32) {
    %c0_i32 = arith.constant 0 : i32
    %c0_i32_0 = arith.constant 0 : i32
    %c0_i32_1 = arith.constant 0 : i32
    return %c0_i32, %c0_i32_0 : i32, i32
  }
  func.func @transform_7(%arg0: i32) -> (i32, i32, i32) {
    %c0_i32 = arith.constant 0 : i32
    %c0_i32_0 = arith.constant 0 : i32
    %c0_i32_1 = arith.constant 0 : i32
    %c0_i32_2 = arith.constant 0 : i32
    return %c0_i32, %c0_i32_0, %c0_i32_1 : i32, i32, i32
  }
  func.func @transform_8(%arg0: i32) -> (i32, i32, i32) {
    %c0_i32 = arith.constant 0 : i32
    %c0_i32_0 = arith.constant 0 : i32
    %c0_i32_1 = arith.constant 0 : i32
    %c0_i32_2 = arith.constant 0 : i32
    return %c0_i32, %c0_i32_0, %c0_i32_1 : i32, i32, i32
  }
  func.func @transform_9(%arg0: i32) -> (i32, i32) {
    %c0_i32 = arith.constant 0 : i32
    %c0_i32_0 = arith.constant 0 : i32
    %c0_i32_1 = arith.constant 0 : i32
    return %c0_i32, %c0_i32_0 : i32, i32
  }
}

</mosaic_0001>

<llo_original>
// kernel: tpu_custom_call.1
$region0: #{tpu_custom_call.1}
  #allocation0 [shape = 'u32[]', space=smem, size = 0x4, offset = 0x4, fixed_abs, tag = 'smem constant byte address 0x4 - core index']
  #allocation1 [shape = 'u32[144,128]{1,0:T(1,128)}', space=vmem, size = 0x12000, scoped, tag = 'internal scratch']
  %s0 = inlined_call_operand.hbm [shape: f32[2,16,128], index: 0, kind: input, shape index: {}]
  %s1 = inlined_call_operand.vmem [shape: f32[2,16], index: 1, kind: input, shape index: {}]
  %s2 = inlined_call_operand.hbm [shape: f32[2,8,8], index: 2, kind: input, shape index: {}]
  %s3 = inlined_call_operand.hbm [shape: f32[2,8,8], index: 3, kind: input, shape index: {}]
  %s4 = inlined_call_operand.hbm [shape: bf16[128,2304], index: 4, kind: input, shape index: {}]
  %s5 = inlined_call_operand.hbm [shape: bf16[256,256], index: 5, kind: input, shape index: {}]
  %s6 = inlined_call_operand.hbm [shape: f32[26,384], index: 6, kind: input, shape index: {}]
  %s7 = inlined_call_operand.hbm [shape: f32[2,16,128], index: 7, kind: output, shape index: {0}]
  %s8 = inlined_call_operand.hbm [shape: f32[2,16,128], index: 8, kind: output, shape index: {1}]
  %s9 = inlined_call_operand.hbm [shape: f32[4,128], index: 9, kind: output, shape index: {2}]
  %10 = xla_tuple %s7, %s8, %s9
  %s11 = sld [smem:[#allocation0]]
  $region78: #{tpu_custom_call.1} parent=0
    _
  %s13 = ssub.s32 1, %s11
  %s14 = scalar_select 0, %s13, %s11
  $region1: #{tpu_custom_call.1} parent=0
    #allocation2 [shape = 'u8[16384]{0}', space=vmem, size = 0x4000, scoped, tag = 'input window, operand 0, single buffered']
    #allocation3 [shape = 's32[1]{0}', space=sflag, size = 0x4, scoped, tag = 'scoped memory for tpu_custom_call.1']
    #allocation4 [shape = 's32[1]{0}', space=sflag, size = 0x4, scoped, tag = 'scoped memory for tpu_custom_call.1']
    #allocation5 [shape = 'u8[8192]{0}', space=vmem, size = 0x2000, scoped, tag = 'input window, operand 2, single buffered']
    #allocation6 [shape = 's32[1]{0}', space=sflag, size = 0x4, scoped, tag = 'scoped memory for tpu_custom_call.1']
    #allocation7 [shape = 'u8[8192]{0}', space=vmem, size = 0x2000, scoped, tag = 'input window, operand 3, single buffered']
    #allocation8 [shape = 'u8[589824]{0}', space=vmem, size = 0x90000, scoped, tag = 'input window, operand 4, single buffered']
    #allocation9 [shape = 's32[1]{0}', space=sflag, size = 0x4, scoped, tag = 'scoped memory for tpu_custom_call.1']
    #allocation10 [shape = 'u8[131072]{0}', space=vmem, size = 0x20000, scoped, tag = 'input window, operand 5, single buffered']
    #allocation11 [shape = 'u8[49152]{0}', space=vmem, size = 0xc000, scoped, tag = 'input window, operand 6, single buffered']
    #allocation12 [shape = 's32[1]{0}', space=sflag, size = 0x4, scoped, tag = 'scoped memory for tpu_custom_call.1']
    #allocation13 [shape = 'u8[16384]{0}', space=vmem, size = 0x4000, scoped, tag = 'output window, operand 0, single buffered']
    #allocation14 [shape = 'u8[16384]{0}', space=vmem, size = 0x4000, scoped, tag = 'output window, operand 1, single buffered']
    #allocation15 [shape = 's32[1]{0}', space=sflag, size = 0x4, scoped, tag = 'scoped memory for tpu_custom_call.1']
    #allocation16 [shape = 'u8[2048]{0}', space=vmem, size = 0x800, scoped, tag = 'output window, operand 2, single buffered']
    %15 = vsyncpa [#allocation3], 0
    %16 = vsyncpa [#allocation6], 0
    %17 = vsyncpa [#allocation9], 0
    %18 = vsyncpa [#allocation12], 0
    %19 = vsyncpa [#allocation4], 0
    %20 = vsyncpa [#allocation15], 0
    // Predicated region
    $region2: #{tpu_custom_call.1} parent=1 // pred_check
      _
    $region3: #{tpu_custom_call.1} parent=1 // pred_check_branch
      %22 = sbr.rel (0) target = $region5
    $region4: #{tpu_custom_call.1} parent=1 // pred_region
      %s24 = ssub.s32 512, 512
      %25 = vsyncadd [#allocation3], %s24
      %s26 = sshll.u32 [#allocation2], 4
      %s27 = int_to_ptr.vmem [resolvable:$true] %s26
      %32 = dma.hbm_to_vmem [thread:$0]  %s0, 512, %s27, [#allocation3], 128, 128, 8
    $region5: #{tpu_custom_call.1} parent=1 // pred_fallthru
      _
    // Predicated region
    $region6: #{tpu_custom_call.1} parent=1 // pred_check
      _
    $region7: #{tpu_custom_call.1} parent=1 // pred_check_branch
      %34 = sbr.rel (0) target = $region9
    $region8: #{tpu_custom_call.1} parent=1 // pred_region
      _
    $region9: #{tpu_custom_call.1} parent=1 // pred_fallthru
      _
    // Predicated region
    $region10: #{tpu_custom_call.1} parent=1 // pred_check
      _
    $region11: #{tpu_custom_call.1} parent=1 // pred_check_branch
      %36 = sbr.rel (0) target = $region13
    $region12: #{tpu_custom_call.1} parent=1 // pred_region
      %s38 = ssub.s32 256, 256
      %39 = vsyncadd [#allocation6], %s38
      %s40 = sshll.u32 [#allocation5], 4
      %s41 = int_to_ptr.vmem [resolvable:$true] %s40
      %46 = dma.hbm_to_vmem [thread:$0]  %s2, 256, %s41, [#allocation6], 128, 128, 8
    $region13: #{tpu_custom_call.1} parent=1 // pred_fallthru
      _
    // Predicated region
    $region14: #{tpu_custom_call.1} parent=1 // pred_check
      _
    $region15: #{tpu_custom_call.1} parent=1 // pred_check_branch
      %48 = sbr.rel (0) target = $region17
    $region16: #{tpu_custom_call.1} parent=1 // pred_region
      %s50 = ssub.s32 256, 256
      %51 = vsyncadd [#allocation6], %s50
      %s52 = sshll.u32 [#allocation7], 4
      %s53 = int_to_ptr.vmem [resolvable:$true] %s52
      %58 = dma.hbm_to_vmem [thread:$0]  %s3, 256, %s53, [#allocation6], 128, 128, 8
    $region17: #{tpu_custom_call.1} parent=1 // pred_fallthru
      _
    // Predicated region
    $region18: #{tpu_custom_call.1} parent=1 // pred_check
      _
    $region19: #{tpu_custom_call.1} parent=1 // pred_check_branch
      %60 = sbr.rel (0) target = $region21
    $region20: #{tpu_custom_call.1} parent=1 // pred_region
      %s62 = ssub.s32 18432, 18432
      %63 = vsyncadd [#allocation9], %s62
      %s64 = sshll.u32 [#allocation8], 4
      %s65 = int_to_ptr.vmem [resolvable:$true] %s64
      %70 = dma.hbm_to_vmem [thread:$0]  %s4, 18432, %s65, [#allocation9], 1152, 1152, 72
    $region21: #{tpu_custom_call.1} parent=1 // pred_fallthru
      _
    // Predicated region
    $region22: #{tpu_custom_call.1} parent=1 // pred_check
      _
    $region23: #{tpu_custom_call.1} parent=1 // pred_check_branch
      %72 = sbr.rel (0) target = $region25
    $region24: #{tpu_custom_call.1} parent=1 // pred_region
      %s74 = ssub.s32 4096, 4096
      %75 = vsyncadd [#allocation9], %s74
      %s76 = sshll.u32 [#allocation10], 4
      %s77 = int_to_ptr.vmem [resolvable:$true] %s76
      %82 = dma.hbm_to_vmem [thread:$0]  %s5, 4096, %s77, [#allocation9], 128, 128, 8
    $region25: #{tpu_custom_call.1} parent=1 // pred_fallthru
      _
    // Predicated region
    $region26: #{tpu_custom_call.1} parent=1 // pred_check
      _
    $region27: #{tpu_custom_call.1} parent=1 // pred_check_branch
      %84 = sbr.rel (0) target = $region29
    $region28: #{tpu_custom_call.1} parent=1 // pred_region
      %s86 = ssub.s32 1536, 1536
      %87 = vsyncadd [#allocation12], %s86
      %s88 = sshll.u32 [#allocation11], 4
      %s89 = int_to_ptr.vmem [resolvable:$true] %s88
      %94 = dma.hbm_to_vmem [thread:$0]  %s6, 1536, %s89, [#allocation12], 384, 384, 24
    $region29: #{tpu_custom_call.1} parent=1 // pred_fallthru
      _
    // Predicated region
    $region30: #{tpu_custom_call.1} parent=1 // pred_check
      _
    $region31: #{tpu_custom_call.1} parent=1 // pred_check_branch
      %96 = sbr.rel (0) target = $region33
    $region32: #{tpu_custom_call.1} parent=1 // pred_region
      %97 = dma.done [#allocation3], 512
    $region33: #{tpu_custom_call.1} parent=1 // pred_fallthru
      _
    // Predicated region
    $region34: #{tpu_custom_call.1} parent=1 // pred_check
      _
    $region35: #{tpu_custom_call.1} parent=1 // pred_check_branch
      %99 = sbr.rel (0) target = $region37
    $region36: #{tpu_custom_call.1} parent=1 // pred_region
      %100 = dma.done [#allocation6], 256
    $region37: #{tpu_custom_call.1} parent=1 // pred_fallthru
      _
    // Predicated region
    $region38: #{tpu_custom_call.1} parent=1 // pred_check
      _
    $region39: #{tpu_custom_call.1} parent=1 // pred_check_branch
      %102 = sbr.rel (0) target = $region41
    $region40: #{tpu_custom_call.1} parent=1 // pred_region
      %103 = dma.done [#allocation6], 256
    $region41: #{tpu_custom_call.1} parent=1 // pred_fallthru
      _
    // Predicated region
    $region42: #{tpu_custom_call.1} parent=1 // pred_check
      _
    $region43: #{tpu_custom_call.1} parent=1 // pred_check_branch
      %105 = sbr.rel (0) target = $region45
    $region44: #{tpu_custom_call.1} parent=1 // pred_region
      %106 = dma.done [#allocation9], 18432
    $region45: #{tpu_custom_call.1} parent=1 // pred_fallthru
      _
    // Predicated region
    $region46: #{tpu_custom_call.1} parent=1 // pred_check
      _
    $region47: #{tpu_custom_call.1} parent=1 // pred_check_branch
      %108 = sbr.rel (0) target = $region49
    $region48: #{tpu_custom_call.1} parent=1 // pred_region
      %109 = dma.done [#allocation9], 4096
    $region49: #{tpu_custom_call.1} parent=1 // pred_fallthru
      _
    // Predicated region
    $region50: #{tpu_custom_call.1} parent=1 // pred_check
      _
    $region51: #{tpu_custom_call.1} parent=1 // pred_check_branch
      %111 = sbr.rel (0) target = $region53
    $region52: #{tpu_custom_call.1} parent=1 // pred_region
      %112 = dma.done [#allocation12], 1536
    $region53: #{tpu_custom_call.1} parent=1 // pred_fallthru
      _
    %v114 = vld [vmem:[#allocation2] sm:$0xff]
    %v115 = vld [vmem:[#allocation2 + $0x8] sm:$0xff]
    %v116 = vld [vmem:[#allocation2 + $0x10] sm:$0xff]
    %v117 = vld [vmem:[#allocation2 + $0x18] sm:$0xff]
    %v118 = vld [vmem:[#allocation5] sm:$0xff]
    %v119 = vld [vmem:[#allocation5 + $0x8] sm:$0xff]
    %v120 = vld [vmem:[#allocation7] sm:$0xff]
    %v121 = vld [vmem:[#allocation7 + $0x8] sm:$0xff]
    %v122 = vld [vmem:[#allocation8] sm:$0xf]
    %v123 = vld [vmem:[#allocation8 + $0x48] sm:$0xf]
    %v124 = vld [vmem:[#allocation8 + $0x90] sm:$0xf]
    %v125 = vld [vmem:[#allocation8 + $0xd8] sm:$0xf]
    %v126 = vld [vmem:[#allocation8 + $0x120] sm:$0xf]
    %v127 = vld [vmem:[#allocation8 + $0x168] sm:$0xf]
    %v128 = vld [vmem:[#allocation8 + $0x1b0] sm:$0xf]
    %v129 = vld [vmem:[#allocation8 + $0x1f8] sm:$0xf]
    %v130 = vld [vmem:[#allocation8 + $0x240] sm:$0xf]
    %v131 = vld [vmem:[#allocation8 + $0x288] sm:$0xf]
    %v132 = vld [vmem:[#allocation8 + $0x2d0] sm:$0xf]
    %v133 = vld [vmem:[#allocation8 + $0x318] sm:$0xf]
    %v134 = vld [vmem:[#allocation8 + $0x360] sm:$0xf]
    %v135 = vld [vmem:[#allocation8 + $0x3a8] sm:$0xf]
    %v136 = vld [vmem:[#allocation8 + $0x3f0] sm:$0xf]
    %v137 = vld [vmem:[#allocation8 + $0x438] sm:$0xf]
    %v138 = vpack.c.bf16 %v116, %v114
    %v139 = vld [vmem:[#allocation11] ss:$0 sm:$0xff]
    %v156 = vunpack.c.l.b16 %v122
    %v157 = vunpack.c.l.b16 %v123
    %v158 = vunpack.c.l.b16 %v124
    %v159 = vunpack.c.l.b16 %v125
    %v160 = vunpack.c.l.b16 %v126
    %v161 = vunpack.c.l.b16 %v127
    %v162 = vunpack.c.l.b16 %v128
    %v163 = vunpack.c.l.b16 %v129
    %v164 = vunpack.c.l.b16 %v130
    %v165 = vunpack.c.l.b16 %v131
    %v166 = vunpack.c.l.b16 %v132
    %v167 = vunpack.c.l.b16 %v133
    %v168 = vunpack.c.l.b16 %v134
    %v169 = vunpack.c.l.b16 %v135
    %v170 = vunpack.c.l.b16 %v136
    %v171 = vunpack.c.l.b16 %v137
    %v172 = vpack.c.b16 %v157, %v156
    %v173 = vpack.c.b16 %v159, %v158
    %v174 = vpack.c.b16 %v161, %v160
    %v175 = vpack.c.b16 %v163, %v162
    %v176 = vpack.c.b16 %v165, %v164
    %v177 = vpack.c.b16 %v167, %v166
    %v178 = vpack.c.b16 %v169, %v168
    %v179 = vpack.c.b16 %v171, %v170
    %188 = vmatprep.subr.bf16.mxu0 0
    %189 = vmatpush1.bf16.msra.mxu0 %v172
    %190 = vmatprep.subr.bf16.mxu0 0
    %191 = vmatpush1.bf16.msra.mxu0 %v173
    %192 = vmatprep.subr.bf16.mxu0 0
    %193 = vmatpush1.bf16.msra.mxu0 %v174
    %194 = vmatprep.subr.bf16.mxu0 0
    %195 = vmatpush1.bf16.msra.mxu0 %v175
    %196 = vmatprep.subr.bf16.mxu0 0
    %197 = vmatpush1.bf16.msra.mxu0 %v176
    %198 = vmatprep.subr.bf16.mxu0 0
    %199 = vmatpush1.bf16.msra.mxu0 %v177
    %200 = vmatprep.subr.bf16.mxu0 0
    %201 = vmatpush1.bf16.msra.mxu0 %v178
    %202 = vmatprep.subr.bf16.mxu0 0
    %203 = vmatpush1.bf16.msra.mxu0 %v179
    %204 = vmatprep.subr.bf16.mxu0 0
    %205 = vmatpush1.bf16.msra.mxu0 0
    %206 = vmatprep.subr.bf16.mxu0 0
    %207 = vmatpush1.bf16.msra.mxu0 0
    %208 = vmatprep.subr.bf16.mxu0 0
    %209 = vmatpush1.bf16.msra.mxu0 0
    %210 = vmatprep.subr.bf16.mxu0 0
    %211 = vmatpush1.bf16.msra.mxu0 0
    %212 = vmatprep.subr.bf16.mxu0 0
    %213 = vmatpush1.bf16.msra.mxu0 0
    %214 = vmatprep.subr.bf16.mxu0 0
    %215 = vmatpush1.bf16.msra.mxu0 0
    %216 = vmatprep.subr.bf16.mxu0 0
    %217 = vmatpush1.bf16.msra.mxu0 0
    %218 = vmatprep.subr.bf16.mxu0 0
    %219 = vmatpush1.bf16.msra.mxu0 0
    %220 = vmatprep.mubr.bf16.mxu0 0
    %221 = vmatmul.mubr.bf16.gmra.mrb[0].mxu0 %v138
    %v222 = vpop.f32.mrb[0].mxu0
    %v223 = vadd.f32 %v139, %v222
    %v224 = vpop.f32.mrb[0].mxu0
    %v225 = vpop.f32.mrb[0].mxu0
    %v226 = vadd.f32 %v139, %v225
    %v227 = vpop.f32.mrb[0].mxu0
    %228 = vdwg.mxu0
    %v229 = vld [vmem:[#allocation8 + $0x8] sm:$0xf]
    %v230 = vld [vmem:[#allocation8 + $0x50] sm:$0xf]
    %v231 = vld [vmem:[#allocation8 + $0x98] sm:$0xf]
    %v232 = vld [vmem:[#allocation8 + $0xe0] sm:$0xf]
    %v233 = vld [vmem:[#allocation8 + $0x128] sm:$0xf]
    %v234 = vld [vmem:[#allocation8 + $0x170] sm:$0xf]
    %v235 = vld [vmem:[#allocation8 + $0x1b8] sm:$0xf]
    %v236 = vld [vmem:[#allocation8 + $0x200] sm:$0xf]
    %v237 = vld [vmem:[#allocation8 + $0x248] sm:$0xf]
    %v238 = vld [vmem:[#allocation8 + $0x290] sm:$0xf]
    %v239 = vld [vmem:[#allocation8 + $0x2d8] sm:$0xf]
    %v240 = vld [vmem:[#allocation8 + $0x320] sm:$0xf]
    %v241 = vld [vmem:[#allocation8 + $0x368] sm:$0xf]
    %v242 = vld [vmem:[#allocation8 + $0x3b0] sm:$0xf]
    %v243 = vld [vmem:[#allocation8 + $0x3f8] sm:$0xf]
    %v244 = vld [vmem:[#allocation8 + $0x440] sm:$0xf]
    %v245 = vpack.c.bf16 %v117, %v115
    %v246 = vld [vmem:[#allocation11 + $0x2] ss:$0 sm:$0xff]
    %v263 = vunpack.c.l.b16 %v229
    %v264 = vunpack.c.l.b16 %v230
    %v265 = vunpack.c.l.b16 %v231
    %v266 = vunpack.c.l.b16 %v232
    %v267 = vunpack.c.l.b16 %v233
    %v268 = vunpack.c.l.b16 %v234
    %v269 = vunpack.c.l.b16 %v235
    %v270 = vunpack.c.l.b16 %v236
    %v271 = vunpack.c.l.b16 %v237
    %v272 = vunpack.c.l.b16 %v238
    %v273 = vunpack.c.l.b16 %v239
    %v274 = vunpack.c.l.b16 %v240
    %v275 = vunpack.c.l.b16 %v241
    %v276 = vunpack.c.l.b16 %v242
    %v277 = vunpack.c.l.b16 %v243
    %v278 = vunpack.c.l.b16 %v244
    %v279 = vpack.c.b16 %v264, %v263
    %v280 = vpack.c.b16 %v266, %v265
    %v281 = vpack.c.b16 %v268, %v267
    %v282 = vpack.c.b16 %v270, %v269
    %v283 = vpack.c.b16 %v272, %v271
    %v284 = vpack.c.b16 %v274, %v273
    %v285 = vpack.c.b16 %v276, %v275
    %v286 = vpack.c.b16 %v278, %v277
    %295 = vmatprep.subr.bf16.mxu0 0
    %296 = vmatpush1.bf16.msra.mxu0 %v279
    %297 = vmatprep.subr.bf16.mxu0 0
    %298 = vmatpush1.bf16.msra.mxu0 %v280
    %299 = vmatprep.subr.bf16.mxu0 0
    %300 = vmatpush1.bf16.msra.mxu0 %v281
    %301 = vmatprep.subr.bf16.mxu0 0
    %302 = vmatpush1.bf16.msra.mxu0 %v282
    %303 = vmatprep.subr.bf16.mxu0 0
    %304 = vmatpush1.bf16.msra.mxu0 %v283
    %305 = vmatprep.subr.bf16.mxu0 0
    %306 = vmatpush1.bf16.msra.mxu0 %v284
    %307 = vmatprep.subr.bf16.mxu0 0
    %308 = vmatpush1.bf16.msra.mxu0 %v285
    %309 = vmatprep.subr.bf16.mxu0 0
    %310 = vmatpush1.bf16.msra.mxu0 %v286
    %311 = vmatprep.subr.bf16.mxu0 0
    %312 = vmatpush1.bf16.msra.mxu0 0
    %313 = vmatprep.subr.bf16.mxu0 0
    %314 = vmatpush1.bf16.msra.mxu0 0
    %315 = vmatprep.subr.bf16.mxu0 0
    %316 = vmatpush1.bf16.msra.mxu0 0
    %317 = vmatprep.subr.bf16.mxu0 0
    %318 = vmatpush1.bf16.msra.mxu0 0
    %319 = vmatprep.subr.bf16.mxu0 0
    %320 = vmatpush1.bf16.msra.mxu0 0
    %321 = vmatprep.subr.bf16.mxu0 0
    %322 = vmatpush1.bf16.msra.mxu0 0
    %323 = vmatprep.subr.bf16.mxu0 0
    %324 = vmatpush1.bf16.msra.mxu0 0
    %325 = vmatprep.subr.bf16.mxu0 0
    %326 = vmatpush1.bf16.msra.mxu0 0
    %327 = vmatprep.mubr.bf16.mxu0 0
    %328 = vmatmul.mubr.bf16.gmra.mrb[0].mxu0 %v245
    %v329 = vpop.f32.mrb[0].mxu0
    %v330 = vadd.f32 %v246, %v329
    %v331 = vpop.f32.mrb[0].mxu0
    %v332 = vpop.f32.mrb[0].mxu0
    %v333 = vadd.f32 %v246, %v332
    %v334 = vpop.f32.mrb[0].mxu0
    %335 = vdwg.mxu0
    %v336 = vpack.c.bf16 %v118, %v118
    %v337 = vpack.c.bf16 %v119, %v119
    %v338 = vpack.c.bf16 %v120, %v120
    %v339 = vpack.c.bf16 %v121, %v121
    %v340 = vpack.c.bf16 %v223, %v223
    %v341 = vpack.c.bf16 %v226, %v226
    %v342 = vpack.c.bf16 %v330, %v330
    %v343 = vpack.c.bf16 %v333, %v333
    %vm344 = vcmask 64512
    %v346 = vsel %vm344, %v336, 0
    %vm348 = vcmask 1043456
    %v350 = vsel %vm348, %v340, 0
    %352 = vmatprep.subr.bf16.mxu0 0
    %353 = vmatpush1.bf16.msra.mxu0 %v350
    %354 = vmatprep.subr.bf16.mxu0 0
    %355 = vmatpush1.bf16.msra.mxu0 0
    %356 = vmatprep.subr.bf16.mxu0 0
    %357 = vmatpush1.bf16.msra.mxu0 0
    %358 = vmatprep.subr.bf16.mxu0 0
    %359 = vmatpush1.bf16.msra.mxu0 0
    %360 = vmatprep.subr.bf16.mxu0 0
    %361 = vmatpush1.bf16.msra.mxu0 0
    %362 = vmatprep.subr.bf16.mxu0 0
    %363 = vmatpush1.bf16.msra.mxu0 0
    %364 = vmatprep.subr.bf16.mxu0 0
    %365 = vmatpush1.bf16.msra.mxu0 0
    %366 = vmatprep.subr.bf16.mxu0 0
    %367 = vmatpush1.bf16.msra.mxu0 0
    %368 = vmatprep.subr.bf16.mxu0 0
    %369 = vmatpush1.bf16.msra.mxu0 0
    %370 = vmatprep.subr.bf16.mxu0 0
    %371 = vmatpush1.bf16.msra.mxu0 0
    %372 = vmatprep.subr.bf16.mxu0 0
    %373 = vmatpush1.bf16.msra.mxu0 0
    %374 = vmatprep.subr.bf16.mxu0 0
    %375 = vmatpush1.bf16.msra.mxu0 0
    %376 = vmatprep.subr.bf16.mxu0 0
    %377 = vmatpush1.bf16.msra.mxu0 0
    %378 = vmatprep.subr.bf16.mxu0 0
    %379 = vmatpush1.bf16.msra.mxu0 0
    %380 = vmatprep.subr.bf16.mxu0 0
    %381 = vmatpush1.bf16.msra.mxu0 0
    %382 = vmatprep.subr.bf16.mxu0 0
    %383 = vmatpush1.bf16.msra.mxu0 0
    %384 = vmatprep.mubr.bf16.mxu0 0
    %385 = vmatmul.mubr.bf16.gmra.mrb[0].mxu0 %v346
    %v386 = vpop.f32.mrb[0].mxu0
    %v387 = vadd.f32 0.0, %v386
    %v388 = vpop.f32.mrb[0].mxu0
    %v389 = vpop.f32.mrb[0].mxu0
    %v390 = vpop.f32.mrb[0].mxu0
    %391 = vdwg.mxu0
    %v393 = vsel %vm344, %v337, 0
    %v396 = vsel %vm348, %v341, 0
    %398 = vmatprep.subr.bf16.mxu0 0
    %399 = vmatpush1.bf16.msra.mxu0 %v396
    %400 = vmatprep.subr.bf16.mxu0 0
    %401 = vmatpush1.bf16.msra.mxu0 0
    %402 = vmatprep.subr.bf16.mxu0 0
    %403 = vmatpush1.bf16.msra.mxu0 0
    %404 = vmatprep.subr.bf16.mxu0 0
    %405 = vmatpush1.bf16.msra.mxu0 0
    %406 = vmatprep.subr.bf16.mxu0 0
    %407 = vmatpush1.bf16.msra.mxu0 0
    %408 = vmatprep.subr.bf16.mxu0 0
    %409 = vmatpush1.bf16.msra.mxu0 0
    %410 = vmatprep.subr.bf16.mxu0 0
    %411 = vmatpush1.bf16.msra.mxu0 0
    %412 = vmatprep.subr.bf16.mxu0 0
    %413 = vmatpush1.bf16.msra.mxu0 0
    %414 = vmatprep.subr.bf16.mxu0 0
    %415 = vmatpush1.bf16.msra.mxu0 0
    %416 = vmatprep.subr.bf16.mxu0 0
    %417 = vmatpush1.bf16.msra.mxu0 0
    %418 = vmatprep.subr.bf16.mxu0 0
    %419 = vmatpush1.bf16.msra.mxu0 0
    %420 = vmatprep.subr.bf16.mxu0 0
    %421 = vmatpush1.bf16.msra.mxu0 0
    %422 = vmatprep.subr.bf16.mxu0 0
    %423 = vmatpush1.bf16.msra.mxu0 0
    %424 = vmatprep.subr.bf16.mxu0 0
    %425 = vmatpush1.bf16.msra.mxu0 0
    %426 = vmatprep.subr.bf16.mxu0 0
    %427 = vmatpush1.bf16.msra.mxu0 0
    %428 = vmatprep.subr.bf16.mxu0 0
    %429 = vmatpush1.bf16.msra.mxu0 0
    %430 = vmatprep.mubr.bf16.mxu0 0
    %431 = vmatmul.mubr.bf16.gmra.mrb[0].mxu0 %v393
    %v432 = vpop.f32.mrb[0].mxu0
    %v433 = vadd.f32 0.0, %v432
    %v434 = vpop.f32.mrb[0].mxu0
    %v435 = vpop.f32.mrb[0].mxu0
    %v436 = vpop.f32.mrb[0].mxu0
    %437 = vdwg.mxu0
    %v439 = vsel %vm344, %v338, 0
    %v442 = vsel %vm348, %v342, 0
    %444 = vmatprep.subr.bf16.mxu0 0
    %445 = vmatpush1.bf16.msra.mxu0 %v442
    %446 = vmatprep.subr.bf16.mxu0 0
    %447 = vmatpush1.bf16.msra.mxu0 0
    %448 = vmatprep.subr.bf16.mxu0 0
    %449 = vmatpush1.bf16.msra.mxu0 0
    %450 = vmatprep.subr.bf16.mxu0 0
    %451 = vmatpush1.bf16.msra.mxu0 0
    %452 = vmatprep.subr.bf16.mxu0 0
    %453 = vmatpush1.bf16.msra.mxu0 0
    %454 = vmatprep.subr.bf16.mxu0 0
    %455 = vmatpush1.bf16.msra.mxu0 0
    %456 = vmatprep.subr.bf16.mxu0 0
    %457 = vmatpush1.bf16.msra.mxu0 0
    %458 = vmatprep.subr.bf16.mxu0 0
    %459 = vmatpush1.bf16.msra.mxu0 0
    %460 = vmatprep.subr.bf16.mxu0 0
    %461 = vmatpush1.bf16.msra.mxu0 0
    %462 = vmatprep.subr.bf16.mxu0 0
    %463 = vmatpush1.bf16.msra.mxu0 0
    %464 = vmatprep.subr.bf16.mxu0 0
    %465 = vmatpush1.bf16.msra.mxu0 0
    %466 = vmatprep.subr.bf16.mxu0 0
    %467 = vmatpush1.bf16.msra.mxu0 0
    %468 = vmatprep.subr.bf16.mxu0 0
    %469 = vmatpush1.bf16.msra.mxu0 0
    %470 = vmatprep.subr.bf16.mxu0 0
    %471 = vmatpush1.bf16.msra.mxu0 0
    %472 = vmatprep.subr.bf16.mxu0 0
    %473 = vmatpush1.bf16.msra.mxu0 0
    %474 = vmatprep.subr.bf16.mxu0 0
    %475 = vmatpush1.bf16.msra.mxu0 0
    %476 = vmatprep.mubr.bf16.mxu0 0
    %477 = vmatmul.mubr.bf16.gmra.mrb[0].mxu0 %v439
    %v478 = vpop.f32.mrb[0].mxu0
    %v479 = vadd.f32 0.0, %v478
    %v480 = vpop.f32.mrb[0].mxu0
    %v481 = vpop.f32.mrb[0].mxu0
    %v482 = vpop.f32.mrb[0].mxu0
    %483 = vdwg.mxu0
    %v485 = vsel %vm344, %v339, 0
    %v488 = vsel %vm348, %v343, 0
    %490 = vmatprep.subr.bf16.mxu0 0
    %491 = vmatpush1.bf16.msra.mxu0 %v488
    %492 = vmatprep.subr.bf16.mxu0 0
    %493 = vmatpush1.bf16.msra.mxu0 0
    %494 = vmatprep.subr.bf16.mxu0 0
    %495 = vmatpush1.bf16.msra.mxu0 0
    %496 = vmatprep.subr.bf16.mxu0 0
    %497 = vmatpush1.bf16.msra.mxu0 0
    %498 = vmatprep.subr.bf16.mxu0 0
    %499 = vmatpush1.bf16.msra.mxu0 0
    %500 = vmatprep.subr.bf16.mxu0 0
    %501 = vmatpush1.bf16.msra.mxu0 0
    %502 = vmatprep.subr.bf16.mxu0 0
    %503 = vmatpush1.bf16.msra.mxu0 0
    %504 = vmatprep.subr.bf16.mxu0 0
    %505 = vmatpush1.bf16.msra.mxu0 0
    %506 = vmatprep.subr.bf16.mxu0 0
    %507 = vmatpush1.bf16.msra.mxu0 0
    %508 = vmatprep.subr.bf16.mxu0 0
    %509 = vmatpush1.bf16.msra.mxu0 0
    %510 = vmatprep.subr.bf16.mxu0 0
    %511 = vmatpush1.bf16.msra.mxu0 0
    %512 = vmatprep.subr.bf16.mxu0 0
    %513 = vmatpush1.bf16.msra.mxu0 0
    %514 = vmatprep.subr.bf16.mxu0 0
    %515 = vmatpush1.bf16.msra.mxu0 0
    %516 = vmatprep.subr.bf16.mxu0 0
    %517 = vmatpush1.bf16.msra.mxu0 0
    %518 = vmatprep.subr.bf16.mxu0 0
    %519 = vmatpush1.bf16.msra.mxu0 0
    %520 = vmatprep.subr.bf16.mxu0 0
    %521 = vmatpush1.bf16.msra.mxu0 0
    %522 = vmatprep.mubr.bf16.mxu0 0
    %523 = vmatmul.mubr.bf16.gmra.mrb[0].mxu0 %v485
    %v524 = vpop.f32.mrb[0].mxu0
    %v525 = vadd.f32 0.0, %v524
    %v526 = vpop.f32.mrb[0].mxu0
    %v527 = vpop.f32.mrb[0].mxu0
    %v528 = vpop.f32.mrb[0].mxu0
    %529 = vdwg.mxu0
    %v530 = vmax.f32 %v387, 0.0
    %v531 = vmax.f32 %v433, 0.0
    %v532 = vmax.f32 %v479, 0.0
    %v533 = vmax.f32 %v525, 0.0
    %v534 = vld [vmem:[#allocation8 + $0x4] sm:$0xf]
    %v535 = vld [vmem:[#allocation8 + $0x4c] sm:$0xf]
    %v536 = vld [vmem:[#allocation8 + $0x94] sm:$0xf]
    %v537 = vld [vmem:[#allocation8 + $0xdc] sm:$0xf]
    %v538 = vld [vmem:[#allocation8 + $0x124] sm:$0xf]
    %v539 = vld [vmem:[#allocation8 + $0x16c] sm:$0xf]
    %v540 = vld [vmem:[#allocation8 + $0x1b4] sm:$0xf]
    %v541 = vld [vmem:[#allocation8 + $0x1fc] sm:$0xf]
    %v542 = vld [vmem:[#allocation8 + $0x244] sm:$0xf]
    %v543 = vld [vmem:[#allocation8 + $0x28c] sm:$0xf]
    %v544 = vld [vmem:[#allocation8 + $0x2d4] sm:$0xf]
    %v545 = vld [vmem:[#allocation8 + $0x31c] sm:$0xf]
    %v546 = vld [vmem:[#allocation8 + $0x364] sm:$0xf]
    %v547 = vld [vmem:[#allocation8 + $0x3ac] sm:$0xf]
    %v548 = vld [vmem:[#allocation8 + $0x3f4] sm:$0xf]
    %v549 = vld [vmem:[#allocation8 + $0x43c] sm:$0xf]
    %v550 = vpack.c.bf16 %v531, %v530
    %v551 = vld [vmem:[#allocation11 + $0x1] ss:$0 sm:$0xff]
    %v568 = vunpack.c.l.b16 %v534
    %v569 = vunpack.c.l.b16 %v535
    %v570 = vunpack.c.l.b16 %v536
    %v571 = vunpack.c.l.b16 %v537
    %v572 = vunpack.c.l.b16 %v538
    %v573 = vunpack.c.l.b16 %v539
    %v574 = vunpack.c.l.b16 %v540
    %v575 = vunpack.c.l.b16 %v541
    %v576 = vunpack.c.l.b16 %v542
    %v577 = vunpack.c.l.b16 %v543
    %v578 = vunpack.c.l.b16 %v544
    %v579 = vunpack.c.l.b16 %v545
    %v580 = vunpack.c.l.b16 %v546
    %v581 = vunpack.c.l.b16 %v547
    %v582 = vunpack.c.l.b16 %v548
    %v583 = vunpack.c.l.b16 %v549
    %v584 = vpack.c.b16 %v569, %v568
    %v585 = vpack.c.b16 %v571, %v570
    %v586 = vpack.c.b16 %v573, %v572
    %v587 = vpack.c.b16 %v575, %v574
    %v588 = vpack.c.b16 %v577, %v576
    %v589 = vpack.c.b16 %v579, %v578
    %v590 = vpack.c.b16 %v581, %v580
    %v591 = vpack.c.b16 %v583, %v582
    %600 = vmatprep.subr.bf16.mxu0 0
    %601 = vmatpush1.bf16.msra.mxu0 %v584
    %602 = vmatprep.subr.bf16.mxu0 0
    %603 = vmatpush1.bf16.msra.mxu0 %v585
    %604 = vmatprep.subr.bf16.mxu0 0
    %605 = vmatpush1.bf16.msra.mxu0 %v586
    %606 = vmatprep.subr.bf16.mxu0 0
    %607 = vmatpush1.bf16.msra.mxu0 %v587
    %608 = vmatprep.subr.bf16.mxu0 0
    %609 = vmatpush1.bf16.msra.mxu0 %v588
    %610 = vmatprep.subr.bf16.mxu0 0
    %611 = vmatpush1.bf16.msra.mxu0 %v589
    %612 = vmatprep.subr.bf16.mxu0 0
    %613 = vmatpush1.bf16.msra.mxu0 %v590
    %614 = vmatprep.subr.bf16.mxu0 0
    %615 = vmatpush1.bf16.msra.mxu0 %v591
    %616 = vmatprep.subr.bf16.mxu0 0
    %617 = vmatpush1.bf16.msra.mxu0 0
    %618 = vmatprep.subr.bf16.mxu0 0
    %619 = vmatpush1.bf16.msra.mxu0 0
    %620 = vmatprep.subr.bf16.mxu0 0
    %621 = vmatpush1.bf16.msra.mxu0 0
    %622 = vmatprep.subr.bf16.mxu0 0
    %623 = vmatpush1.bf16.msra.mxu0 0
    %624 = vmatprep.subr.bf16.mxu0 0
    %625 = vmatpush1.bf16.msra.mxu0 0
    %626 = vmatprep.subr.bf16.mxu0 0
    %627 = vmatpush1.bf16.msra.mxu0 0
    %628 = vmatprep.subr.bf16.mxu0 0
    %629 = vmatpush1.bf16.msra.mxu0 0
    %630 = vmatprep.subr.bf16.mxu0 0
    %631 = vmatpush1.bf16.msra.mxu0 0
    %632 = vmatprep.mubr.bf16.mxu0 0
    %633 = vmatmul.mubr.bf16.gmra.mrb[0].mxu0 %v550
    %v634 = vpop.f32.mrb[0].mxu0
    %v635 = vadd.f32 %v551, %v634
    %v636 = vpop.f32.mrb[0].mxu0
    %v637 = vpop.f32.mrb[0].mxu0
    %v638 = vadd.f32 %v551, %v637
    %v639 = vpop.f32.mrb[0].mxu0
    %640 = vdwg.mxu0
    %v641 = vld [vmem:[#allocation8 + $0xc] sm:$0xf]
    %v642 = vld [vmem:[#allocation8 + $0x54] sm:$0xf]
    %v643 = vld [vmem:[#allocation8 + $0x9c] sm:$0xf]
    %v644 = vld [vmem:[#allocation8 + $0xe4] sm:$0xf]
    %v645 = vld [vmem:[#allocation8 + $0x12c] sm:$0xf]
    %v646 = vld [vmem:[#allocation8 + $0x174] sm:$0xf]
    %v647 = vld [vmem:[#allocation8 + $0x1bc] sm:$0xf]
    %v648 = vld [vmem:[#allocation8 + $0x204] sm:$0xf]
    %v649 = vld [vmem:[#allocation8 + $0x24c] sm:$0xf]
    %v650 = vld [vmem:[#allocation8 + $0x294] sm:$0xf]
    %v651 = vld [vmem:[#allocation8 + $0x2dc] sm:$0xf]
    %v652 = vld [vmem:[#allocation8 + $0x324] sm:$0xf]
    %v653 = vld [vmem:[#allocation8 + $0x36c] sm:$0xf]
    %v654 = vld [vmem:[#allocation8 + $0x3b4] sm:$0xf]
    %v655 = vld [vmem:[#allocation8 + $0x3fc] sm:$0xf]
    %v656 = vld [vmem:[#allocation8 + $0x444] sm:$0xf]
    %v657 = vpack.c.bf16 %v533, %v532
    %v658 = vld [vmem:[#allocation11 + $0x3] ss:$0 sm:$0xff]
    %v675 = vunpack.c.l.b16 %v641
    %v676 = vunpack.c.l.b16 %v642
    %v677 = vunpack.c.l.b16 %v643
    %v678 = vunpack.c.l.b16 %v644
    %v679 = vunpack.c.l.b16 %v645
    %v680 = vunpack.c.l.b16 %v646
    %v681 = vunpack.c.l.b16 %v647
    %v682 = vunpack.c.l.b16 %v648
    %v683 = vunpack.c.l.b16 %v649
    %v684 = vunpack.c.l.b16 %v650
    %v685 = vunpack.c.l.b16 %v651
    %v686 = vunpack.c.l.b16 %v652
    %v687 = vunpack.c.l.b16 %v653
    %v688 = vunpack.c.l.b16 %v654
    %v689 = vunpack.c.l.b16 %v655
    %v690 = vunpack.c.l.b16 %v656
    %v691 = vpack.c.b16 %v676, %v675
    %v692 = vpack.c.b16 %v678, %v677
    %v693 = vpack.c.b16 %v680, %v679
    %v694 = vpack.c.b16 %v682, %v681
    %v695 = vpack.c.b16 %v684, %v683
    %v696 = vpack.c.b16 %v686, %v685
    %v697 = vpack.c.b16 %v688, %v687
    %v698 = vpack.c.b16 %v690, %v689
    %707 = vmatprep.subr.bf16.mxu0 0
    %708 = vmatpush1.bf16.msra.mxu0 %v691
    %709 = vmatprep.subr.bf16.mxu0 0
    %710 = vmatpush1.bf16.msra.mxu0 %v692
    %711 = vmatprep.subr.bf16.mxu0 0
    %712 = vmatpush1.bf16.msra.mxu0 %v693
    %713 = vmatprep.subr.bf16.mxu0 0
    %714 = vmatpush1.bf16.msra.mxu0 %v694
    %715 = vmatprep.subr.bf16.mxu0 0
    %716 = vmatpush1.bf16.msra.mxu0 %v695
    %717 = vmatprep.subr.bf16.mxu0 0
    %718 = vmatpush1.bf16.msra.mxu0 %v696
    %719 = vmatprep.subr.bf16.mxu0 0
    %720 = vmatpush1.bf16.msra.mxu0 %v697
    %721 = vmatprep.subr.bf16.mxu0 0
    %722 = vmatpush1.bf16.msra.mxu0 %v698
    %723 = vmatprep.subr.bf16.mxu0 0
    %724 = vmatpush1.bf16.msra.mxu0 0
    %725 = vmatprep.subr.bf16.mxu0 0
    %726 = vmatpush1.bf16.msra.mxu0 0
    %727 = vmatprep.subr.bf16.mxu0 0
    %728 = vmatpush1.bf16.msra.mxu0 0
    %729 = vmatprep.subr.bf16.mxu0 0
    %730 = vmatpush1.bf16.msra.mxu0 0
    %731 = vmatprep.subr.bf16.mxu0 0
    %732 = vmatpush1.bf16.msra.mxu0 0
    %733 = vmatprep.subr.bf16.mxu0 0
    %734 = vmatpush1.bf16.msra.mxu0 0
    %735 = vmatprep.subr.bf16.mxu0 0
    %736 = vmatpush1.bf16.msra.mxu0 0
    %737 = vmatprep.subr.bf16.mxu0 0
    %738 = vmatpush1.bf16.msra.mxu0 0
    %739 = vmatprep.mubr.bf16.mxu0 0
    %740 = vmatmul.mubr.bf16.gmra.mrb[0].mxu0 %v657
    %v741 = vpop.f32.mrb[0].mxu0
    %v742 = vadd.f32 %v658, %v741
    %v743 = vpop.f32.mrb[0].mxu0
    %v744 = vpop.f32.mrb[0].mxu0
    %v745 = vadd.f32 %v658, %v744
    %v746 = vpop.f32.mrb[0].mxu0
    %747 = vdwg.mxu0
    %v748 = vpack.c.bf16 %v635, %v635
    %v749 = vpack.c.bf16 %v638, %v638
    %v750 = vpack.c.bf16 %v742, %v742
    %v751 = vpack.c.bf16 %v745, %v745
    %v753 = vsel %vm348, %v748, 0
    %755 = vmatprep.subr.bf16.mxu0 0
    %756 = vmatpush1.bf16.msra.mxu0 %v753
    %757 = vmatprep.subr.bf16.mxu0 0
    %758 = vmatpush1.bf16.msra.mxu0 0
    %759 = vmatprep.subr.bf16.mxu0 0
    %760 = vmatpush1.bf16.msra.mxu0 0
    %761 = vmatprep.subr.bf16.mxu0 0
    %762 = vmatpush1.bf16.msra.mxu0 0
    %763 = vmatprep.subr.bf16.mxu0 0
    %764 = vmatpush1.bf16.msra.mxu0 0
    %765 = vmatprep.subr.bf16.mxu0 0
    %766 = vmatpush1.bf16.msra.mxu0 0
    %767 = vmatprep.subr.bf16.mxu0 0
    %768 = vmatpush1.bf16.msra.mxu0 0
    %769 = vmatprep.subr.bf16.mxu0 0
    %770 = vmatpush1.bf16.msra.mxu0 0
    %771 = vmatprep.subr.bf16.mxu0 0
    %772 = vmatpush1.bf16.msra.mxu0 0
    %773 = vmatprep.subr.bf16.mxu0 0
    %774 = vmatpush1.bf16.msra.mxu0 0
    %775 = vmatprep.subr.bf16.mxu0 0
    %776 = vmatpush1.bf16.msra.mxu0 0
    %777 = vmatprep.subr.bf16.mxu0 0
    %778 = vmatpush1.bf16.msra.mxu0 0
    %779 = vmatprep.subr.bf16.mxu0 0
    %780 = vmatpush1.bf16.msra.mxu0 0
    %781 = vmatprep.subr.bf16.mxu0 0
    %782 = vmatpush1.bf16.msra.mxu0 0
    %783 = vmatprep.subr.bf16.mxu0 0
    %784 = vmatpush1.bf16.msra.mxu0 0
    %785 = vmatprep.subr.bf16.mxu0 0
    %786 = vmatpush1.bf16.msra.mxu0 0
    %787 = vmatprep.mubr.bf16.mxu0 0
    %788 = vmatmul.mubr.bf16.gmra.mrb[0].mxu0 %v346
    %v789 = vpop.f32.mrb[0].mxu0
    %v790 = vadd.f32 0.0, %v789
    %v791 = vpop.f32.mrb[0].mxu0
    %v792 = vpop.f32.mrb[0].mxu0
    %v793 = vpop.f32.mrb[0].mxu0
    %794 = vdwg.mxu0
    %v796 = vsel %vm348, %v749, 0
    %798 = vmatprep.subr.bf16.mxu0 0
    %799 = vmatpush1.bf16.msra.mxu0 %v796
    %800 = vmatprep.subr.bf16.mxu0 0
    %801 = vmatpush1.bf16.msra.mxu0 0
    %802 = vmatprep.subr.bf16.mxu0 0
    %803 = vmatpush1.bf16.msra.mxu0 0
    %804 = vmatprep.subr.bf16.mxu0 0
    %805 = vmatpush1.bf16.msra.mxu0 0
    %806 = vmatprep.subr.bf16.mxu0 0
    %807 = vmatpush1.bf16.msra.mxu0 0
    %808 = vmatprep.subr.bf16.mxu0 0
    %809 = vmatpush1.bf16.msra.mxu0 0
    %810 = vmatprep.subr.bf16.mxu0 0
    %811 = vmatpush1.bf16.msra.mxu0 0
    %812 = vmatprep.subr.bf16.mxu0 0
    %813 = vmatpush1.bf16.msra.mxu0 0
    %814 = vmatprep.subr.bf16.mxu0 0
    %815 = vmatpush1.bf16.msra.mxu0 0
    %816 = vmatprep.subr.bf16.mxu0 0
    %817 = vmatpush1.bf16.msra.mxu0 0
    %818 = vmatprep.subr.bf16.mxu0 0
    %819 = vmatpush1.bf16.msra.mxu0 0
    %820 = vmatprep.subr.bf16.mxu0 0
    %821 = vmatpush1.bf16.msra.mxu0 0
    %822 = vmatprep.subr.bf16.mxu0 0
    %823 = vmatpush1.bf16.msra.mxu0 0
    %824 = vmatprep.subr.bf16.mxu0 0
    %825 = vmatpush1.bf16.msra.mxu0 0
    %826 = vmatprep.subr.bf16.mxu0 0
    %827 = vmatpush1.bf16.msra.mxu0 0
    %828 = vmatprep.subr.bf16.mxu0 0
    %829 = vmatpush1.bf16.msra.mxu0 0
    %830 = vmatprep.mubr.bf16.mxu0 0
    %831 = vmatmul.mubr.bf16.gmra.mrb[0].mxu0 %v393
    %v832 = vpop.f32.mrb[0].mxu0
    %v833 = vadd.f32 0.0, %v832
    %v834 = vpop.f32.mrb[0].mxu0
    %v835 = vpop.f32.mrb[0].mxu0
    %v836 = vpop.f32.mrb[0].mxu0
    %837 = vdwg.mxu0
    %v839 = vsel %vm348, %v750, 0
    %841 = vmatprep.subr.bf16.mxu0 0
    %842 = vmatpush1.bf16.msra.mxu0 %v839
    %843 = vmatprep.subr.bf16.mxu0 0
    %844 = vmatpush1.bf16.msra.mxu0 0
    %845 = vmatprep.subr.bf16.mxu0 0
    %846 = vmatpush1.bf16.msra.mxu0 0
    %847 = vmatprep.subr.bf16.mxu0 0
    %848 = vmatpush1.bf16.msra.mxu0 0
    %849 = vmatprep.subr.bf16.mxu0 0
    %850 = vmatpush1.bf16.msra.mxu0 0
    %851 = vmatprep.subr.bf16.mxu0 0
    %852 = vmatpush1.bf16.msra.mxu0 0
    %853 = vmatprep.subr.bf16.mxu0 0
    %854 = vmatpush1.bf16.msra.mxu0 0
    %855 = vmatprep.subr.bf16.mxu0 0
    %856 = vmatpush1.bf16.msra.mxu0 0
    %857 = vmatprep.subr.bf16.mxu0 0
    %858 = vmatpush1.bf16.msra.mxu0 0
    %859 = vmatprep.subr.bf16.mxu0 0
    %860 = vmatpush1.bf16.msra.mxu0 0
    %861 = vmatprep.subr.bf16.mxu0 0
    %862 = vmatpush1.bf16.msra.mxu0 0
    %863 = vmatprep.subr.bf16.mxu0 0
    %864 = vmatpush1.bf16.msra.mxu0 0
    %865 = vmatprep.subr.bf16.mxu0 0
    %866 = vmatpush1.bf16.msra.mxu0 0
    %867 = vmatprep.subr.bf16.mxu0 0
    %868 = vmatpush1.bf16.msra.mxu0 0
    %869 = vmatprep.subr.bf16.mxu0 0
    %870 = vmatpush1.bf16.msra.mxu0 0
    %871 = vmatprep.subr.bf16.mxu0 0
    %872 = vmatpush1.bf16.msra.mxu0 0
    %873 = vmatprep.mubr.bf16.mxu0 0
    %874 = vmatmul.mubr.bf16.gmra.mrb[0].mxu0 %v439
    %v875 = vpop.f32.mrb[0].mxu0
    %v876 = vadd.f32 0.0, %v875
    %v877 = vpop.f32.mrb[0].mxu0
    %v878 = vpop.f32.mrb[0].mxu0
    %v879 = vpop.f32.mrb[0].mxu0
    %880 = vdwg.mxu0
    %v882 = vsel %vm348, %v751, 0
    %884 = vmatprep.subr.bf16.mxu0 0
    %885 = vmatpush1.bf16.msra.mxu0 %v882
    %886 = vmatprep.subr.bf16.mxu0 0
    %887 = vmatpush1.bf16.msra.mxu0 0
    %888 = vmatprep.subr.bf16.mxu0 0
    %889 = vmatpush1.bf16.msra.mxu0 0
    %890 = vmatprep.subr.bf16.mxu0 0
    %891 = vmatpush1.bf16.msra.mxu0 0
    %892 = vmatprep.subr.bf16.mxu0 0
    %893 = vmatpush1.bf16.msra.mxu0 0
    %894 = vmatprep.subr.bf16.mxu0 0
    %895 = vmatpush1.bf16.msra.mxu0 0
    %896 = vmatprep.subr.bf16.mxu0 0
    %897 = vmatpush1.bf16.msra.mxu0 0
    %898 = vmatprep.subr.bf16.mxu0 0
    %899 = vmatpush1.bf16.msra.mxu0 0
    %900 = vmatprep.subr.bf16.mxu0 0
    %901 = vmatpush1.bf16.msra.mxu0 0
    %902 = vmatprep.subr.bf16.mxu0 0
    %903 = vmatpush1.bf16.msra.mxu0 0
    %904 = vmatprep.subr.bf16.mxu0 0
    %905 = vmatpush1.bf16.msra.mxu0 0
    %906 = vmatprep.subr.bf16.mxu0 0
    %907 = vmatpush1.bf16.msra.mxu0 0
    %908 = vmatprep.subr.bf16.mxu0 0
    %909 = vmatpush1.bf16.msra.mxu0 0
    %910 = vmatprep.subr.bf16.mxu0 0
    %911 = vmatpush1.bf16.msra.mxu0 0
    %912 = vmatprep.subr.bf16.mxu0 0
    %913 = vmatpush1.bf16.msra.mxu0 0
    %914 = vmatprep.subr.bf16.mxu0 0
    %915 = vmatpush1.bf16.msra.mxu0 0
    %916 = vmatprep.mubr.bf16.mxu0 0
    %917 = vmatmul.mubr.bf16.gmra.mrb[0].mxu0 %v485
    %v918 = vpop.f32.mrb[0].mxu0
    %v919 = vadd.f32 0.0, %v918
    %v920 = vpop.f32.mrb[0].mxu0
    %v921 = vpop.f32.mrb[0].mxu0
    %v922 = vpop.f32.mrb[0].mxu0
    %923 = vdwg.mxu0
    %v924 = vmax.f32 %v790, 0.0
    %v925 = vmax.f32 %v833, 0.0
    %v926 = vmax.f32 %v876, 0.0
    %v927 = vmax.f32 %v919, 0.0
    %928 = vst [vmem:[#allocation14] sm:$0xff] %v924
    %929 = vst [vmem:[#allocation14 + $0x8] sm:$0xff] %v926
    %930 = vst [vmem:[#allocation14 + $0x10] sm:$0xff] %v925
    %931 = vst [vmem:[#allocation14 + $0x18] sm:$0xff] %v927
    %v932 = vadd.f32 %v114, %v924
    %v933 = vadd.f32 %v115, %v926
    %v934 = vadd.f32 %v116, %v925
    %v935 = vadd.f32 %v117, %v927
    %v936 = vld [vmem:[#allocation8 + $0x10] sm:$0xf]
    %v937 = vld [vmem:[#allocation8 + $0x58] sm:$0xf]
    %v938 = vld [vmem:[#allocation8 + $0xa0] sm:$0xf]
    %v939 = vld [vmem:[#allocation8 + $0xe8] sm:$0xf]
    %v940 = vld [vmem:[#allocation8 + $0x130] sm:$0xf]
    %v941 = vld [vmem:[#allocation8 + $0x178] sm:$0xf]
    %v942 = vld [vmem:[#allocation8 + $0x1c0] sm:$0xf]
    %v943 = vld [vmem:[#allocation8 + $0x208] sm:$0xf]
    %v944 = vld [vmem:[#allocation8 + $0x250] sm:$0xf]
    %v945 = vld [vmem:[#allocation8 + $0x298] sm:$0xf]
    %v946 = vld [vmem:[#allocation8 + $0x2e0] sm:$0xf]
    %v947 = vld [vmem:[#allocation8 + $0x328] sm:$0xf]
    %v948 = vld [vmem:[#allocation8 + $0x370] sm:$0xf]
    %v949 = vld [vmem:[#allocation8 + $0x3b8] sm:$0xf]
    %v950 = vld [vmem:[#allocation8 + $0x400] sm:$0xf]
    %v951 = vld [vmem:[#allocation8 + $0x448] sm:$0xf]
    %v952 = vpack.c.bf16 %v935, %v933
    %v953 = vld [vmem:[#allocation11 + $0x4] ss:$0 sm:$0xff]
    %v970 = vunpack.c.l.b16 %v936
    %v971 = vunpack.c.l.b16 %v937
    %v972 = vunpack.c.l.b16 %v938
    %v973 = vunpack.c.l.b16 %v939
    %v974 = vunpack.c.l.b16 %v940
    %v975 = vunpack.c.l.b16 %v941
    %v976 = vunpack.c.l.b16 %v942
    %v977 = vunpack.c.l.b16 %v943
    %v978 = vunpack.c.l.b16 %v944
    %v979 = vunpack.c.l.b16 %v945
    %v980 = vunpack.c.l.b16 %v946
    %v981 = vunpack.c.l.b16 %v947
    %v982 = vunpack.c.l.b16 %v948
    %v983 = vunpack.c.l.b16 %v949
    %v984 = vunpack.c.l.b16 %v950
    %v985 = vunpack.c.l.b16 %v951
    %v986 = vpack.c.b16 %v971, %v970
    %v987 = vpack.c.b16 %v973, %v972
    %v988 = vpack.c.b16 %v975, %v974
    %v989 = vpack.c.b16 %v977, %v976
    %v990 = vpack.c.b16 %v979, %v978
    %v991 = vpack.c.b16 %v981, %v980
    %v992 = vpack.c.b16 %v983, %v982
    %v993 = vpack.c.b16 %v985, %v984
    %1002 = vmatprep.subr.bf16.mxu0 0
    %1003 = vmatpush1.bf16.msra.mxu0 %v986
    %1004 = vmatprep.subr.bf16.mxu0 0
    %1005 = vmatpush1.bf16.msra.mxu0 %v987
    %1006 = vmatprep.subr.bf16.mxu0 0
    %1007 = vmatpush1.bf16.msra.mxu0 %v988
    %1008 = vmatprep.subr.bf16.mxu0 0
    %1009 = vmatpush1.bf16.msra.mxu0 %v989
    %1010 = vmatprep.subr.bf16.mxu0 0
    %1011 = vmatpush1.bf16.msra.mxu0 %v990
    %1012 = vmatprep.subr.bf16.mxu0 0
    %1013 = vmatpush1.bf16.msra.mxu0 %v991
    %1014 = vmatprep.subr.bf16.mxu0 0
    %1015 = vmatpush1.bf16.msra.mxu0 %v992
    %1016 = vmatprep.subr.bf16.mxu0 0
    %1017 = vmatpush1.bf16.msra.mxu0 %v993
    %1018 = vmatprep.subr.bf16.mxu0 0
    %1019 = vmatpush1.bf16.msra.mxu0 0
    %1020 = vmatprep.subr.bf16.mxu0 0
    %1021 = vmatpush1.bf16.msra.mxu0 0
    %1022 = vmatprep.subr.bf16.mxu0 0
    %1023 = vmatpush1.bf16.msra.mxu0 0
    %1024 = vmatprep.subr.bf16.mxu0 0
    %1025 = vmatpush1.bf16.msra.mxu0 0
    %1026 = vmatprep.subr.bf16.mxu0 0
    %1027 = vmatpush1.bf16.msra.mxu0 0
    %1028 = vmatprep.subr.bf16.mxu0 0
    %1029 = vmatpush1.bf16.msra.mxu0 0
    %1030 = vmatprep.subr.bf16.mxu0 0
    %1031 = vmatpush1.bf16.msra.mxu0 0
    %1032 = vmatprep.subr.bf16.mxu0 0
    %1033 = vmatpush1.bf16.msra.mxu0 0
    %1034 = vmatprep.mubr.bf16.mxu0 0
    %1035 = vmatmul.mubr.bf16.gmra.mrb[0].mxu0 %v952
    %v1036 = vpop.f32.mrb[0].mxu0
    %v1037 = vadd.f32 %v953, %v1036
    %v1038 = vpop.f32.mrb[0].mxu0
    %v1039 = vpop.f32.mrb[0].mxu0
    %v1040 = vadd.f32 %v953, %v1039
    %v1041 = vpop.f32.mrb[0].mxu0
    %1042 = vdwg.mxu0
    %vm1043 = vcmp.gt.f32.partialorder %v1037, 0.0
    %vm1044 = vcmp.gt.f32.partialorder %v1040, 0.0
    %v1045 = vmul.f32 %v1037, 1.442695
    %v1046 = vpow.pop %v1045
    %v1047 = vmul.f32 %v1040, 1.442695
    %v1048 = vpow.pop %v1047
    %v1049 = vsub.f32 %v1046, 1.0
    %v1050 = vsub.f32 %v1048, 1.0
    %v1051 = vsel %vm1043, %v1037, %v1049
    %v1052 = vsel %vm1044, %v1040, %v1050
    %v1053 = vld [vmem:[#allocation11 + $0x5] ss:$0 sm:$0xff]
    %v1054 = vmul.f32 %v1051, %v1053
    %v1055 = vmul.f32 %v1052, %v1053
    %1056 = vadd.xlane.f32.xlu0 %v1054
    %v1057 = vpop.xlane.xlu0 %1056
    %1058 = vadd.xlane.f32.xlu0 %v1055
    %v1059 = vpop.xlane.xlu0 %1058
    %v1060 = vld [vmem:[#allocation11 + $0x6] ss:$0 sm:$0xff]
    %1062 = vset.pattern.permute.xlu0 0
    %1063 = vperm.xlu0 %1062, %v1060
    %v1064 = vpop.permute.xlu0 %1063
    %v1066 = vadd.f32 %v1057, %v1064
    %v1067 = vadd.f32 %v1059, %v1064
    %v1068 = vld [vmem:[%s1] sm:$0x3]
    %v1069 = vsub.f32 1.0, %v1068
    %v1070 = vmul.f32 %v1069, -10000.0
    %v1073 = vunpack.c.l.s4 1966171168
    %v1074 = vunpack.c.0.s8 %v1073
    %v1075 = vlaneseq
    %v1076 = vshrl.u32 %v1075, 7
    %v1077 = vsub.s32 %v1074, %v1076
    %v1078 = vrot.slane %v1070, %v1077
    %v1079 = vcombine.high %v1078, %v1078
    %v1081 = vunpack.c.l.s4 1966171168
    %v1082 = vunpack.c.0.s8 %v1081
    %v1083 = vlaneseq
    %v1084 = vshrl.u32 %v1083, 7
    %v1085 = vsub.s32 %v1082, %v1084
    %v1086 = vrot.slane %v1078, %v1085
    %v1088 = vunpack.c.l.s4 1966171168
    %v1089 = vunpack.c.0.s8 %v1088
    %v1090 = vlaneseq
    %v1091 = vshrl.u32 %v1090, 7
    %v1092 = vsub.s32 %v1089, %v1091
    %v1093 = vrot.slane %v1079, %v1092
    %v1094 = vlaneseq
    %v1095 = vshrl.u32 %v1094, 7
    %v1096 = vsub.s32 0, %v1095
    %v1097 = vrot.slane %v1086, %v1096
    %v1098 = vlaneseq
    %v1099 = vshrl.u32 %v1098, 7
    %v1100 = vsub.s32 0, %v1099
    %v1101 = vrot.slane %v1093, %v1100
    %v1104 = vld [vmem:[#allocation8 + $0x18] sm:$0xff]
    %v1105 = vld [vmem:[#allocation8 + $0x20] sm:$0xf]
    %v1106 = vld [vmem:[#allocation8 + $0x60] sm:$0xff]
    %v1107 = vld [vmem:[#allocation8 + $0x68] sm:$0xf]
    %v1108 = vld [vmem:[#allocation8 + $0xa8] sm:$0xff]
    %v1109 = vld [vmem:[#allocation8 + $0xb0] sm:$0xf]
    %v1110 = vld [vmem:[#allocation8 + $0xf0] sm:$0xff]
    %v1111 = vld [vmem:[#allocation8 + $0xf8] sm:$0xf]
    %v1112 = vld [vmem:[#allocation8 + $0x138] sm:$0xff]
    %v1113 = vld [vmem:[#allocation8 + $0x140] sm:$0xf]
    %v1114 = vld [vmem:[#allocation8 + $0x180] sm:$0xff]
    %v1115 = vld [vmem:[#allocation8 + $0x188] sm:$0xf]
    %v1116 = vld [vmem:[#allocation8 + $0x1c8] sm:$0xff]
    %v1117 = vld [vmem:[#allocation8 + $0x1d0] sm:$0xf]
    %v1118 = vld [vmem:[#allocation8 + $0x210] sm:$0xff]
    %v1119 = vld [vmem:[#allocation8 + $0x218] sm:$0xf]
    %v1120 = vld [vmem:[#allocation8 + $0x258] sm:$0xff]
    %v1121 = vld [vmem:[#allocation8 + $0x260] sm:$0xf]
    %v1122 = vld [vmem:[#allocation8 + $0x2a0] sm:$0xff]
    %v1123 = vld [vmem:[#allocation8 + $0x2a8] sm:$0xf]
    %v1124 = vld [vmem:[#allocation8 + $0x2e8] sm:$0xff]
    %v1125 = vld [vmem:[#allocation8 + $0x2f0] sm:$0xf]
    %v1126 = vld [vmem:[#allocation8 + $0x330] sm:$0xff]
    %v1127 = vld [vmem:[#allocation8 + $0x338] sm:$0xf]
    %v1128 = vld [vmem:[#allocation8 + $0x378] sm:$0xff]
    %v1129 = vld [vmem:[#allocation8 + $0x380] sm:$0xf]
    %v1130 = vld [vmem:[#allocation8 + $0x3c0] sm:$0xff]
    %v1131 = vld [vmem:[#allocation8 + $0x3c8] sm:$0xf]
    %v1132 = vld [vmem:[#allocation8 + $0x408] sm:$0xff]
    %v1133 = vld [vmem:[#allocation8 + $0x410] sm:$0xf]
    %v1134 = vld [vmem:[#allocation8 + $0x450] sm:$0xff]
    %v1135 = vld [vmem:[#allocation8 + $0x458] sm:$0xf]
    %v1136 = vpack.c.bf16 %v933, %v932
    %v1137 = vpack.c.bf16 %v935, %v934
    %s1138 = scalar_lea.vmem [#allocation11], 26
    %v1139 = vld [vmem:[%s1138] ss:$8 sm:$0x7]
    %v1141 = vlaneseq
    %v1142 = vshrl.u32 %v1141, 7
    %v1143 = vsub.s32 0, %v1142
    %v1144 = vrot.slane %v1139, %v1143
    %v1145 = vlaneseq
    %v1146 = vshrl.u32 %v1145, 7
    %v1147 = vsub.s32 1, %v1146
    %v1148 = vrot.slane %v1139, %v1147
    %v1149 = vlaneseq
    %v1150 = vshrl.u32 %v1149, 7
    %v1151 = vsub.s32 2, %v1150
    %v1152 = vrot.slane %v1139, %v1151
    %v1188 = vunpack.c.l.b16 %v1104
    %v1189 = vunpack.c.h.b16 %v1104
    %v1190 = vunpack.c.l.b16 %v1105
    %v1191 = vunpack.c.l.b16 %v1106
    %v1192 = vunpack.c.h.b16 %v1106
    %v1193 = vunpack.c.l.b16 %v1107
    %v1194 = vunpack.c.l.b16 %v1108
    %v1195 = vunpack.c.h.b16 %v1108
    %v1196 = vunpack.c.l.b16 %v1109
    %v1197 = vunpack.c.l.b16 %v1110
    %v1198 = vunpack.c.h.b16 %v1110
    %v1199 = vunpack.c.l.b16 %v1111
    %v1200 = vunpack.c.l.b16 %v1112
    %v1201 = vunpack.c.h.b16 %v1112
    %v1202 = vunpack.c.l.b16 %v1113
    %v1203 = vunpack.c.l.b16 %v1114
    %v1204 = vunpack.c.h.b16 %v1114
    %v1205 = vunpack.c.l.b16 %v1115
    %v1206 = vunpack.c.l.b16 %v1116
    %v1207 = vunpack.c.h.b16 %v1116
    %v1208 = vunpack.c.l.b16 %v1117
    %v1209 = vunpack.c.l.b16 %v1118
    %v1210 = vunpack.c.h.b16 %v1118
    %v1211 = vunpack.c.l.b16 %v1119
    %v1212 = vunpack.c.l.b16 %v1120
    %v1213 = vunpack.c.h.b16 %v1120
    %v1214 = vunpack.c.l.b16 %v1121
    %v1215 = vunpack.c.l.b16 %v1122
    %v1216 = vunpack.c.h.b16 %v1122
    %v1217 = vunpack.c.l.b16 %v1123
    %v1218 = vunpack.c.l.b16 %v1124
    %v1219 = vunpack.c.h.b16 %v1124
    %v1220 = vunpack.c.l.b16 %v1125
    %v1221 = vunpack.c.l.b16 %v1126
    %v1222 = vunpack.c.h.b16 %v1126
    %v1223 = vunpack.c.l.b16 %v1127
    %v1224 = vunpack.c.l.b16 %v1128
    %v1225 = vunpack.c.h.b16 %v1128
    %v1226 = vunpack.c.l.b16 %v1129
    %v1227 = vunpack.c.l.b16 %v1130
    %v1228 = vunpack.c.h.b16 %v1130
    %v1229 = vunpack.c.l.b16 %v1131
    %v1230 = vunpack.c.l.b16 %v1132
    %v1231 = vunpack.c.h.b16 %v1132
    %v1232 = vunpack.c.l.b16 %v1133
    %v1233 = vunpack.c.l.b16 %v1134
    %v1234 = vunpack.c.h.b16 %v1134
    %v1235 = vunpack.c.l.b16 %v1135
    %v1236 = vpack.c.b16 %v1191, %v1188
    %v1237 = vpack.c.b16 %v1192, %v1189
    %v1238 = vpack.c.b16 %v1193, %v1190
    %v1239 = vpack.c.b16 %v1197, %v1194
    %v1240 = vpack.c.b16 %v1198, %v1195
    %v1241 = vpack.c.b16 %v1199, %v1196
    %v1242 = vpack.c.b16 %v1203, %v1200
    %v1243 = vpack.c.b16 %v1204, %v1201
    %v1244 = vpack.c.b16 %v1205, %v1202
    %v1245 = vpack.c.b16 %v1209, %v1206
    %v1246 = vpack.c.b16 %v1210, %v1207
    %v1247 = vpack.c.b16 %v1211, %v1208
    %v1248 = vpack.c.b16 %v1215, %v1212
    %v1249 = vpack.c.b16 %v1216, %v1213
    %v1250 = vpack.c.b16 %v1217, %v1214
    %v1251 = vpack.c.b16 %v1221, %v1218
    %v1252 = vpack.c.b16 %v1222, %v1219
    %v1253 = vpack.c.b16 %v1223, %v1220
    %v1254 = vpack.c.b16 %v1227, %v1224
    %v1255 = vpack.c.b16 %v1228, %v1225
    %v1256 = vpack.c.b16 %v1229, %v1226
    %v1257 = vpack.c.b16 %v1233, %v1230
    %v1258 = vpack.c.b16 %v1234, %v1231
    %v1259 = vpack.c.b16 %v1235, %v1232
    %1284 = vmatprep.subr.bf16.mxu0 %v1237
    %1285 = vmatpush1.bf16.msra.mxu0 %v1236
    %1286 = vmatprep.subr.bf16.mxu0 %v1240
    %1287 = vmatpush1.bf16.msra.mxu0 %v1239
    %1288 = vmatprep.subr.bf16.mxu0 %v1243
    %1289 = vmatpush1.bf16.msra.mxu0 %v1242
    %1290 = vmatprep.subr.bf16.mxu0 %v1246
    %1291 = vmatpush1.bf16.msra.mxu0 %v1245
    %1292 = vmatprep.subr.bf16.mxu0 %v1249
    %1293 = vmatpush1.bf16.msra.mxu0 %v1248
    %1294 = vmatprep.subr.bf16.mxu0 %v1252
    %1295 = vmatpush1.bf16.msra.mxu0 %v1251
    %1296 = vmatprep.subr.bf16.mxu0 %v1255
    %1297 = vmatpush1.bf16.msra.mxu0 %v1254
    %1298 = vmatprep.subr.bf16.mxu0 %v1258
    %1299 = vmatpush1.bf16.msra.mxu0 %v1257
    %1300 = vmatprep.subr.bf16.mxu0 0
    %1301 = vmatpush1.bf16.msra.mxu0 0
    %1302 = vmatprep.subr.bf16.mxu0 0
    %1303 = vmatpush1.bf16.msra.mxu0 0
    %1304 = vmatprep.subr.bf16.mxu0 0
    %1305 = vmatpush1.bf16.msra.mxu0 0
    %1306 = vmatprep.subr.bf16.mxu0 0
    %1307 = vmatpush1.bf16.msra.mxu0 0
    %1308 = vmatprep.subr.bf16.mxu0 0
    %1309 = vmatpush1.bf16.msra.mxu0 0
    %1310 = vmatprep.subr.bf16.mxu0 0
    %1311 = vmatpush1.bf16.msra.mxu0 0
    %1312 = vmatprep.subr.bf16.mxu0 0
    %1313 = vmatpush1.bf16.msra.mxu0 0
    %1314 = vmatprep.subr.bf16.mxu0 0
    %1315 = vmatpush1.bf16.msra.mxu0 0
    %1316 = vmatprep.mubr.bf16.mxu0 0
    %1317 = vmatmul.mubr.bf16.gmra.mrb[0].mxu0 %v1136
    %v1318 = vpop.f32.mrb[0].mxu0
    %v1319 = vadd.f32 %v1144, %v1318
    %v1320 = vpop.f32.mrb[0].mxu0
    %v1321 = vadd.f32 %v1148, %v1320
    %v1322 = vpop.f32.mrb[0].mxu0
    %v1323 = vadd.f32 %v1144, %v1322
    %v1324 = vpop.f32.mrb[0].mxu0
    %v1325 = vadd.f32 %v1148, %v1324
    %1326 = vmatprep.mubr.bf16.mxu0 0
    %1327 = vmatmul.mubr.bf16.gmra.mrb[0].mxu0 %v1137
    %v1328 = vpop.f32.mrb[0].mxu0
    %v1329 = vadd.f32 %v1144, %v1328
    %v1330 = vpop.f32.mrb[0].mxu0
    %v1331 = vadd.f32 %v1148, %v1330
    %v1332 = vpop.f32.mrb[0].mxu0
    %v1333 = vadd.f32 %v1144, %v1332
    %v1334 = vpop.f32.mrb[0].mxu0
    %v1335 = vadd.f32 %v1148, %v1334
    %1336 = vdwg.mxu0
    %1337 = vmatprep.subr.bf16.mxu0 0
    %1338 = vmatpush1.bf16.msra.mxu0 %v1238
    %1339 = vmatprep.subr.bf16.mxu0 0
    %1340 = vmatpush1.bf16.msra.mxu0 %v1241
    %1341 = vmatprep.subr.bf16.mxu0 0
    %1342 = vmatpush1.bf16.msra.mxu0 %v1244
    %1343 = vmatprep.subr.bf16.mxu0 0
    %1344 = vmatpush1.bf16.msra.mxu0 %v1247
    %1345 = vmatprep.subr.bf16.mxu0 0
    %1346 = vmatpush1.bf16.msra.mxu0 %v1250
    %1347 = vmatprep.subr.bf16.mxu0 0
    %1348 = vmatpush1.bf16.msra.mxu0 %v1253
    %1349 = vmatprep.subr.bf16.mxu0 0
    %1350 = vmatpush1.bf16.msra.mxu0 %v1256
    %1351 = vmatprep.subr.bf16.mxu0 0
    %1352 = vmatpush1.bf16.msra.mxu0 %v1259
    %1353 = vmatprep.subr.bf16.mxu0 0
    %1354 = vmatpush1.bf16.msra.mxu0 0
    %1355 = vmatprep.subr.bf16.mxu0 0
    %1356 = vmatpush1.bf16.msra.mxu0 0
    %1357 = vmatprep.subr.bf16.mxu0 0
    %1358 = vmatpush1.bf16.msra.mxu0 0
    %1359 = vmatprep.subr.bf16.mxu0 0
    %1360 = vmatpush1.bf16.msra.mxu0 0
    %1361 = vmatprep.subr.bf16.mxu0 0
    %1362 = vmatpush1.bf16.msra.mxu0 0
    %1363 = vmatprep.subr.bf16.mxu0 0
    %1364 = vmatpush1.bf16.msra.mxu0 0
    %1365 = vmatprep.subr.bf16.mxu0 0
    %1366 = vmatpush1.bf16.msra.mxu0 0
    %1367 = vmatprep.subr.bf16.mxu0 0
    %1368 = vmatpush1.bf16.msra.mxu0 0
    %1369 = vmatprep.mubr.bf16.mxu0 0
    %1370 = vmatmul.mubr.bf16.gmra.mrb[0].mxu0 %v1136
    %v1371 = vpop.f32.mrb[0].mxu0
    %v1372 = vadd.f32 %v1152, %v1371
    %v1373 = vpop.f32.mrb[0].mxu0
    %v1374 = vpop.f32.mrb[0].mxu0
    %v1375 = vadd.f32 %v1152, %v1374
    %v1376 = vpop.f32.mrb[0].mxu0
    %1377 = vmatprep.mubr.bf16.mxu0 0
    %1378 = vmatmul.mubr.bf16.gmra.mrb[0].mxu0 %v1137
    %v1379 = vpop.f32.mrb[0].mxu0
    %v1380 = vadd.f32 %v1152, %v1379
    %v1381 = vpop.f32.mrb[0].mxu0
    %v1382 = vpop.f32.mrb[0].mxu0
    %v1383 = vadd.f32 %v1152, %v1382
    %v1384 = vpop.f32.mrb[0].mxu0
    %1385 = vdwg.mxu0
    %v1386 = vpack.c.bf16 %v1323, %v1319
    %v1387 = vpack.c.bf16 %v1333, %v1329
    %v1388 = vpack.c.bf16 %v1325, %v1321
    %v1389 = vpack.c.bf16 %v1335, %v1331
    %vm1390 = vcmask 261120
    %v1392 = vsel %vm1390, %v1386, 0
    %v1395 = vsel %vm1390, %v1388, 0
    %1397 = vmatprep.subr.bf16.mxu0 0
    %1398 = vmatpush1.bf16.xpose.msra.mxu0 %v1395
    %1399 = vmatprep.subr.bf16.mxu0 0
    %1400 = vmatpush1.bf16.xpose.msra.mxu0 0
    %1401 = vmatprep.subr.bf16.mxu0 0
    %1402 = vmatpush1.bf16.xpose.msra.mxu0 0
    %1403 = vmatprep.subr.bf16.mxu0 0
    %1404 = vmatpush1.bf16.xpose.msra.mxu0 0
    %1405 = vmatprep.subr.bf16.mxu0 0
    %1406 = vmatpush1.bf16.xpose.msra.mxu0 0
    %1407 = vmatprep.subr.bf16.mxu0 0
    %1408 = vmatpush1.bf16.xpose.msra.mxu0 0
    %1409 = vmatprep.subr.bf16.mxu0 0
    %1410 = vmatpush1.bf16.xpose.msra.mxu0 0
    %1411 = vmatprep.subr.bf16.mxu0 0
    %1412 = vmatpush1.bf16.xpose.msra.mxu0 0
    %1413 = vmatprep.subr.bf16.mxu0 0
    %1414 = vmatpush1.bf16.xpose.msra.mxu0 0
    %1415 = vmatprep.subr.bf16.mxu0 0
    %1416 = vmatpush1.bf16.xpose.msra.mxu0 0
    %1417 = vmatprep.subr.bf16.mxu0 0
    %1418 = vmatpush1.bf16.xpose.msra.mxu0 0
    %1419 = vmatprep.subr.bf16.mxu0 0
    %1420 = vmatpush1.bf16.xpose.msra.mxu0 0
    %1421 = vmatprep.subr.bf16.mxu0 0
    %1422 = vmatpush1.bf16.xpose.msra.mxu0 0
    %1423 = vmatprep.subr.bf16.mxu0 0
    %1424 = vmatpush1.bf16.xpose.msra.mxu0 0
    %1425 = vmatprep.subr.bf16.mxu0 0
    %1426 = vmatpush1.bf16.xpose.msra.mxu0 0
    %1427 = vmatprep.subr.bf16.mxu0 0
    %1428 = vmatpush1.bf16.xpose.msra.mxu0 0
    %1429 = vmatprep.mubr.bf16.mxu0 0
    %1430 = vmatmul.mubr.bf16.gmra.mrb[0].mxu0 %v1392
    %v1431 = vpop.f32.mrb[0].mxu0
    %v1432 = vadd.f32 0.0, %v1431
    %v1433 = vpop.f32.mrb[0].mxu0
    %v1434 = vpop.f32.mrb[0].mxu0
    %v1435 = vadd.f32 0.0, %v1434
    %v1436 = vpop.f32.mrb[0].mxu0
    %1437 = vdwg.mxu0
    %v1439 = vsel %vm1390, %v1387, 0
    %v1442 = vsel %vm1390, %v1389, 0
    %1444 = vmatprep.subr.bf16.mxu0 0
    %1445 = vmatpush1.bf16.xpose.msra.mxu0 %v1442
    %1446 = vmatprep.subr.bf16.mxu0 0
    %1447 = vmatpush1.bf16.xpose.msra.mxu0 0
    %1448 = vmatprep.subr.bf16.mxu0 0
    %1449 = vmatpush1.bf16.xpose.msra.mxu0 0
    %1450 = vmatprep.subr.bf16.mxu0 0
    %1451 = vmatpush1.bf16.xpose.msra.mxu0 0
    %1452 = vmatprep.subr.bf16.mxu0 0
    %1453 = vmatpush1.bf16.xpose.msra.mxu0 0
    %1454 = vmatprep.subr.bf16.mxu0 0
    %1455 = vmatpush1.bf16.xpose.msra.mxu0 0
    %1456 = vmatprep.subr.bf16.mxu0 0
    %1457 = vmatpush1.bf16.xpose.msra.mxu0 0
    %1458 = vmatprep.subr.bf16.mxu0 0
    %1459 = vmatpush1.bf16.xpose.msra.mxu0 0
    %1460 = vmatprep.subr.bf16.mxu0 0
    %1461 = vmatpush1.bf16.xpose.msra.mxu0 0
    %1462 = vmatprep.subr.bf16.mxu0 0
    %1463 = vmatpush1.bf16.xpose.msra.mxu0 0
    %1464 = vmatprep.subr.bf16.mxu0 0
    %1465 = vmatpush1.bf16.xpose.msra.mxu0 0
    %1466 = vmatprep.subr.bf16.mxu0 0
    %1467 = vmatpush1.bf16.xpose.msra.mxu0 0
    %1468 = vmatprep.subr.bf16.mxu0 0
    %1469 = vmatpush1.bf16.xpose.msra.mxu0 0
    %1470 = vmatprep.subr.bf16.mxu0 0
    %1471 = vmatpush1.bf16.xpose.msra.mxu0 0
    %1472 = vmatprep.subr.bf16.mxu0 0
    %1473 = vmatpush1.bf16.xpose.msra.mxu0 0
    %1474 = vmatprep.subr.bf16.mxu0 0
    %1475 = vmatpush1.bf16.xpose.msra.mxu0 0
    %1476 = vmatprep.mubr.bf16.mxu0 0
    %1477 = vmatmul.mubr.bf16.gmra.mrb[0].mxu0 %v1439
    %v1478 = vpop.f32.mrb[0].mxu0
    %v1479 = vadd.f32 0.0, %v1478
    %v1480 = vpop.f32.mrb[0].mxu0
    %v1481 = vpop.f32.mrb[0].mxu0
    %v1482 = vadd.f32 0.0, %v1481
    %v1483 = vpop.f32.mrb[0].mxu0
    %1484 = vdwg.mxu0
    %v1485 = vmul.f32 %v1432, 0.17677669
    %v1486 = vmul.f32 %v1435, 0.17677669
    %v1487 = vmul.f32 %v1479, 0.17677669
    %v1488 = vmul.f32 %v1482, 0.17677669
    %v1489 = vadd.f32 %v1485, %v1097
    %v1490 = vadd.f32 %v1486, %v1097
    %v1491 = vadd.f32 %v1487, %v1101
    %v1492 = vadd.f32 %v1488, %v1101
    %vm1493 = vcmask 130048
    %v1494 = vsel %vm1493, %v1489, -inf
    %1495 = vmax.xlane.f32.xlu0 %v1494
    %v1496 = vpop.xlane.xlu0 %1495
    %v1497 = vsel %vm1493, %v1490, -inf
    %1498 = vmax.xlane.f32.xlu0 %v1497
    %v1499 = vpop.xlane.xlu0 %1498
    %v1500 = vsel %vm1493, %v1491, -inf
    %1501 = vmax.xlane.f32.xlu0 %v1500
    %v1502 = vpop.xlane.xlu0 %1501
    %v1503 = vsel %vm1493, %v1492, -inf
    %1504 = vmax.xlane.f32.xlu0 %v1503
    %v1505 = vpop.xlane.xlu0 %1504
    %v1506 = vsub.f32 %v1489, %v1496
    %v1507 = vsub.f32 %v1490, %v1499
    %v1508 = vsub.f32 %v1491, %v1502
    %v1509 = vsub.f32 %v1492, %v1505
    %v1510 = vmul.f32 %v1506, 1.442695
    %v1511 = vpow.pop %v1510
    %v1512 = vmul.f32 %v1507, 1.442695
    %v1513 = vpow.pop %v1512
    %v1514 = vmul.f32 %v1508, 1.442695
    %v1515 = vpow.pop %v1514
    %v1516 = vmul.f32 %v1509, 1.442695
    %v1517 = vpow.pop %v1516
    %v1518 = vsel %vm1493, %v1511, 0.0
    %1519 = vadd.xlane.f32.xlu0 %v1518
    %v1520 = vpop.xlane.xlu0 %1519
    %v1521 = vsel %vm1493, %v1513, 0.0
    %1522 = vadd.xlane.f32.xlu0 %v1521
    %v1523 = vpop.xlane.xlu0 %1522
    %v1524 = vsel %vm1493, %v1515, 0.0
    %1525 = vadd.xlane.f32.xlu0 %v1524
    %v1526 = vpop.xlane.xlu0 %1525
    %v1527 = vsel %vm1493, %v1517, 0.0
    %1528 = vadd.xlane.f32.xlu0 %v1527
    %v1529 = vpop.xlane.xlu0 %1528
    %v1530 = vrcp.pop %v1520
    %v1531 = vrcp.pop %v1523
    %v1532 = vrcp.pop %v1526
    %v1533 = vrcp.pop %v1529
    %v1534 = vmul.f32 %v1511, %v1530
    %v1535 = vmul.f32 %v1513, %v1531
    %v1536 = vmul.f32 %v1515, %v1532
    %v1537 = vmul.f32 %v1517, %v1533
    %v1538 = vpack.c.bf16 %v1535, %v1534
    %v1539 = vpack.c.bf16 %v1537, %v1536
    %v1540 = vpack.c.bf16 %v1375, %v1372
    %v1541 = vpack.c.bf16 %v1383, %v1380
    %v1543 = vsel %vm1493, %v1538, 0
    %1545 = vmatprep.subr.bf16.mxu0 0
    %1546 = vmatpush1.bf16.msra.mxu0 %v1540
    %1547 = vmatprep.subr.bf16.mxu0 0
    %1548 = vmatpush1.bf16.msra.mxu0 0
    %1549 = vmatprep.subr.bf16.mxu0 0
    %1550 = vmatpush1.bf16.msra.mxu0 0
    %1551 = vmatprep.subr.bf16.mxu0 0
    %1552 = vmatpush1.bf16.msra.mxu0 0
    %1553 = vmatprep.subr.bf16.mxu0 0
    %1554 = vmatpush1.bf16.msra.mxu0 0
    %1555 = vmatprep.subr.bf16.mxu0 0
    %1556 = vmatpush1.bf16.msra.mxu0 0
    %1557 = vmatprep.subr.bf16.mxu0 0
    %1558 = vmatpush1.bf16.msra.mxu0 0
    %1559 = vmatprep.subr.bf16.mxu0 0
    %1560 = vmatpush1.bf16.msra.mxu0 0
    %1561 = vmatprep.subr.bf16.mxu0 0
    %1562 = vmatpush1.bf16.msra.mxu0 0
    %1563 = vmatprep.subr.bf16.mxu0 0
    %1564 = vmatpush1.bf16.msra.mxu0 0
    %1565 = vmatprep.subr.bf16.mxu0 0
    %1566 = vmatpush1.bf16.msra.mxu0 0
    %1567 = vmatprep.subr.bf16.mxu0 0
    %1568 = vmatpush1.bf16.msra.mxu0 0
    %1569 = vmatprep.subr.bf16.mxu0 0
    %1570 = vmatpush1.bf16.msra.mxu0 0
    %1571 = vmatprep.subr.bf16.mxu0 0
    %1572 = vmatpush1.bf16.msra.mxu0 0
    %1573 = vmatprep.subr.bf16.mxu0 0
    %1574 = vmatpush1.bf16.msra.mxu0 0
    %1575 = vmatprep.subr.bf16.mxu0 0
    %1576 = vmatpush1.bf16.msra.mxu0 0
    %1577 = vmatprep.mubr.bf16.mxu0 0
    %1578 = vmatmul.mubr.bf16.gmra.mrb[0].mxu0 %v1543
    %v1579 = vpop.f32.mrb[0].mxu0
    %v1580 = vadd.f32 0.0, %v1579
    %v1581 = vpop.f32.mrb[0].mxu0
    %v1582 = vpop.f32.mrb[0].mxu0
    %v1583 = vadd.f32 0.0, %v1582
    %v1584 = vpop.f32.mrb[0].mxu0
    %1585 = vdwg.mxu0
    %v1587 = vsel %vm1493, %v1539, 0
    %1589 = vmatprep.subr.bf16.mxu0 0
    %1590 = vmatpush1.bf16.msra.mxu0 %v1541
    %1591 = vmatprep.subr.bf16.mxu0 0
    %1592 = vmatpush1.bf16.msra.mxu0 0
    %1593 = vmatprep.subr.bf16.mxu0 0
    %1594 = vmatpush1.bf16.msra.mxu0 0
    %1595 = vmatprep.subr.bf16.mxu0 0
    %1596 = vmatpush1.bf16.msra.mxu0 0
    %1597 = vmatprep.subr.bf16.mxu0 0
    %1598 = vmatpush1.bf16.msra.mxu0 0
    %1599 = vmatprep.subr.bf16.mxu0 0
    %1600 = vmatpush1.bf16.msra.mxu0 0
    %1601 = vmatprep.subr.bf16.mxu0 0
    %1602 = vmatpush1.bf16.msra.mxu0 0
    %1603 = vmatprep.subr.bf16.mxu0 0
    %1604 = vmatpush1.bf16.msra.mxu0 0
    %1605 = vmatprep.subr.bf16.mxu0 0
    %1606 = vmatpush1.bf16.msra.mxu0 0
    %1607 = vmatprep.subr.bf16.mxu0 0
    %1608 = vmatpush1.bf16.msra.mxu0 0
    %1609 = vmatprep.subr.bf16.mxu0 0
    %1610 = vmatpush1.bf16.msra.mxu0 0
    %1611 = vmatprep.subr.bf16.mxu0 0
    %1612 = vmatpush1.bf16.msra.mxu0 0
    %1613 = vmatprep.subr.bf16.mxu0 0
    %1614 = vmatpush1.bf16.msra.mxu0 0
    %1615 = vmatprep.subr.bf16.mxu0 0
    %1616 = vmatpush1.bf16.msra.mxu0 0
    %1617 = vmatprep.subr.bf16.mxu0 0
    %1618 = vmatpush1.bf16.msra.mxu0 0
    %1619 = vmatprep.subr.bf16.mxu0 0
    %1620 = vmatpush1.bf16.msra.mxu0 0
    %1621 = vmatprep.mubr.bf16.mxu0 0
    %1622 = vmatmul.mubr.bf16.gmra.mrb[0].mxu0 %v1587
    %v1623 = vpop.f32.mrb[0].mxu0
    %v1624 = vadd.f32 0.0, %v1623
    %v1625 = vpop.f32.mrb[0].mxu0
    %v1626 = vpop.f32.mrb[0].mxu0
    %v1627 = vadd.f32 0.0, %v1626
    %v1628 = vpop.f32.mrb[0].mxu0
    %1629 = vdwg.mxu0
    %1631 = vrot.lane.b32.xlu0 %v1386, 96
    %v1632 = vpop.permute.xlu0 %1631
    %1634 = vrot.lane.b32.xlu0 %v1388, 96
    %v1635 = vpop.permute.xlu0 %1634
    %v1637 = vsel %vm1390, %v1632, 0
    %v1640 = vsel %vm1390, %v1635, 0
    %1642 = vmatprep.subr.bf16.mxu0 0
    %1643 = vmatpush1.bf16.xpose.msra.mxu0 %v1640
    %1644 = vmatprep.subr.bf16.mxu0 0
    %1645 = vmatpush1.bf16.xpose.msra.mxu0 0
    %1646 = vmatprep.subr.bf16.mxu0 0
    %1647 = vmatpush1.bf16.xpose.msra.mxu0 0
    %1648 = vmatprep.subr.bf16.mxu0 0
    %1649 = vmatpush1.bf16.xpose.msra.mxu0 0
    %1650 = vmatprep.subr.bf16.mxu0 0
    %1651 = vmatpush1.bf16.xpose.msra.mxu0 0
    %1652 = vmatprep.subr.bf16.mxu0 0
    %1653 = vmatpush1.bf16.xpose.msra.mxu0 0
    %1654 = vmatprep.subr.bf16.mxu0 0
    %1655 = vmatpush1.bf16.xpose.msra.mxu0 0
    %1656 = vmatprep.subr.bf16.mxu0 0
    %1657 = vmatpush1.bf16.xpose.msra.mxu0 0
    %1658 = vmatprep.subr.bf16.mxu0 0
    %1659 = vmatpush1.bf16.xpose.msra.mxu0 0
    %1660 = vmatprep.subr.bf16.mxu0 0
    %1661 = vmatpush1.bf16.xpose.msra.mxu0 0
    %1662 = vmatprep.subr.bf16.mxu0 0
    %1663 = vmatpush1.bf16.xpose.msra.mxu0 0
    %1664 = vmatprep.subr.bf16.mxu0 0
    %1665 = vmatpush1.bf16.xpose.msra.mxu0 0
    %1666 = vmatprep.subr.bf16.mxu0 0
    %1667 = vmatpush1.bf16.xpose.msra.mxu0 0
    %1668 = vmatprep.subr.bf16.mxu0 0
    %1669 = vmatpush1.bf16.xpose.msra.mxu0 0
    %1670 = vmatprep.subr.bf16.mxu0 0
    %1671 = vmatpush1.bf16.xpose.msra.mxu0 0
    %1672 = vmatprep.subr.bf16.mxu0 0
    %1673 = vmatpush1.bf16.xpose.msra.mxu0 0
    %1674 = vmatprep.mubr.bf16.mxu0 0
    %1675 = vmatmul.mubr.bf16.gmra.mrb[0].mxu0 %v1637
    %v1676 = vpop.f32.mrb[0].mxu0
    %v1677 = vadd.f32 0.0, %v1676
    %v1678 = vpop.f32.mrb[0].mxu0
    %v1679 = vpop.f32.mrb[0].mxu0
    %v1680 = vadd.f32 0.0, %v1679
    %v1681 = vpop.f32.mrb[0].mxu0
    %1682 = vdwg.mxu0
    %1684 = vrot.lane.b32.xlu0 %v1387, 96
    %v1685 = vpop.permute.xlu0 %1684
    %1687 = vrot.lane.b32.xlu0 %v1389, 96
    %v1688 = vpop.permute.xlu0 %1687
    %v1690 = vsel %vm1390, %v1685, 0
    %v1693 = vsel %vm1390, %v1688, 0
    %1695 = vmatprep.subr.bf16.mxu0 0
    %1696 = vmatpush1.bf16.xpose.msra.mxu0 %v1693
    %1697 = vmatprep.subr.bf16.mxu0 0
    %1698 = vmatpush1.bf16.xpose.msra.mxu0 0
    %1699 = vmatprep.subr.bf16.mxu0 0
    %1700 = vmatpush1.bf16.xpose.msra.mxu0 0
    %1701 = vmatprep.subr.bf16.mxu0 0
    %1702 = vmatpush1.bf16.xpose.msra.mxu0 0
    %1703 = vmatprep.subr.bf16.mxu0 0
    %1704 = vmatpush1.bf16.xpose.msra.mxu0 0
    %1705 = vmatprep.subr.bf16.mxu0 0
    %1706 = vmatpush1.bf16.xpose.msra.mxu0 0
    %1707 = vmatprep.subr.bf16.mxu0 0
    %1708 = vmatpush1.bf16.xpose.msra.mxu0 0
    %1709 = vmatprep.subr.bf16.mxu0 0
    %1710 = vmatpush1.bf16.xpose.msra.mxu0 0
    %1711 = vmatprep.subr.bf16.mxu0 0
    %1712 = vmatpush1.bf16.xpose.msra.mxu0 0
    %1713 = vmatprep.subr.bf16.mxu0 0
    %1714 = vmatpush1.bf16.xpose.msra.mxu0 0
    %1715 = vmatprep.subr.bf16.mxu0 0
    %1716 = vmatpush1.bf16.xpose.msra.mxu0 0
    %1717 = vmatprep.subr.bf16.mxu0 0
    %1718 = vmatpush1.bf16.xpose.msra.mxu0 0
    %1719 = vmatprep.subr.bf16.mxu0 0
    %1720 = vmatpush1.bf16.xpose.msra.mxu0 0
    %1721 = vmatprep.subr.bf16.mxu0 0
    %1722 = vmatpush1.bf16.xpose.msra.mxu0 0
    %1723 = vmatprep.subr.bf16.mxu0 0
    %1724 = vmatpush1.bf16.xpose.msra.mxu0 0
    %1725 = vmatprep.subr.bf16.mxu0 0
    %1726 = vmatpush1.bf16.xpose.msra.mxu0 0
    %1727 = vmatprep.mubr.bf16.mxu0 0
    %1728 = vmatmul.mubr.bf16.gmra.mrb[0].mxu0 %v1690
    %v1729 = vpop.f32.mrb[0].mxu0
    %v1730 = vadd.f32 0.0, %v1729
    %v1731 = vpop.f32.mrb[0].mxu0
    %v1732 = vpop.f32.mrb[0].mxu0
    %v1733 = vadd.f32 0.0, %v1732
    %v1734 = vpop.f32.mrb[0].mxu0
    %1735 = vdwg.mxu0
    %v1736 = vmul.f32 %v1677, 0.17677669
    %v1737 = vmul.f32 %v1680, 0.17677669
    %v1738 = vmul.f32 %v1730, 0.17677669
    %v1739 = vmul.f32 %v1733, 0.17677669
    %v1740 = vadd.f32 %v1736, %v1097
    %v1741 = vadd.f32 %v1737, %v1097
    %v1742 = vadd.f32 %v1738, %v1101
    %v1743 = vadd.f32 %v1739, %v1101
    %v1744 = vsel %vm1493, %v1740, -inf
    %1745 = vmax.xlane.f32.xlu0 %v1744
    %v1746 = vpop.xlane.xlu0 %1745
    %v1747 = vsel %vm1493, %v1741, -inf
    %1748 = vmax.xlane.f32.xlu0 %v1747
    %v1749 = vpop.xlane.xlu0 %1748
    %v1750 = vsel %vm1493, %v1742, -inf
    %1751 = vmax.xlane.f32.xlu0 %v1750
    %v1752 = vpop.xlane.xlu0 %1751
    %v1753 = vsel %vm1493, %v1743, -inf
    %1754 = vmax.xlane.f32.xlu0 %v1753
    %v1755 = vpop.xlane.xlu0 %1754
    %v1756 = vsub.f32 %v1740, %v1746
    %v1757 = vsub.f32 %v1741, %v1749
    %v1758 = vsub.f32 %v1742, %v1752
    %v1759 = vsub.f32 %v1743, %v1755
    %v1760 = vmul.f32 %v1756, 1.442695
    %v1761 = vpow.pop %v1760
    %v1762 = vmul.f32 %v1757, 1.442695
    %v1763 = vpow.pop %v1762
    %v1764 = vmul.f32 %v1758, 1.442695
    %v1765 = vpow.pop %v1764
    %v1766 = vmul.f32 %v1759, 1.442695
    %v1767 = vpow.pop %v1766
    %v1768 = vsel %vm1493, %v1761, 0.0
    %1769 = vadd.xlane.f32.xlu0 %v1768
    %v1770 = vpop.xlane.xlu0 %1769
    %v1771 = vsel %vm1493, %v1763, 0.0
    %1772 = vadd.xlane.f32.xlu0 %v1771
    %v1773 = vpop.xlane.xlu0 %1772
    %v1774 = vsel %vm1493, %v1765, 0.0
    %1775 = vadd.xlane.f32.xlu0 %v1774
    %v1776 = vpop.xlane.xlu0 %1775
    %v1777 = vsel %vm1493, %v1767, 0.0
    %1778 = vadd.xlane.f32.xlu0 %v1777
    %v1779 = vpop.xlane.xlu0 %1778
    %v1780 = vrcp.pop %v1770
    %v1781 = vrcp.pop %v1773
    %v1782 = vrcp.pop %v1776
    %v1783 = vrcp.pop %v1779
    %v1784 = vmul.f32 %v1761, %v1780
    %v1785 = vmul.f32 %v1763, %v1781
    %v1786 = vmul.f32 %v1765, %v1782
    %v1787 = vmul.f32 %v1767, %v1783
    %v1788 = vpack.c.bf16 %v1785, %v1784
    %v1789 = vpack.c.bf16 %v1787, %v1786
    %1791 = vrot.lane.b32.xlu0 %v1540, 96
    %v1792 = vpop.permute.xlu0 %1791
    %v1795 = vsel %vm1493, %v1788, 0
    %1797 = vmatprep.subr.bf16.mxu0 0
    %1798 = vmatpush1.bf16.msra.mxu0 %v1792
    %1799 = vmatprep.subr.bf16.mxu0 0
    %1800 = vmatpush1.bf16.msra.mxu0 0
    %1801 = vmatprep.subr.bf16.mxu0 0
    %1802 = vmatpush1.bf16.msra.mxu0 0
    %1803 = vmatprep.subr.bf16.mxu0 0
    %1804 = vmatpush1.bf16.msra.mxu0 0
    %1805 = vmatprep.subr.bf16.mxu0 0
    %1806 = vmatpush1.bf16.msra.mxu0 0
    %1807 = vmatprep.subr.bf16.mxu0 0
    %1808 = vmatpush1.bf16.msra.mxu0 0
    %1809 = vmatprep.subr.bf16.mxu0 0
    %1810 = vmatpush1.bf16.msra.mxu0 0
    %1811 = vmatprep.subr.bf16.mxu0 0
    %1812 = vmatpush1.bf16.msra.mxu0 0
    %1813 = vmatprep.subr.bf16.mxu0 0
    %1814 = vmatpush1.bf16.msra.mxu0 0
    %1815 = vmatprep.subr.bf16.mxu0 0
    %1816 = vmatpush1.bf16.msra.mxu0 0
    %1817 = vmatprep.subr.bf16.mxu0 0
    %1818 = vmatpush1.bf16.msra.mxu0 0
    %1819 = vmatprep.subr.bf16.mxu0 0
    %1820 = vmatpush1.bf16.msra.mxu0 0
    %1821 = vmatprep.subr.bf16.mxu0 0
    %1822 = vmatpush1.bf16.msra.mxu0 0
    %1823 = vmatprep.subr.bf16.mxu0 0
    %1824 = vmatpush1.bf16.msra.mxu0 0
    %1825 = vmatprep.subr.bf16.mxu0 0
    %1826 = vmatpush1.bf16.msra.mxu0 0
    %1827 = vmatprep.subr.bf16.mxu0 0
    %1828 = vmatpush1.bf16.msra.mxu0 0
    %1829 = vmatprep.mubr.bf16.mxu0 0
    %1830 = vmatmul.mubr.bf16.gmra.mrb[0].mxu0 %v1795
    %v1831 = vpop.f32.mrb[0].mxu0
    %v1832 = vadd.f32 0.0, %v1831
    %v1833 = vpop.f32.mrb[0].mxu0
    %v1834 = vpop.f32.mrb[0].mxu0
    %v1835 = vadd.f32 0.0, %v1834
    %v1836 = vpop.f32.mrb[0].mxu0
    %1837 = vdwg.mxu0
    %1839 = vrot.lane.b32.xlu0 %v1541, 96
    %v1840 = vpop.permute.xlu0 %1839
    %v1843 = vsel %vm1493, %v1789, 0
    %1845 = vmatprep.subr.bf16.mxu0 0
    %1846 = vmatpush1.bf16.msra.mxu0 %v1840
    %1847 = vmatprep.subr.bf16.mxu0 0
    %1848 = vmatpush1.bf16.msra.mxu0 0
    %1849 = vmatprep.subr.bf16.mxu0 0
    %1850 = vmatpush1.bf16.msra.mxu0 0
    %1851 = vmatprep.subr.bf16.mxu0 0
    %1852 = vmatpush1.bf16.msra.mxu0 0
    %1853 = vmatprep.subr.bf16.mxu0 0
    %1854 = vmatpush1.bf16.msra.mxu0 0
    %1855 = vmatprep.subr.bf16.mxu0 0
    %1856 = vmatpush1.bf16.msra.mxu0 0
    %1857 = vmatprep.subr.bf16.mxu0 0
    %1858 = vmatpush1.bf16.msra.mxu0 0
    %1859 = vmatprep.subr.bf16.mxu0 0
    %1860 = vmatpush1.bf16.msra.mxu0 0
    %1861 = vmatprep.subr.bf16.mxu0 0
    %1862 = vmatpush1.bf16.msra.mxu0 0
    %1863 = vmatprep.subr.bf16.mxu0 0
    %1864 = vmatpush1.bf16.msra.mxu0 0
    %1865 = vmatprep.subr.bf16.mxu0 0
    %1866 = vmatpush1.bf16.msra.mxu0 0
    %1867 = vmatprep.subr.bf16.mxu0 0
    %1868 = vmatpush1.bf16.msra.mxu0 0
    %1869 = vmatprep.subr.bf16.mxu0 0
    %1870 = vmatpush1.bf16.msra.mxu0 0
    %1871 = vmatprep.subr.bf16.mxu0 0
    %1872 = vmatpush1.bf16.msra.mxu0 0
    %1873 = vmatprep.subr.bf16.mxu0 0
    %1874 = vmatpush1.bf16.msra.mxu0 0
    %1875 = vmatprep.subr.bf16.mxu0 0
    %1876 = vmatpush1.bf16.msra.mxu0 0
    %1877 = vmatprep.mubr.bf16.mxu0 0
    %1878 = vmatmul.mubr.bf16.gmra.mrb[0].mxu0 %v1843
    %v1879 = vpop.f32.mrb[0].mxu0
    %v1880 = vadd.f32 0.0, %v1879
    %v1881 = vpop.f32.mrb[0].mxu0
    %v1882 = vpop.f32.mrb[0].mxu0
    %v1883 = vadd.f32 0.0, %v1882
    %v1884 = vpop.f32.mrb[0].mxu0
    %1885 = vdwg.mxu0
    %1886 = vrot.lane.b32.xlu0 %v1386, 64
    %v1887 = vpop.permute.xlu0 %1886
    %1888 = vrot.lane.b32.xlu0 %v1388, 64
    %v1889 = vpop.permute.xlu0 %1888
    %v1891 = vsel %vm1390, %v1887, 0
    %v1894 = vsel %vm1390, %v1889, 0
    %1896 = vmatprep.subr.bf16.mxu0 0
    %1897 = vmatpush1.bf16.xpose.msra.mxu0 %v1894
    %1898 = vmatprep.subr.bf16.mxu0 0
    %1899 = vmatpush1.bf16.xpose.msra.mxu0 0
    %1900 = vmatprep.subr.bf16.mxu0 0
    %1901 = vmatpush1.bf16.xpose.msra.mxu0 0
    %1902 = vmatprep.subr.bf16.mxu0 0
    %1903 = vmatpush1.bf16.xpose.msra.mxu0 0
    %1904 = vmatprep.subr.bf16.mxu0 0
    %1905 = vmatpush1.bf16.xpose.msra.mxu0 0
    %1906 = vmatprep.subr.bf16.mxu0 0
    %1907 = vmatpush1.bf16.xpose.msra.mxu0 0
    %1908 = vmatprep.subr.bf16.mxu0 0
    %1909 = vmatpush1.bf16.xpose.msra.mxu0 0
    %1910 = vmatprep.subr.bf16.mxu0 0
    %1911 = vmatpush1.bf16.xpose.msra.mxu0 0
    %1912 = vmatprep.subr.bf16.mxu0 0
    %1913 = vmatpush1.bf16.xpose.msra.mxu0 0
    %1914 = vmatprep.subr.bf16.mxu0 0
    %1915 = vmatpush1.bf16.xpose.msra.mxu0 0
    %1916 = vmatprep.subr.bf16.mxu0 0
    %1917 = vmatpush1.bf16.xpose.msra.mxu0 0
    %1918 = vmatprep.subr.bf16.mxu0 0
    %1919 = vmatpush1.bf16.xpose.msra.mxu0 0
    %1920 = vmatprep.subr.bf16.mxu0 0
    %1921 = vmatpush1.bf16.xpose.msra.mxu0 0
    %1922 = vmatprep.subr.bf16.mxu0 0
    %1923 = vmatpush1.bf16.xpose.msra.mxu0 0
    %1924 = vmatprep.subr.bf16.mxu0 0
    %1925 = vmatpush1.bf16.xpose.msra.mxu0 0
    %1926 = vmatprep.subr.bf16.mxu0 0
    %1927 = vmatpush1.bf16.xpose.msra.mxu0 0
    %1928 = vmatprep.mubr.bf16.mxu0 0
    %1929 = vmatmul.mubr.bf16.gmra.mrb[0].mxu0 %v1891
    %v1930 = vpop.f32.mrb[0].mxu0
    %v1931 = vadd.f32 0.0, %v1930
    %v1932 = vpop.f32.mrb[0].mxu0
    %v1933 = vpop.f32.mrb[0].mxu0
    %v1934 = vadd.f32 0.0, %v1933
    %v1935 = vpop.f32.mrb[0].mxu0
    %1936 = vdwg.mxu0
    %1937 = vrot.lane.b32.xlu0 %v1387, 64
    %v1938 = vpop.permute.xlu0 %1937
    %1939 = vrot.lane.b32.xlu0 %v1389, 64
    %v1940 = vpop.permute.xlu0 %1939
    %v1942 = vsel %vm1390, %v1938, 0
    %v1945 = vsel %vm1390, %v1940, 0
    %1947 = vmatprep.subr.bf16.mxu0 0
    %1948 = vmatpush1.bf16.xpose.msra.mxu0 %v1945
    %1949 = vmatprep.subr.bf16.mxu0 0
    %1950 = vmatpush1.bf16.xpose.msra.mxu0 0
    %1951 = vmatprep.subr.bf16.mxu0 0
    %1952 = vmatpush1.bf16.xpose.msra.mxu0 0
    %1953 = vmatprep.subr.bf16.mxu0 0
    %1954 = vmatpush1.bf16.xpose.msra.mxu0 0
    %1955 = vmatprep.subr.bf16.mxu0 0
    %1956 = vmatpush1.bf16.xpose.msra.mxu0 0
    %1957 = vmatprep.subr.bf16.mxu0 0
    %1958 = vmatpush1.bf16.xpose.msra.mxu0 0
    %1959 = vmatprep.subr.bf16.mxu0 0
    %1960 = vmatpush1.bf16.xpose.msra.mxu0 0
    %1961 = vmatprep.subr.bf16.mxu0 0
    %1962 = vmatpush1.bf16.xpose.msra.mxu0 0
    %1963 = vmatprep.subr.bf16.mxu0 0
    %1964 = vmatpush1.bf16.xpose.msra.mxu0 0
    %1965 = vmatprep.subr.bf16.mxu0 0
    %1966 = vmatpush1.bf16.xpose.msra.mxu0 0
    %1967 = vmatprep.subr.bf16.mxu0 0
    %1968 = vmatpush1.bf16.xpose.msra.mxu0 0
    %1969 = vmatprep.subr.bf16.mxu0 0
    %1970 = vmatpush1.bf16.xpose.msra.mxu0 0
    %1971 = vmatprep.subr.bf16.mxu0 0
    %1972 = vmatpush1.bf16.xpose.msra.mxu0 0
    %1973 = vmatprep.subr.bf16.mxu0 0
    %1974 = vmatpush1.bf16.xpose.msra.mxu0 0
    %1975 = vmatprep.subr.bf16.mxu0 0
    %1976 = vmatpush1.bf16.xpose.msra.mxu0 0
    %1977 = vmatprep.subr.bf16.mxu0 0
    %1978 = vmatpush1.bf16.xpose.msra.mxu0 0
    %1979 = vmatprep.mubr.bf16.mxu0 0
    %1980 = vmatmul.mubr.bf16.gmra.mrb[0].mxu0 %v1942
    %v1981 = vpop.f32.mrb[0].mxu0
    %v1982 = vadd.f32 0.0, %v1981
    %v1983 = vpop.f32.mrb[0].mxu0
    %v1984 = vpop.f32.mrb[0].mxu0
    %v1985 = vadd.f32 0.0, %v1984
    %v1986 = vpop.f32.mrb[0].mxu0
    %1987 = vdwg.mxu0
    %v1988 = vmul.f32 %v1931, 0.17677669
    %v1989 = vmul.f32 %v1934, 0.17677669
    %v1990 = vmul.f32 %v1982, 0.17677669
    %v1991 = vmul.f32 %v1985, 0.17677669
    %v1992 = vadd.f32 %v1988, %v1097
    %v1993 = vadd.f32 %v1989, %v1097
    %v1994 = vadd.f32 %v1990, %v1101
    %v1995 = vadd.f32 %v1991, %v1101
    %v1996 = vsel %vm1493, %v1992, -inf
    %1997 = vmax.xlane.f32.xlu0 %v1996
    %v1998 = vpop.xlane.xlu0 %1997
    %v1999 = vsel %vm1493, %v1993, -inf
    %2000 = vmax.xlane.f32.xlu0 %v1999
    %v2001 = vpop.xlane.xlu0 %2000
    %v2002 = vsel %vm1493, %v1994, -inf
    %2003 = vmax.xlane.f32.xlu0 %v2002
    %v2004 = vpop.xlane.xlu0 %2003
    %v2005 = vsel %vm1493, %v1995, -inf
    %2006 = vmax.xlane.f32.xlu0 %v2005
    %v2007 = vpop.xlane.xlu0 %2006
    %v2008 = vsub.f32 %v1992, %v1998
    %v2009 = vsub.f32 %v1993, %v2001
    %v2010 = vsub.f32 %v1994, %v2004
    %v2011 = vsub.f32 %v1995, %v2007
    %v2012 = vmul.f32 %v2008, 1.442695
    %v2013 = vpow.pop %v2012
    %v2014 = vmul.f32 %v2009, 1.442695
    %v2015 = vpow.pop %v2014
    %v2016 = vmul.f32 %v2010, 1.442695
    %v2017 = vpow.pop %v2016
    %v2018 = vmul.f32 %v2011, 1.442695
    %v2019 = vpow.pop %v2018
    %v2020 = vsel %vm1493, %v2013, 0.0
    %2021 = vadd.xlane.f32.xlu0 %v2020
    %v2022 = vpop.xlane.xlu0 %2021
    %v2023 = vsel %vm1493, %v2015, 0.0
    %2024 = vadd.xlane.f32.xlu0 %v2023
    %v2025 = vpop.xlane.xlu0 %2024
    %v2026 = vsel %vm1493, %v2017, 0.0
    %2027 = vadd.xlane.f32.xlu0 %v2026
    %v2028 = vpop.xlane.xlu0 %2027
    %v2029 = vsel %vm1493, %v2019, 0.0
    %2030 = vadd.xlane.f32.xlu0 %v2029
    %v2031 = vpop.xlane.xlu0 %2030
    %v2032 = vrcp.pop %v2022
    %v2033 = vrcp.pop %v2025
    %v2034 = vrcp.pop %v2028
    %v2035 = vrcp.pop %v2031
    %v2036 = vmul.f32 %v2013, %v2032
    %v2037 = vmul.f32 %v2015, %v2033
    %v2038 = vmul.f32 %v2017, %v2034
    %v2039 = vmul.f32 %v2019, %v2035
    %v2040 = vpack.c.bf16 %v2037, %v2036
    %v2041 = vpack.c.bf16 %v2039, %v2038
    %2042 = vrot.lane.b32.xlu0 %v1540, 64
    %v2043 = vpop.permute.xlu0 %2042
    %v2046 = vsel %vm1493, %v2040, 0
    %2048 = vmatprep.subr.bf16.mxu0 0
    %2049 = vmatpush1.bf16.msra.mxu0 %v2043
    %2050 = vmatprep.subr.bf16.mxu0 0
    %2051 = vmatpush1.bf16.msra.mxu0 0
    %2052 = vmatprep.subr.bf16.mxu0 0
    %2053 = vmatpush1.bf16.msra.mxu0 0
    %2054 = vmatprep.subr.bf16.mxu0 0
    %2055 = vmatpush1.bf16.msra.mxu0 0
    %2056 = vmatprep.subr.bf16.mxu0 0
    %2057 = vmatpush1.bf16.msra.mxu0 0
    %2058 = vmatprep.subr.bf16.mxu0 0
    %2059 = vmatpush1.bf16.msra.mxu0 0
    %2060 = vmatprep.subr.bf16.mxu0 0
    %2061 = vmatpush1.bf16.msra.mxu0 0
    %2062 = vmatprep.subr.bf16.mxu0 0
    %2063 = vmatpush1.bf16.msra.mxu0 0
    %2064 = vmatprep.subr.bf16.mxu0 0
    %2065 = vmatpush1.bf16.msra.mxu0 0
    %2066 = vmatprep.subr.bf16.mxu0 0
    %2067 = vmatpush1.bf16.msra.mxu0 0
    %2068 = vmatprep.subr.bf16.mxu0 0
    %2069 = vmatpush1.bf16.msra.mxu0 0
    %2070 = vmatprep.subr.bf16.mxu0 0
    %2071 = vmatpush1.bf16.msra.mxu0 0
    %2072 = vmatprep.subr.bf16.mxu0 0
    %2073 = vmatpush1.bf16.msra.mxu0 0
    %2074 = vmatprep.subr.bf16.mxu0 0
    %2075 = vmatpush1.bf16.msra.mxu0 0
    %2076 = vmatprep.subr.bf16.mxu0 0
    %2077 = vmatpush1.bf16.msra.mxu0 0
    %2078 = vmatprep.subr.bf16.mxu0 0
    %2079 = vmatpush1.bf16.msra.mxu0 0
    %2080 = vmatprep.mubr.bf16.mxu0 0
    %2081 = vmatmul.mubr.bf16.gmra.mrb[0].mxu0 %v2046
    %v2082 = vpop.f32.mrb[0].mxu0
    %v2083 = vadd.f32 0.0, %v2082
    %v2084 = vpop.f32.mrb[0].mxu0
    %v2085 = vpop.f32.mrb[0].mxu0
    %v2086 = vadd.f32 0.0, %v2085
    %v2087 = vpop.f32.mrb[0].mxu0
    %2088 = vdwg.mxu0
    %2089 = vrot.lane.b32.xlu0 %v1541, 64
    %v2090 = vpop.permute.xlu0 %2089
    %v2093 = vsel %vm1493, %v2041, 0
    %2095 = vmatprep.subr.bf16.mxu0 0
    %2096 = vmatpush1.bf16.msra.mxu0 %v2090
    %2097 = vmatprep.subr.bf16.mxu0 0
    %2098 = vmatpush1.bf16.msra.mxu0 0
    %2099 = vmatprep.subr.bf16.mxu0 0
    %2100 = vmatpush1.bf16.msra.mxu0 0
    %2101 = vmatprep.subr.bf16.mxu0 0
    %2102 = vmatpush1.bf16.msra.mxu0 0
    %2103 = vmatprep.subr.bf16.mxu0 0
    %2104 = vmatpush1.bf16.msra.mxu0 0
    %2105 = vmatprep.subr.bf16.mxu0 0
    %2106 = vmatpush1.bf16.msra.mxu0 0
    %2107 = vmatprep.subr.bf16.mxu0 0
    %2108 = vmatpush1.bf16.msra.mxu0 0
    %2109 = vmatprep.subr.bf16.mxu0 0
    %2110 = vmatpush1.bf16.msra.mxu0 0
    %2111 = vmatprep.subr.bf16.mxu0 0
    %2112 = vmatpush1.bf16.msra.mxu0 0
    %2113 = vmatprep.subr.bf16.mxu0 0
    %2114 = vmatpush1.bf16.msra.mxu0 0
    %2115 = vmatprep.subr.bf16.mxu0 0
    %2116 = vmatpush1.bf16.msra.mxu0 0
    %2117 = vmatprep.subr.bf16.mxu0 0
    %2118 = vmatpush1.bf16.msra.mxu0 0
    %2119 = vmatprep.subr.bf16.mxu0 0
    %2120 = vmatpush1.bf16.msra.mxu0 0
    %2121 = vmatprep.subr.bf16.mxu0 0
    %2122 = vmatpush1.bf16.msra.mxu0 0
    %2123 = vmatprep.subr.bf16.mxu0 0
    %2124 = vmatpush1.bf16.msra.mxu0 0
    %2125 = vmatprep.subr.bf16.mxu0 0
    %2126 = vmatpush1.bf16.msra.mxu0 0
    %2127 = vmatprep.mubr.bf16.mxu0 0
    %2128 = vmatmul.mubr.bf16.gmra.mrb[0].mxu0 %v2093
    %v2129 = vpop.f32.mrb[0].mxu0
    %v2130 = vadd.f32 0.0, %v2129
    %v2131 = vpop.f32.mrb[0].mxu0
    %v2132 = vpop.f32.mrb[0].mxu0
    %v2133 = vadd.f32 0.0, %v2132
    %v2134 = vpop.f32.mrb[0].mxu0
    %2135 = vdwg.mxu0
    %2136 = vrot.lane.b32.xlu0 %v1386, 32
    %v2137 = vpop.permute.xlu0 %2136
    %2138 = vrot.lane.b32.xlu0 %v1388, 32
    %v2139 = vpop.permute.xlu0 %2138
    %v2141 = vsel %vm1390, %v2137, 0
    %v2144 = vsel %vm1390, %v2139, 0
    %2146 = vmatprep.subr.bf16.mxu0 0
    %2147 = vmatpush1.bf16.xpose.msra.mxu0 %v2144
    %2148 = vmatprep.subr.bf16.mxu0 0
    %2149 = vmatpush1.bf16.xpose.msra.mxu0 0
    %2150 = vmatprep.subr.bf16.mxu0 0
    %2151 = vmatpush1.bf16.xpose.msra.mxu0 0
    %2152 = vmatprep.subr.bf16.mxu0 0
    %2153 = vmatpush1.bf16.xpose.msra.mxu0 0
    %2154 = vmatprep.subr.bf16.mxu0 0
    %2155 = vmatpush1.bf16.xpose.msra.mxu0 0
    %2156 = vmatprep.subr.bf16.mxu0 0
    %2157 = vmatpush1.bf16.xpose.msra.mxu0 0
    %2158 = vmatprep.subr.bf16.mxu0 0
    %2159 = vmatpush1.bf16.xpose.msra.mxu0 0
    %2160 = vmatprep.subr.bf16.mxu0 0
    %2161 = vmatpush1.bf16.xpose.msra.mxu0 0
    %2162 = vmatprep.subr.bf16.mxu0 0
    %2163 = vmatpush1.bf16.xpose.msra.mxu0 0
    %2164 = vmatprep.subr.bf16.mxu0 0
    %2165 = vmatpush1.bf16.xpose.msra.mxu0 0
    %2166 = vmatprep.subr.bf16.mxu0 0
    %2167 = vmatpush1.bf16.xpose.msra.mxu0 0
    %2168 = vmatprep.subr.bf16.mxu0 0
    %2169 = vmatpush1.bf16.xpose.msra.mxu0 0
    %2170 = vmatprep.subr.bf16.mxu0 0
    %2171 = vmatpush1.bf16.xpose.msra.mxu0 0
    %2172 = vmatprep.subr.bf16.mxu0 0
    %2173 = vmatpush1.bf16.xpose.msra.mxu0 0
    %2174 = vmatprep.subr.bf16.mxu0 0
    %2175 = vmatpush1.bf16.xpose.msra.mxu0 0
    %2176 = vmatprep.subr.bf16.mxu0 0
    %2177 = vmatpush1.bf16.xpose.msra.mxu0 0
    %2178 = vmatprep.mubr.bf16.mxu0 0
    %2179 = vmatmul.mubr.bf16.gmra.mrb[0].mxu0 %v2141
    %v2180 = vpop.f32.mrb[0].mxu0
    %v2181 = vadd.f32 0.0, %v2180
    %v2182 = vpop.f32.mrb[0].mxu0
    %v2183 = vpop.f32.mrb[0].mxu0
    %v2184 = vadd.f32 0.0, %v2183
    %v2185 = vpop.f32.mrb[0].mxu0
    %2186 = vdwg.mxu0
    %2187 = vrot.lane.b32.xlu0 %v1387, 32
    %v2188 = vpop.permute.xlu0 %2187
    %2189 = vrot.lane.b32.xlu0 %v1389, 32
    %v2190 = vpop.permute.xlu0 %2189
    %v2192 = vsel %vm1390, %v2188, 0
    %v2195 = vsel %vm1390, %v2190, 0
    %2197 = vmatprep.subr.bf16.mxu0 0
    %2198 = vmatpush1.bf16.xpose.msra.mxu0 %v2195
    %2199 = vmatprep.subr.bf16.mxu0 0
    %2200 = vmatpush1.bf16.xpose.msra.mxu0 0
    %2201 = vmatprep.subr.bf16.mxu0 0
    %2202 = vmatpush1.bf16.xpose.msra.mxu0 0
    %2203 = vmatprep.subr.bf16.mxu0 0
    %2204 = vmatpush1.bf16.xpose.msra.mxu0 0
    %2205 = vmatprep.subr.bf16.mxu0 0
    %2206 = vmatpush1.bf16.xpose.msra.mxu0 0
    %2207 = vmatprep.subr.bf16.mxu0 0
    %2208 = vmatpush1.bf16.xpose.msra.mxu0 0
    %2209 = vmatprep.subr.bf16.mxu0 0
    %2210 = vmatpush1.bf16.xpose.msra.mxu0 0
    %2211 = vmatprep.subr.bf16.mxu0 0
    %2212 = vmatpush1.bf16.xpose.msra.mxu0 0
    %2213 = vmatprep.subr.bf16.mxu0 0
    %2214 = vmatpush1.bf16.xpose.msra.mxu0 0
    %2215 = vmatprep.subr.bf16.mxu0 0
    %2216 = vmatpush1.bf16.xpose.msra.mxu0 0
    %2217 = vmatprep.subr.bf16.mxu0 0
    %2218 = vmatpush1.bf16.xpose.msra.mxu0 0
    %2219 = vmatprep.subr.bf16.mxu0 0
    %2220 = vmatpush1.bf16.xpose.msra.mxu0 0
    %2221 = vmatprep.subr.bf16.mxu0 0
    %2222 = vmatpush1.bf16.xpose.msra.mxu0 0
    %2223 = vmatprep.subr.bf16.mxu0 0
    %2224 = vmatpush1.bf16.xpose.msra.mxu0 0
    %2225 = vmatprep.subr.bf16.mxu0 0
    %2226 = vmatpush1.bf16.xpose.msra.mxu0 0
    %2227 = vmatprep.subr.bf16.mxu0 0
    %2228 = vmatpush1.bf16.xpose.msra.mxu0 0
    %2229 = vmatprep.mubr.bf16.mxu0 0
    %2230 = vmatmul.mubr.bf16.gmra.mrb[0].mxu0 %v2192
    %v2231 = vpop.f32.mrb[0].mxu0
    %v2232 = vadd.f32 0.0, %v2231
    %v2233 = vpop.f32.mrb[0].mxu0
    %v2234 = vpop.f32.mrb[0].mxu0
    %v2235 = vadd.f32 0.0, %v2234
    %v2236 = vpop.f32.mrb[0].mxu0
    %2237 = vdwg.mxu0
    %v2238 = vmul.f32 %v2181, 0.17677669
    %v2239 = vmul.f32 %v2184, 0.17677669
    %v2240 = vmul.f32 %v2232, 0.17677669
    %v2241 = vmul.f32 %v2235, 0.17677669
    %v2242 = vadd.f32 %v2238, %v1097
    %v2243 = vadd.f32 %v2239, %v1097
    %v2244 = vadd.f32 %v2240, %v1101
    %v2245 = vadd.f32 %v2241, %v1101
    %v2246 = vsel %vm1493, %v2242, -inf
    %2247 = vmax.xlane.f32.xlu0 %v2246
    %v2248 = vpop.xlane.xlu0 %2247
    %v2249 = vsel %vm1493, %v2243, -inf
    %2250 = vmax.xlane.f32.xlu0 %v2249
    %v2251 = vpop.xlane.xlu0 %2250
    %v2252 = vsel %vm1493, %v2244, -inf
    %2253 = vmax.xlane.f32.xlu0 %v2252
    %v2254 = vpop.xlane.xlu0 %2253
    %v2255 = vsel %vm1493, %v2245, -inf
    %2256 = vmax.xlane.f32.xlu0 %v2255
    %v2257 = vpop.xlane.xlu0 %2256
    %v2258 = vsub.f32 %v2242, %v2248
    %v2259 = vsub.f32 %v2243, %v2251
    %v2260 = vsub.f32 %v2244, %v2254
    %v2261 = vsub.f32 %v2245, %v2257
    %v2262 = vmul.f32 %v2258, 1.442695
    %v2263 = vpow.pop %v2262
    %v2264 = vmul.f32 %v2259, 1.442695
    %v2265 = vpow.pop %v2264
    %v2266 = vmul.f32 %v2260, 1.442695
    %v2267 = vpow.pop %v2266
    %v2268 = vmul.f32 %v2261, 1.442695
    %v2269 = vpow.pop %v2268
    %v2270 = vsel %vm1493, %v2263, 0.0
    %2271 = vadd.xlane.f32.xlu0 %v2270
    %v2272 = vpop.xlane.xlu0 %2271
    %v2273 = vsel %vm1493, %v2265, 0.0
    %2274 = vadd.xlane.f32.xlu0 %v2273
    %v2275 = vpop.xlane.xlu0 %2274
    %v2276 = vsel %vm1493, %v2267, 0.0
    %2277 = vadd.xlane.f32.xlu0 %v2276
    %v2278 = vpop.xlane.xlu0 %2277
    %v2279 = vsel %vm1493, %v2269, 0.0
    %2280 = vadd.xlane.f32.xlu0 %v2279
    %v2281 = vpop.xlane.xlu0 %2280
    %v2282 = vrcp.pop %v2272
    %v2283 = vrcp.pop %v2275
    %v2284 = vrcp.pop %v2278
    %v2285 = vrcp.pop %v2281
    %v2286 = vmul.f32 %v2263, %v2282
    %v2287 = vmul.f32 %v2265, %v2283
    %v2288 = vmul.f32 %v2267, %v2284
    %v2289 = vmul.f32 %v2269, %v2285
    %v2290 = vpack.c.bf16 %v2287, %v2286
    %v2291 = vpack.c.bf16 %v2289, %v2288
    %2292 = vrot.lane.b32.xlu0 %v1540, 32
    %v2293 = vpop.permute.xlu0 %2292
    %v2296 = vsel %vm1493, %v2290, 0
    %2298 = vmatprep.subr.bf16.mxu0 0
    %2299 = vmatpush1.bf16.msra.mxu0 %v2293
    %2300 = vmatprep.subr.bf16.mxu0 0
    %2301 = vmatpush1.bf16.msra.mxu0 0
    %2302 = vmatprep.subr.bf16.mxu0 0
    %2303 = vmatpush1.bf16.msra.mxu0 0
    %2304 = vmatprep.subr.bf16.mxu0 0
    %2305 = vmatpush1.bf16.msra.mxu0 0
    %2306 = vmatprep.subr.bf16.mxu0 0
    %2307 = vmatpush1.bf16.msra.mxu0 0
    %2308 = vmatprep.subr.bf16.mxu0 0
    %2309 = vmatpush1.bf16.msra.mxu0 0
    %2310 = vmatprep.subr.bf16.mxu0 0
    %2311 = vmatpush1.bf16.msra.mxu0 0
    %2312 = vmatprep.subr.bf16.mxu0 0
    %2313 = vmatpush1.bf16.msra.mxu0 0
    %2314 = vmatprep.subr.bf16.mxu0 0
    %2315 = vmatpush1.bf16.msra.mxu0 0
    %2316 = vmatprep.subr.bf16.mxu0 0
    %2317 = vmatpush1.bf16.msra.mxu0 0
    %2318 = vmatprep.subr.bf16.mxu0 0
    %2319 = vmatpush1.bf16.msra.mxu0 0
    %2320 = vmatprep.subr.bf16.mxu0 0
    %2321 = vmatpush1.bf16.msra.mxu0 0
    %2322 = vmatprep.subr.bf16.mxu0 0
    %2323 = vmatpush1.bf16.msra.mxu0 0
    %2324 = vmatprep.subr.bf16.mxu0 0
    %2325 = vmatpush1.bf16.msra.mxu0 0
    %2326 = vmatprep.subr.bf16.mxu0 0
    %2327 = vmatpush1.bf16.msra.mxu0 0
    %2328 = vmatprep.subr.bf16.mxu0 0
    %2329 = vmatpush1.bf16.msra.mxu0 0
    %2330 = vmatprep.mubr.bf16.mxu0 0
    %2331 = vmatmul.mubr.bf16.gmra.mrb[0].mxu0 %v2296
    %v2332 = vpop.f32.mrb[0].mxu0
    %v2333 = vadd.f32 0.0, %v2332
    %v2334 = vpop.f32.mrb[0].mxu0
    %v2335 = vpop.f32.mrb[0].mxu0
    %v2336 = vadd.f32 0.0, %v2335
    %v2337 = vpop.f32.mrb[0].mxu0
    %2338 = vdwg.mxu0
    %2339 = vrot.lane.b32.xlu0 %v1541, 32
    %v2340 = vpop.permute.xlu0 %2339
    %v2343 = vsel %vm1493, %v2291, 0
    %2345 = vmatprep.subr.bf16.mxu0 0
    %2346 = vmatpush1.bf16.msra.mxu0 %v2340
    %2347 = vmatprep.subr.bf16.mxu0 0
    %2348 = vmatpush1.bf16.msra.mxu0 0
    %2349 = vmatprep.subr.bf16.mxu0 0
    %2350 = vmatpush1.bf16.msra.mxu0 0
    %2351 = vmatprep.subr.bf16.mxu0 0
    %2352 = vmatpush1.bf16.msra.mxu0 0
    %2353 = vmatprep.subr.bf16.mxu0 0
    %2354 = vmatpush1.bf16.msra.mxu0 0
    %2355 = vmatprep.subr.bf16.mxu0 0
    %2356 = vmatpush1.bf16.msra.mxu0 0
    %2357 = vmatprep.subr.bf16.mxu0 0
    %2358 = vmatpush1.bf16.msra.mxu0 0
    %2359 = vmatprep.subr.bf16.mxu0 0
    %2360 = vmatpush1.bf16.msra.mxu0 0
    %2361 = vmatprep.subr.bf16.mxu0 0
    %2362 = vmatpush1.bf16.msra.mxu0 0
    %2363 = vmatprep.subr.bf16.mxu0 0
    %2364 = vmatpush1.bf16.msra.mxu0 0
    %2365 = vmatprep.subr.bf16.mxu0 0
    %2366 = vmatpush1.bf16.msra.mxu0 0
    %2367 = vmatprep.subr.bf16.mxu0 0
    %2368 = vmatpush1.bf16.msra.mxu0 0
    %2369 = vmatprep.subr.bf16.mxu0 0
    %2370 = vmatpush1.bf16.msra.mxu0 0
    %2371 = vmatprep.subr.bf16.mxu0 0
    %2372 = vmatpush1.bf16.msra.mxu0 0
    %2373 = vmatprep.subr.bf16.mxu0 0
    %2374 = vmatpush1.bf16.msra.mxu0 0
    %2375 = vmatprep.subr.bf16.mxu0 0
    %2376 = vmatpush1.bf16.msra.mxu0 0
    %2377 = vmatprep.mubr.bf16.mxu0 0
    %2378 = vmatmul.mubr.bf16.gmra.mrb[0].mxu0 %v2343
    %v2379 = vpop.f32.mrb[0].mxu0
    %v2380 = vadd.f32 0.0, %v2379
    %v2381 = vpop.f32.mrb[0].mxu0
    %v2382 = vpop.f32.mrb[0].mxu0
    %v2383 = vadd.f32 0.0, %v2382
    %v2384 = vpop.f32.mrb[0].mxu0
    %2385 = vdwg.mxu0
    %2390 = vrot.lane.b32.xlu0 %v1832, 32
    %v2391 = vpop.permute.xlu0 %2390
    %2392 = vrot.lane.b32.xlu0 %v1835, 32
    %v2393 = vpop.permute.xlu0 %2392
    %2394 = vrot.lane.b32.xlu0 %v1880, 32
    %v2395 = vpop.permute.xlu0 %2394
    %2396 = vrot.lane.b32.xlu0 %v1883, 32
    %v2397 = vpop.permute.xlu0 %2396
    %2406 = vrot.lane.b32.xlu0 %v2083, 64
    %v2407 = vpop.permute.xlu0 %2406
    %2408 = vrot.lane.b32.xlu0 %v2086, 64
    %v2409 = vpop.permute.xlu0 %2408
    %2410 = vrot.lane.b32.xlu0 %v2130, 64
    %v2411 = vpop.permute.xlu0 %2410
    %2412 = vrot.lane.b32.xlu0 %v2133, 64
    %v2413 = vpop.permute.xlu0 %2412
    %2422 = vrot.lane.b32.xlu0 %v2333, 96
    %v2423 = vpop.permute.xlu0 %2422
    %2424 = vrot.lane.b32.xlu0 %v2336, 96
    %v2425 = vpop.permute.xlu0 %2424
    %2426 = vrot.lane.b32.xlu0 %v2380, 96
    %v2427 = vpop.permute.xlu0 %2426
    %2428 = vrot.lane.b32.xlu0 %v2383, 96
    %v2429 = vpop.permute.xlu0 %2428
    %v2434 = vsel %vm1390, %v1580, %v2391
    %v2435 = vsel %vm1390, %v1583, %v2393
    %v2436 = vsel %vm1390, %v1624, %v2395
    %v2437 = vsel %vm1390, %v1627, %v2397
    %vm2438 = vcmask 523264
    %v2439 = vsel %vm2438, %v2434, %v2407
    %v2440 = vsel %vm2438, %v2435, %v2409
    %v2441 = vsel %vm2438, %v2436, %v2411
    %v2442 = vsel %vm2438, %v2437, %v2413
    %vm2443 = vcmask 785408
    %v2444 = vsel %vm2443, %v2439, %v2423
    %v2445 = vsel %vm2443, %v2440, %v2425
    %v2446 = vsel %vm2443, %v2441, %v2427
    %v2447 = vsel %vm2443, %v2442, %v2429
    %v2448 = vld [vmem:[#allocation8 + $0x24] sm:$0xf]
    %v2449 = vld [vmem:[#allocation8 + $0x6c] sm:$0xf]
    %v2450 = vld [vmem:[#allocation8 + $0xb4] sm:$0xf]
    %v2451 = vld [vmem:[#allocation8 + $0xfc] sm:$0xf]
    %v2452 = vld [vmem:[#allocation8 + $0x144] sm:$0xf]
    %v2453 = vld [vmem:[#allocation8 + $0x18c] sm:$0xf]
    %v2454 = vld [vmem:[#allocation8 + $0x1d4] sm:$0xf]
    %v2455 = vld [vmem:[#allocation8 + $0x21c] sm:$0xf]
    %v2456 = vld [vmem:[#allocation8 + $0x264] sm:$0xf]
    %v2457 = vld [vmem:[#allocation8 + $0x2ac] sm:$0xf]
    %v2458 = vld [vmem:[#allocation8 + $0x2f4] sm:$0xf]
    %v2459 = vld [vmem:[#allocation8 + $0x33c] sm:$0xf]
    %v2460 = vld [vmem:[#allocation8 + $0x384] sm:$0xf]
    %v2461 = vld [vmem:[#allocation8 + $0x3cc] sm:$0xf]
    %v2462 = vld [vmem:[#allocation8 + $0x414] sm:$0xf]
    %v2463 = vld [vmem:[#allocation8 + $0x45c] sm:$0xf]
    %v2464 = vpack.c.bf16 %v2445, %v2444
    %v2465 = vpack.c.bf16 %v2447, %v2446
    %v2466 = vld [vmem:[#allocation11 + $0x1b] ss:$0 sm:$0xff]
    %v2483 = vunpack.c.l.b16 %v2448
    %v2484 = vunpack.c.l.b16 %v2449
    %v2485 = vunpack.c.l.b16 %v2450
    %v2486 = vunpack.c.l.b16 %v2451
    %v2487 = vunpack.c.l.b16 %v2452
    %v2488 = vunpack.c.l.b16 %v2453
    %v2489 = vunpack.c.l.b16 %v2454
    %v2490 = vunpack.c.l.b16 %v2455
    %v2491 = vunpack.c.l.b16 %v2456
    %v2492 = vunpack.c.l.b16 %v2457
    %v2493 = vunpack.c.l.b16 %v2458
    %v2494 = vunpack.c.l.b16 %v2459
    %v2495 = vunpack.c.l.b16 %v2460
    %v2496 = vunpack.c.l.b16 %v2461
    %v2497 = vunpack.c.l.b16 %v2462
    %v2498 = vunpack.c.l.b16 %v2463
    %v2499 = vpack.c.b16 %v2484, %v2483
    %v2500 = vpack.c.b16 %v2486, %v2485
    %v2501 = vpack.c.b16 %v2488, %v2487
    %v2502 = vpack.c.b16 %v2490, %v2489
    %v2503 = vpack.c.b16 %v2492, %v2491
    %v2504 = vpack.c.b16 %v2494, %v2493
    %v2505 = vpack.c.b16 %v2496, %v2495
    %v2506 = vpack.c.b16 %v2498, %v2497
    %2515 = vmatprep.subr.bf16.mxu0 0
    %2516 = vmatpush1.bf16.msra.mxu0 %v2499
    %2517 = vmatprep.subr.bf16.mxu0 0
    %2518 = vmatpush1.bf16.msra.mxu0 %v2500
    %2519 = vmatprep.subr.bf16.mxu0 0
    %2520 = vmatpush1.bf16.msra.mxu0 %v2501
    %2521 = vmatprep.subr.bf16.mxu0 0
    %2522 = vmatpush1.bf16.msra.mxu0 %v2502
    %2523 = vmatprep.subr.bf16.mxu0 0
    %2524 = vmatpush1.bf16.msra.mxu0 %v2503
    %2525 = vmatprep.subr.bf16.mxu0 0
    %2526 = vmatpush1.bf16.msra.mxu0 %v2504
    %2527 = vmatprep.subr.bf16.mxu0 0
    %2528 = vmatpush1.bf16.msra.mxu0 %v2505
    %2529 = vmatprep.subr.bf16.mxu0 0
    %2530 = vmatpush1.bf16.msra.mxu0 %v2506
    %2531 = vmatprep.subr.bf16.mxu0 0
    %2532 = vmatpush1.bf16.msra.mxu0 0
    %2533 = vmatprep.subr.bf16.mxu0 0
    %2534 = vmatpush1.bf16.msra.mxu0 0
    %2535 = vmatprep.subr.bf16.mxu0 0
    %2536 = vmatpush1.bf16.msra.mxu0 0
    %2537 = vmatprep.subr.bf16.mxu0 0
    %2538 = vmatpush1.bf16.msra.mxu0 0
    %2539 = vmatprep.subr.bf16.mxu0 0
    %2540 = vmatpush1.bf16.msra.mxu0 0
    %2541 = vmatprep.subr.bf16.mxu0 0
    %2542 = vmatpush1.bf16.msra.mxu0 0
    %2543 = vmatprep.subr.bf16.mxu0 0
    %2544 = vmatpush1.bf16.msra.mxu0 0
    %2545 = vmatprep.subr.bf16.mxu0 0
    %2546 = vmatpush1.bf16.msra.mxu0 0
    %2547 = vmatprep.mubr.bf16.mxu0 0
    %2548 = vmatmul.mubr.bf16.gmra.mrb[0].mxu0 %v2464
    %v2549 = vpop.f32.mrb[0].mxu0
    %v2550 = vadd.f32 %v2466, %v2549
    %v2551 = vpop.f32.mrb[0].mxu0
    %v2552 = vpop.f32.mrb[0].mxu0
    %v2553 = vadd.f32 %v2466, %v2552
    %v2554 = vpop.f32.mrb[0].mxu0
    %2555 = vmatprep.mubr.bf16.mxu0 0
    %2556 = vmatmul.mubr.bf16.gmra.mrb[0].mxu0 %v2465
    %v2557 = vpop.f32.mrb[0].mxu0
    %v2558 = vadd.f32 %v2466, %v2557
    %v2559 = vpop.f32.mrb[0].mxu0
    %v2560 = vpop.f32.mrb[0].mxu0
    %v2561 = vadd.f32 %v2466, %v2560
    %v2562 = vpop.f32.mrb[0].mxu0
    %2563 = vdwg.mxu0
    %v2564 = vadd.f32 %v2550, %v932
    %v2565 = vadd.f32 %v2553, %v933
    %v2566 = vadd.f32 %v2558, %v934
    %v2567 = vadd.f32 %v2561, %v935
    %v2568 = vld [vmem:[#allocation11 + $0x1c] ss:$0 sm:$0xff]
    %v2569 = vld [vmem:[#allocation11 + $0x1d] ss:$0 sm:$0xff]
    %2570 = vadd.xlane.f32.xlu0 %v2564
    %v2571 = vpop.xlane.xlu0 %2570
    %2572 = vadd.xlane.f32.xlu0 %v2565
    %v2573 = vpop.xlane.xlu0 %2572
    %2574 = vadd.xlane.f32.xlu0 %v2566
    %v2575 = vpop.xlane.xlu0 %2574
    %2576 = vadd.xlane.f32.xlu0 %v2567
    %v2577 = vpop.xlane.xlu0 %2576
    %v2578 = vrcp.pop 128.0
    %v2579 = vmul.f32 %v2571, %v2578
    %v2580 = vmul.f32 %v2573, %v2578
    %v2581 = vmul.f32 %v2575, %v2578
    %v2582 = vmul.f32 %v2577, %v2578
    %v2583 = vsub.f32 %v2564, %v2579
    %v2584 = vsub.f32 %v2565, %v2580
    %v2585 = vsub.f32 %v2566, %v2581
    %v2586 = vsub.f32 %v2567, %v2582
    %v2587 = vmul.f32 %v2583, %v2583
    %v2588 = vmul.f32 %v2584, %v2584
    %v2589 = vmul.f32 %v2585, %v2585
    %v2590 = vmul.f32 %v2586, %v2586
    %2591 = vadd.xlane.f32.xlu0 %v2587
    %v2592 = vpop.xlane.xlu0 %2591
    %2593 = vadd.xlane.f32.xlu0 %v2588
    %v2594 = vpop.xlane.xlu0 %2593
    %2595 = vadd.xlane.f32.xlu0 %v2589
    %v2596 = vpop.xlane.xlu0 %2595
    %2597 = vadd.xlane.f32.xlu0 %v2590
    %v2598 = vpop.xlane.xlu0 %2597
    %v2599 = vmul.f32 %v2592, %v2578
    %v2600 = vmul.f32 %v2594, %v2578
    %v2601 = vmul.f32 %v2596, %v2578
    %v2602 = vmul.f32 %v2598, %v2578
    %v2603 = vadd.f32 %v2599, 1e-12
    %v2604 = vadd.f32 %v2600, 1e-12
    %v2605 = vadd.f32 %v2601, 1e-12
    %v2606 = vadd.f32 %v2602, 1e-12
    %v2607 = vrsqrt.pop %v2603
    %v2608 = vrsqrt.pop %v2604
    %v2609 = vrsqrt.pop %v2605
    %v2610 = vrsqrt.pop %v2606
    %v2611 = vmul.f32 %v2583, %v2607
    %v2612 = vmul.f32 %v2584, %v2608
    %v2613 = vmul.f32 %v2585, %v2609
    %v2614 = vmul.f32 %v2586, %v2610
    %v2615 = vmul.f32 %v2611, %v2568
    %v2616 = vmul.f32 %v2612, %v2568
    %v2617 = vmul.f32 %v2613, %v2568
    %v2618 = vmul.f32 %v2614, %v2568
    %v2619 = vadd.f32 %v2615, %v2569
    %v2620 = vadd.f32 %v2616, %v2569
    %v2621 = vadd.f32 %v2617, %v2569
    %v2622 = vadd.f32 %v2618, %v2569
    %v2623 = vld [vmem:[#allocation8 + $0x28] sm:$0xff]
    %v2624 = vld [vmem:[#allocation8 + $0x70] sm:$0xff]
    %v2625 = vld [vmem:[#allocation8 + $0xb8] sm:$0xff]
    %v2626 = vld [vmem:[#allocation8 + $0x100] sm:$0xff]
    %v2627 = vld [vmem:[#allocation8 + $0x148] sm:$0xff]
    %v2628 = vld [vmem:[#allocation8 + $0x190] sm:$0xff]
    %v2629 = vld [vmem:[#allocation8 + $0x1d8] sm:$0xff]
    %v2630 = vld [vmem:[#allocation8 + $0x220] sm:$0xff]
    %v2631 = vld [vmem:[#allocation8 + $0x268] sm:$0xff]
    %v2632 = vld [vmem:[#allocation8 + $0x2b0] sm:$0xff]
    %v2633 = vld [vmem:[#allocation8 + $0x2f8] sm:$0xff]
    %v2634 = vld [vmem:[#allocation8 + $0x340] sm:$0xff]
    %v2635 = vld [vmem:[#allocation8 + $0x388] sm:$0xff]
    %v2636 = vld [vmem:[#allocation8 + $0x3d0] sm:$0xff]
    %v2637 = vld [vmem:[#allocation8 + $0x418] sm:$0xff]
    %v2638 = vld [vmem:[#allocation8 + $0x460] sm:$0xff]
    %v2639 = vpack.c.bf16 %v2620, %v2619
    %v2640 = vpack.c.bf16 %v2622, %v2621
    %s2641 = scalar_lea.vmem [#allocation11], 30
    %v2642 = vld [vmem:[%s2641] ss:$8 sm:$0x3]
    %v2644 = vlaneseq
    %v2645 = vshrl.u32 %v2644, 7
    %v2646 = vsub.s32 0, %v2645
    %v2647 = vrot.slane %v2642, %v2646
    %v2648 = vlaneseq
    %v2649 = vshrl.u32 %v2648, 7
    %v2650 = vsub.s32 1, %v2649
    %v2651 = vrot.slane %v2642, %v2650
    %v2670 = vunpack.c.l.b16 %v2623
    %v2671 = vunpack.c.h.b16 %v2623
    %v2672 = vunpack.c.l.b16 %v2624
    %v2673 = vunpack.c.h.b16 %v2624
    %v2674 = vunpack.c.l.b16 %v2625
    %v2675 = vunpack.c.h.b16 %v2625
    %v2676 = vunpack.c.l.b16 %v2626
    %v2677 = vunpack.c.h.b16 %v2626
    %v2678 = vunpack.c.l.b16 %v2627
    %v2679 = vunpack.c.h.b16 %v2627
    %v2680 = vunpack.c.l.b16 %v2628
    %v2681 = vunpack.c.h.b16 %v2628
    %v2682 = vunpack.c.l.b16 %v2629
    %v2683 = vunpack.c.h.b16 %v2629
    %v2684 = vunpack.c.l.b16 %v2630
    %v2685 = vunpack.c.h.b16 %v2630
    %v2686 = vunpack.c.l.b16 %v2631
    %v2687 = vunpack.c.h.b16 %v2631
    %v2688 = vunpack.c.l.b16 %v2632
    %v2689 = vunpack.c.h.b16 %v2632
    %v2690 = vunpack.c.l.b16 %v2633
    %v2691 = vunpack.c.h.b16 %v2633
    %v2692 = vunpack.c.l.b16 %v2634
    %v2693 = vunpack.c.h.b16 %v2634
    %v2694 = vunpack.c.l.b16 %v2635
    %v2695 = vunpack.c.h.b16 %v2635
    %v2696 = vunpack.c.l.b16 %v2636
    %v2697 = vunpack.c.h.b16 %v2636
    %v2698 = vunpack.c.l.b16 %v2637
    %v2699 = vunpack.c.h.b16 %v2637
    %v2700 = vunpack.c.l.b16 %v2638
    %v2701 = vunpack.c.h.b16 %v2638
    %v2702 = vpack.c.b16 %v2672, %v2670
    %v2703 = vpack.c.b16 %v2673, %v2671
    %v2704 = vpack.c.b16 %v2676, %v2674
    %v2705 = vpack.c.b16 %v2677, %v2675
    %v2706 = vpack.c.b16 %v2680, %v2678
    %v2707 = vpack.c.b16 %v2681, %v2679
    %v2708 = vpack.c.b16 %v2684, %v2682
    %v2709 = vpack.c.b16 %v2685, %v2683
    %v2710 = vpack.c.b16 %v2688, %v2686
    %v2711 = vpack.c.b16 %v2689, %v2687
    %v2712 = vpack.c.b16 %v2692, %v2690
    %v2713 = vpack.c.b16 %v2693, %v2691
    %v2714 = vpack.c.b16 %v2696, %v2694
    %v2715 = vpack.c.b16 %v2697, %v2695
    %v2716 = vpack.c.b16 %v2700, %v2698
    %v2717 = vpack.c.b16 %v2701, %v2699
    %2734 = vmatprep.subr.bf16.mxu0 %v2703
    %2735 = vmatpush1.bf16.msra.mxu0 %v2702
    %2736 = vmatprep.subr.bf16.mxu0 %v2705
    %2737 = vmatpush1.bf16.msra.mxu0 %v2704
    %2738 = vmatprep.subr.bf16.mxu0 %v2707
    %2739 = vmatpush1.bf16.msra.mxu0 %v2706
    %2740 = vmatprep.subr.bf16.mxu0 %v2709
    %2741 = vmatpush1.bf16.msra.mxu0 %v2708
    %2742 = vmatprep.subr.bf16.mxu0 %v2711
    %2743 = vmatpush1.bf16.msra.mxu0 %v2710
    %2744 = vmatprep.subr.bf16.mxu0 %v2713
    %2745 = vmatpush1.bf16.msra.mxu0 %v2712
    %2746 = vmatprep.subr.bf16.mxu0 %v2715
    %2747 = vmatpush1.bf16.msra.mxu0 %v2714
    %2748 = vmatprep.subr.bf16.mxu0 %v2717
    %2749 = vmatpush1.bf16.msra.mxu0 %v2716
    %2750 = vmatprep.subr.bf16.mxu0 0
    %2751 = vmatpush1.bf16.msra.mxu0 0
    %2752 = vmatprep.subr.bf16.mxu0 0
    %2753 = vmatpush1.bf16.msra.mxu0 0
    %2754 = vmatprep.subr.bf16.mxu0 0
    %2755 = vmatpush1.bf16.msra.mxu0 0
    %2756 = vmatprep.subr.bf16.mxu0 0
    %2757 = vmatpush1.bf16.msra.mxu0 0
    %2758 = vmatprep.subr.bf16.mxu0 0
    %2759 = vmatpush1.bf16.msra.mxu0 0
    %2760 = vmatprep.subr.bf16.mxu0 0
    %2761 = vmatpush1.bf16.msra.mxu0 0
    %2762 = vmatprep.subr.bf16.mxu0 0
    %2763 = vmatpush1.bf16.msra.mxu0 0
    %2764 = vmatprep.subr.bf16.mxu0 0
    %2765 = vmatpush1.bf16.msra.mxu0 0
    %2766 = vmatprep.mubr.bf16.mxu0 0
    %2767 = vmatmul.mubr.bf16.gmra.mrb[0].mxu0 %v2639
    %v2768 = vpop.f32.mrb[0].mxu0
    %v2769 = vadd.f32 %v2647, %v2768
    %v2770 = vpop.f32.mrb[0].mxu0
    %v2771 = vadd.f32 %v2651, %v2770
    %v2772 = vpop.f32.mrb[0].mxu0
    %v2773 = vadd.f32 %v2647, %v2772
    %v2774 = vpop.f32.mrb[0].mxu0
    %v2775 = vadd.f32 %v2651, %v2774
    %2776 = vmatprep.mubr.bf16.mxu0 0
    %2777 = vmatmul.mubr.bf16.gmra.mrb[0].mxu0 %v2640
    %v2778 = vpop.f32.mrb[0].mxu0
    %v2779 = vadd.f32 %v2647, %v2778
    %v2780 = vpop.f32.mrb[0].mxu0
    %v2781 = vadd.f32 %v2651, %v2780
    %v2782 = vpop.f32.mrb[0].mxu0
    %v2783 = vadd.f32 %v2647, %v2782
    %v2784 = vpop.f32.mrb[0].mxu0
    %v2785 = vadd.f32 %v2651, %v2784
    %2786 = vdwg.mxu0
    %v2787 = vmul.f32 %v2769, %v2769
    %v2788 = vmul.f32 %v2771, %v2771
    %v2789 = vmul.f32 %v2773, %v2773
    %v2790 = vmul.f32 %v2775, %v2775
    %v2791 = vmul.f32 %v2779, %v2779
    %v2792 = vmul.f32 %v2781, %v2781
    %v2793 = vmul.f32 %v2783, %v2783
    %v2794 = vmul.f32 %v2785, %v2785
    %v2795 = vmul.f32 %v2769, %v2787
    %v2796 = vmul.f32 %v2771, %v2788
    %v2797 = vmul.f32 %v2773, %v2789
    %v2798 = vmul.f32 %v2775, %v2790
    %v2799 = vmul.f32 %v2779, %v2791
    %v2800 = vmul.f32 %v2781, %v2792
    %v2801 = vmul.f32 %v2783, %v2793
    %v2802 = vmul.f32 %v2785, %v2794
    %v2803 = vmul.f32 %v2795, 0.044715
    %v2804 = vmul.f32 %v2796, 0.044715
    %v2805 = vmul.f32 %v2797, 0.044715
    %v2806 = vmul.f32 %v2798, 0.044715
    %v2807 = vmul.f32 %v2799, 0.044715
    %v2808 = vmul.f32 %v2800, 0.044715
    %v2809 = vmul.f32 %v2801, 0.044715
    %v2810 = vmul.f32 %v2802, 0.044715
    %v2811 = vadd.f32 %v2769, %v2803
    %v2812 = vadd.f32 %v2771, %v2804
    %v2813 = vadd.f32 %v2773, %v2805
    %v2814 = vadd.f32 %v2775, %v2806
    %v2815 = vadd.f32 %v2779, %v2807
    %v2816 = vadd.f32 %v2781, %v2808
    %v2817 = vadd.f32 %v2783, %v2809
    %v2818 = vadd.f32 %v2785, %v2810
    %v2819 = vmul.f32 %v2811, 0.7978846
    %v2820 = vmul.f32 %v2812, 0.7978846
    %v2821 = vmul.f32 %v2813, 0.7978846
    %v2822 = vmul.f32 %v2814, 0.7978846
    %v2823 = vmul.f32 %v2815, 0.7978846
    %v2824 = vmul.f32 %v2816, 0.7978846
    %v2825 = vmul.f32 %v2817, 0.7978846
    %v2826 = vmul.f32 %v2818, 0.7978846
    %v2827 = vtanh.pop %v2819
    %v2828 = vtanh.pop %v2820
    %v2829 = vtanh.pop %v2821
    %v2830 = vtanh.pop %v2822
    %v2831 = vtanh.pop %v2823
    %v2832 = vtanh.pop %v2824
    %v2833 = vtanh.pop %v2825
    %v2834 = vtanh.pop %v2826
    %v2835 = vadd.f32 %v2827, 1.0
    %v2836 = vadd.f32 %v2828, 1.0
    %v2837 = vadd.f32 %v2829, 1.0
    %v2838 = vadd.f32 %v2830, 1.0
    %v2839 = vadd.f32 %v2831, 1.0
    %v2840 = vadd.f32 %v2832, 1.0
    %v2841 = vadd.f32 %v2833, 1.0
    %v2842 = vadd.f32 %v2834, 1.0
    %v2843 = vmul.f32 %v2835, 0.5
    %v2844 = vmul.f32 %v2836, 0.5
    %v2845 = vmul.f32 %v2837, 0.5
    %v2846 = vmul.f32 %v2838, 0.5
    %v2847 = vmul.f32 %v2839, 0.5
    %v2848 = vmul.f32 %v2840, 0.5
    %v2849 = vmul.f32 %v2841, 0.5
    %v2850 = vmul.f32 %v2842, 0.5
    %v2851 = vmul.f32 %v2769, %v2843
    %v2852 = vmul.f32 %v2771, %v2844
    %v2853 = vmul.f32 %v2773, %v2845
    %v2854 = vmul.f32 %v2775, %v2846
    %v2855 = vmul.f32 %v2779, %v2847
    %v2856 = vmul.f32 %v2781, %v2848
    %v2857 = vmul.f32 %v2783, %v2849
    %v2858 = vmul.f32 %v2785, %v2850
    %v2859 = vld [vmem:[#allocation10] sm:$0xf]
    %v2860 = vld [vmem:[#allocation10 + $0x8] sm:$0xf]
    %v2861 = vld [vmem:[#allocation10 + $0x10] sm:$0xf]
    %v2862 = vld [vmem:[#allocation10 + $0x18] sm:$0xf]
    %v2863 = vld [vmem:[#allocation10 + $0x20] sm:$0xf]
    %v2864 = vld [vmem:[#allocation10 + $0x28] sm:$0xf]
    %v2865 = vld [vmem:[#allocation10 + $0x30] sm:$0xf]
    %v2866 = vld [vmem:[#allocation10 + $0x38] sm:$0xf]
    %v2867 = vld [vmem:[#allocation10 + $0x40] sm:$0xf]
    %v2868 = vld [vmem:[#allocation10 + $0x48] sm:$0xf]
    %v2869 = vld [vmem:[#allocation10 + $0x50] sm:$0xf]
    %v2870 = vld [vmem:[#allocation10 + $0x58] sm:$0xf]
    %v2871 = vld [vmem:[#allocation10 + $0x60] sm:$0xf]
    %v2872 = vld [vmem:[#allocation10 + $0x68] sm:$0xf]
    %v2873 = vld [vmem:[#allocation10 + $0x70] sm:$0xf]
    %v2874 = vld [vmem:[#allocation10 + $0x78] sm:$0xf]
    %v2875 = vld [vmem:[#allocation10 + $0x80] sm:$0xf]
    %v2876 = vld [vmem:[#allocation10 + $0x88] sm:$0xf]
    %v2877 = vld [vmem:[#allocation10 + $0x90] sm:$0xf]
    %v2878 = vld [vmem:[#allocation10 + $0x98] sm:$0xf]
    %v2879 = vld [vmem:[#allocation10 + $0xa0] sm:$0xf]
    %v2880 = vld [vmem:[#allocation10 + $0xa8] sm:$0xf]
    %v2881 = vld [vmem:[#allocation10 + $0xb0] sm:$0xf]
    %v2882 = vld [vmem:[#allocation10 + $0xb8] sm:$0xf]
    %v2883 = vld [vmem:[#allocation10 + $0xc0] sm:$0xf]
    %v2884 = vld [vmem:[#allocation10 + $0xc8] sm:$0xf]
    %v2885 = vld [vmem:[#allocation10 + $0xd0] sm:$0xf]
    %v2886 = vld [vmem:[#allocation10 + $0xd8] sm:$0xf]
    %v2887 = vld [vmem:[#allocation10 + $0xe0] sm:$0xf]
    %v2888 = vld [vmem:[#allocation10 + $0xe8] sm:$0xf]
    %v2889 = vld [vmem:[#allocation10 + $0xf0] sm:$0xf]
    %v2890 = vld [vmem:[#allocation10 + $0xf8] sm:$0xf]
    %v2891 = vpack.c.bf16 %v2853, %v2851
    %v2892 = vpack.c.bf16 %v2854, %v2852
    %v2893 = vpack.c.bf16 %v2857, %v2855
    %v2894 = vpack.c.bf16 %v2858, %v2856
    %v2895 = vld [vmem:[#allocation11 + $0x1f] ss:$0 sm:$0xff]
    %v2928 = vunpack.c.l.b16 %v2859
    %v2929 = vunpack.c.l.b16 %v2860
    %v2930 = vunpack.c.l.b16 %v2861
    %v2931 = vunpack.c.l.b16 %v2862
    %v2932 = vunpack.c.l.b16 %v2863
    %v2933 = vunpack.c.l.b16 %v2864
    %v2934 = vunpack.c.l.b16 %v2865
    %v2935 = vunpack.c.l.b16 %v2866
    %v2936 = vunpack.c.l.b16 %v2867
    %v2937 = vunpack.c.l.b16 %v2868
    %v2938 = vunpack.c.l.b16 %v2869
    %v2939 = vunpack.c.l.b16 %v2870
    %v2940 = vunpack.c.l.b16 %v2871
    %v2941 = vunpack.c.l.b16 %v2872
    %v2942 = vunpack.c.l.b16 %v2873
    %v2943 = vunpack.c.l.b16 %v2874
    %v2944 = vunpack.c.l.b16 %v2875
    %v2945 = vunpack.c.l.b16 %v2876
    %v2946 = vunpack.c.l.b16 %v2877
    %v2947 = vunpack.c.l.b16 %v2878
    %v2948 = vunpack.c.l.b16 %v2879
    %v2949 = vunpack.c.l.b16 %v2880
    %v2950 = vunpack.c.l.b16 %v2881
    %v2951 = vunpack.c.l.b16 %v2882
    %v2952 = vunpack.c.l.b16 %v2883
    %v2953 = vunpack.c.l.b16 %v2884
    %v2954 = vunpack.c.l.b16 %v2885
    %v2955 = vunpack.c.l.b16 %v2886
    %v2956 = vunpack.c.l.b16 %v2887
    %v2957 = vunpack.c.l.b16 %v2888
    %v2958 = vunpack.c.l.b16 %v2889
    %v2959 = vunpack.c.l.b16 %v2890
    %v2960 = vpack.c.b16 %v2929, %v2928
    %v2961 = vpack.c.b16 %v2931, %v2930
    %v2962 = vpack.c.b16 %v2933, %v2932
    %v2963 = vpack.c.b16 %v2935, %v2934
    %v2964 = vpack.c.b16 %v2937, %v2936
    %v2965 = vpack.c.b16 %v2939, %v2938
    %v2966 = vpack.c.b16 %v2941, %v2940
    %v2967 = vpack.c.b16 %v2943, %v2942
    %v2968 = vpack.c.b16 %v2945, %v2944
    %v2969 = vpack.c.b16 %v2947, %v2946
    %v2970 = vpack.c.b16 %v2949, %v2948
    %v2971 = vpack.c.b16 %v2951, %v2950
    %v2972 = vpack.c.b16 %v2953, %v2952
    %v2973 = vpack.c.b16 %v2955, %v2954
    %v2974 = vpack.c.b16 %v2957, %v2956
    %v2975 = vpack.c.b16 %v2959, %v2958
    %2992 = vmatprep.subr.bf16.mxu0 0
    %2993 = vmatpush1.bf16.msra.mxu0 %v2960
    %2994 = vmatprep.subr.bf16.mxu0 0
    %2995 = vmatpush1.bf16.msra.mxu0 %v2961
    %2996 = vmatprep.subr.bf16.mxu0 0
    %2997 = vmatpush1.bf16.msra.mxu0 %v2962
    %2998 = vmatprep.subr.bf16.mxu0 0
    %2999 = vmatpush1.bf16.msra.mxu0 %v2963
    %3000 = vmatprep.subr.bf16.mxu0 0
    %3001 = vmatpush1.bf16.msra.mxu0 %v2964
    %3002 = vmatprep.subr.bf16.mxu0 0
    %3003 = vmatpush1.bf16.msra.mxu0 %v2965
    %3004 = vmatprep.subr.bf16.mxu0 0
    %3005 = vmatpush1.bf16.msra.mxu0 %v2966
    %3006 = vmatprep.subr.bf16.mxu0 0
    %3007 = vmatpush1.bf16.msra.mxu0 %v2967
    %3008 = vmatprep.subr.bf16.mxu0 0
    %3009 = vmatpush1.bf16.msra.mxu0 %v2968
    %3010 = vmatprep.subr.bf16.mxu0 0
    %3011 = vmatpush1.bf16.msra.mxu0 %v2969
    %3012 = vmatprep.subr.bf16.mxu0 0
    %3013 = vmatpush1.bf16.msra.mxu0 %v2970
    %3014 = vmatprep.subr.bf16.mxu0 0
    %3015 = vmatpush1.bf16.msra.mxu0 %v2971
    %3016 = vmatprep.subr.bf16.mxu0 0
    %3017 = vmatpush1.bf16.msra.mxu0 %v2972
    %3018 = vmatprep.subr.bf16.mxu0 0
    %3019 = vmatpush1.bf16.msra.mxu0 %v2973
    %3020 = vmatprep.subr.bf16.mxu0 0
    %3021 = vmatpush1.bf16.msra.mxu0 %v2974
    %3022 = vmatprep.subr.bf16.mxu0 0
    %3023 = vmatpush1.bf16.msra.mxu0 %v2975
    %3024 = vmatprep.mubr.bf16.mxu0 %v2892
    %3025 = vmatmul.mubr.bf16.gmra.mrb[0].mxu0 %v2891
    %v3026 = vpop.f32.mrb[0].mxu0
    %v3027 = vadd.f32 %v2895, %v3026
    %v3028 = vpop.f32.mrb[0].mxu0
    %v3029 = vpop.f32.mrb[0].mxu0
    %v3030 = vadd.f32 %v2895, %v3029
    %v3031 = vpop.f32.mrb[0].mxu0
    %3032 = vmatprep.mubr.bf16.mxu0 %v2894
    %3033 = vmatmul.mubr.bf16.gmra.mrb[0].mxu0 %v2893
    %v3034 = vpop.f32.mrb[0].mxu0
    %v3035 = vadd.f32 %v2895, %v3034
    %v3036 = vpop.f32.mrb[0].mxu0
    %v3037 = vpop.f32.mrb[0].mxu0
    %v3038 = vadd.f32 %v2895, %v3037
    %v3039 = vpop.f32.mrb[0].mxu0
    %3040 = vdwg.mxu0
    %v3041 = vadd.f32 %v3027, %v2619
    %v3042 = vadd.f32 %v3030, %v2620
    %v3043 = vadd.f32 %v3035, %v2621
    %v3044 = vadd.f32 %v3038, %v2622
    %v3045 = vld [vmem:[#allocation11 + $0x30] ss:$0 sm:$0xff]
    %v3046 = vld [vmem:[#allocation11 + $0x31] ss:$0 sm:$0xff]
    %3047 = vadd.xlane.f32.xlu0 %v3041
    %v3048 = vpop.xlane.xlu0 %3047
    %3049 = vadd.xlane.f32.xlu0 %v3042
    %v3050 = vpop.xlane.xlu0 %3049
    %3051 = vadd.xlane.f32.xlu0 %v3043
    %v3052 = vpop.xlane.xlu0 %3051
    %3053 = vadd.xlane.f32.xlu0 %v3044
    %v3054 = vpop.xlane.xlu0 %3053
    %v3055 = vmul.f32 %v3048, %v2578
    %v3056 = vmul.f32 %v3050, %v2578
    %v3057 = vmul.f32 %v3052, %v2578
    %v3058 = vmul.f32 %v3054, %v2578
    %v3059 = vsub.f32 %v3041, %v3055
    %v3060 = vsub.f32 %v3042, %v3056
    %v3061 = vsub.f32 %v3043, %v3057
    %v3062 = vsub.f32 %v3044, %v3058
    %v3063 = vmul.f32 %v3059, %v3059
    %v3064 = vmul.f32 %v3060, %v3060
    %v3065 = vmul.f32 %v3061, %v3061
    %v3066 = vmul.f32 %v3062, %v3062
    %3067 = vadd.xlane.f32.xlu0 %v3063
    %v3068 = vpop.xlane.xlu0 %3067
    %3069 = vadd.xlane.f32.xlu0 %v3064
    %v3070 = vpop.xlane.xlu0 %3069
    %3071 = vadd.xlane.f32.xlu0 %v3065
    %v3072 = vpop.xlane.xlu0 %3071
    %3073 = vadd.xlane.f32.xlu0 %v3066
    %v3074 = vpop.xlane.xlu0 %3073
    %v3075 = vmul.f32 %v3068, %v2578
    %v3076 = vmul.f32 %v3070, %v2578
    %v3077 = vmul.f32 %v3072, %v2578
    %v3078 = vmul.f32 %v3074, %v2578
    %v3079 = vadd.f32 %v3075, 1e-12
    %v3080 = vadd.f32 %v3076, 1e-12
    %v3081 = vadd.f32 %v3077, 1e-12
    %v3082 = vadd.f32 %v3078, 1e-12
    %v3083 = vrsqrt.pop %v3079
    %v3084 = vrsqrt.pop %v3080
    %v3085 = vrsqrt.pop %v3081
    %v3086 = vrsqrt.pop %v3082
    %v3087 = vmul.f32 %v3059, %v3083
    %v3088 = vmul.f32 %v3060, %v3084
    %v3089 = vmul.f32 %v3061, %v3085
    %v3090 = vmul.f32 %v3062, %v3086
    %v3091 = vmul.f32 %v3087, %v3045
    %v3092 = vmul.f32 %v3088, %v3045
    %v3093 = vmul.f32 %v3089, %v3045
    %v3094 = vmul.f32 %v3090, %v3045
    %v3095 = vadd.f32 %v3091, %v3046
    %v3096 = vadd.f32 %v3092, %v3046
    %v3097 = vadd.f32 %v3093, %v3046
    %v3098 = vadd.f32 %v3094, %v3046
    %v3099 = vld [vmem:[#allocation8 + $0x30] sm:$0xff]
    %v3100 = vld [vmem:[#allocation8 + $0x38] sm:$0xf]
    %v3101 = vld [vmem:[#allocation8 + $0x78] sm:$0xff]
    %v3102 = vld [vmem:[#allocation8 + $0x80] sm:$0xf]
    %v3103 = vld [vmem:[#allocation8 + $0xc0] sm:$0xff]
    %v3104 = vld [vmem:[#allocation8 + $0xc8] sm:$0xf]
    %v3105 = vld [vmem:[#allocation8 + $0x108] sm:$0xff]
    %v3106 = vld [vmem:[#allocation8 + $0x110] sm:$0xf]
    %v3107 = vld [vmem:[#allocation8 + $0x150] sm:$0xff]
    %v3108 = vld [vmem:[#allocation8 + $0x158] sm:$0xf]
    %v3109 = vld [vmem:[#allocation8 + $0x198] sm:$0xff]
    %v3110 = vld [vmem:[#allocation8 + $0x1a0] sm:$0xf]
    %v3111 = vld [vmem:[#allocation8 + $0x1e0] sm:$0xff]
    %v3112 = vld [vmem:[#allocation8 + $0x1e8] sm:$0xf]
    %v3113 = vld [vmem:[#allocation8 + $0x228] sm:$0xff]
    %v3114 = vld [vmem:[#allocation8 + $0x230] sm:$0xf]
    %v3115 = vld [vmem:[#allocation8 + $0x270] sm:$0xff]
    %v3116 = vld [vmem:[#allocation8 + $0x278] sm:$0xf]
    %v3117 = vld [vmem:[#allocation8 + $0x2b8] sm:$0xff]
    %v3118 = vld [vmem:[#allocation8 + $0x2c0] sm:$0xf]
    %v3119 = vld [vmem:[#allocation8 + $0x300] sm:$0xff]
    %v3120 = vld [vmem:[#allocation8 + $0x308] sm:$0xf]
    %v3121 = vld [vmem:[#allocation8 + $0x348] sm:$0xff]
    %v3122 = vld [vmem:[#allocation8 + $0x350] sm:$0xf]
    %v3123 = vld [vmem:[#allocation8 + $0x390] sm:$0xff]
    %v3124 = vld [vmem:[#allocation8 + $0x398] sm:$0xf]
    %v3125 = vld [vmem:[#allocation8 + $0x3d8] sm:$0xff]
    %v3126 = vld [vmem:[#allocation8 + $0x3e0] sm:$0xf]
    %v3127 = vld [vmem:[#allocation8 + $0x420] sm:$0xff]
    %v3128 = vld [vmem:[#allocation8 + $0x428] sm:$0xf]
    %v3129 = vld [vmem:[#allocation8 + $0x468] sm:$0xff]
    %v3130 = vld [vmem:[#allocation8 + $0x470] sm:$0xf]
    %v3131 = vpack.c.bf16 %v3096, %v3095
    %v3132 = vpack.c.bf16 %v3098, %v3097
    %s3133 = scalar_lea.vmem [#allocation11], 50
    %v3134 = vld [vmem:[%s3133] ss:$8 sm:$0x7]
    %v3136 = vlaneseq
    %v3137 = vshrl.u32 %v3136, 7
    %v3138 = vsub.s32 0, %v3137
    %v3139 = vrot.slane %v3134, %v3138
    %v3140 = vlaneseq
    %v3141 = vshrl.u32 %v3140, 7
    %v3142 = vsub.s32 1, %v3141
    %v3143 = vrot.slane %v3134, %v3142
    %v3144 = vlaneseq
    %v3145 = vshrl.u32 %v3144, 7
    %v3146 = vsub.s32 2, %v3145
    %v3147 = vrot.slane %v3134, %v3146
    %v3183 = vunpack.c.l.b16 %v3099
    %v3184 = vunpack.c.h.b16 %v3099
    %v3185 = vunpack.c.l.b16 %v3100
    %v3186 = vunpack.c.l.b16 %v3101
    %v3187 = vunpack.c.h.b16 %v3101
    %v3188 = vunpack.c.l.b16 %v3102
    %v3189 = vunpack.c.l.b16 %v3103
    %v3190 = vunpack.c.h.b16 %v3103
    %v3191 = vunpack.c.l.b16 %v3104
    %v3192 = vunpack.c.l.b16 %v3105
    %v3193 = vunpack.c.h.b16 %v3105
    %v3194 = vunpack.c.l.b16 %v3106
    %v3195 = vunpack.c.l.b16 %v3107
    %v3196 = vunpack.c.h.b16 %v3107
    %v3197 = vunpack.c.l.b16 %v3108
    %v3198 = vunpack.c.l.b16 %v3109
    %v3199 = vunpack.c.h.b16 %v3109
    %v3200 = vunpack.c.l.b16 %v3110
    %v3201 = vunpack.c.l.b16 %v3111
    %v3202 = vunpack.c.h.b16 %v3111
    %v3203 = vunpack.c.l.b16 %v3112
    %v3204 = vunpack.c.l.b16 %v3113
    %v3205 = vunpack.c.h.b16 %v3113
    %v3206 = vunpack.c.l.b16 %v3114
    %v3207 = vunpack.c.l.b16 %v3115
    %v3208 = vunpack.c.h.b16 %v3115
    %v3209 = vunpack.c.l.b16 %v3116
    %v3210 = vunpack.c.l.b16 %v3117
    %v3211 = vunpack.c.h.b16 %v3117
    %v3212 = vunpack.c.l.b16 %v3118
    %v3213 = vunpack.c.l.b16 %v3119
    %v3214 = vunpack.c.h.b16 %v3119
    %v3215 = vunpack.c.l.b16 %v3120
    %v3216 = vunpack.c.l.b16 %v3121
    %v3217 = vunpack.c.h.b16 %v3121
    %v3218 = vunpack.c.l.b16 %v3122
    %v3219 = vunpack.c.l.b16 %v3123
    %v3220 = vunpack.c.h.b16 %v3123
    %v3221 = vunpack.c.l.b16 %v3124
    %v3222 = vunpack.c.l.b16 %v3125
    %v3223 = vunpack.c.h.b16 %v3125
    %v3224 = vunpack.c.l.b16 %v3126
    %v3225 = vunpack.c.l.b16 %v3127
    %v3226 = vunpack.c.h.b16 %v3127
    %v3227 = vunpack.c.l.b16 %v3128
    %v3228 = vunpack.c.l.b16 %v3129
    %v3229 = vunpack.c.h.b16 %v3129
    %v3230 = vunpack.c.l.b16 %v3130
    %v3231 = vpack.c.b16 %v3186, %v3183
    %v3232 = vpack.c.b16 %v3187, %v3184
    %v3233 = vpack.c.b16 %v3188, %v3185
    %v3234 = vpack.c.b16 %v3192, %v3189
    %v3235 = vpack.c.b16 %v3193, %v3190
    %v3236 = vpack.c.b16 %v3194, %v3191
    %v3237 = vpack.c.b16 %v3198, %v3195
    %v3238 = vpack.c.b16 %v3199, %v3196
    %v3239 = vpack.c.b16 %v3200, %v3197
    %v3240 = vpack.c.b16 %v3204, %v3201
    %v3241 = vpack.c.b16 %v3205, %v3202
    %v3242 = vpack.c.b16 %v3206, %v3203
    %v3243 = vpack.c.b16 %v3210, %v3207
    %v3244 = vpack.c.b16 %v3211, %v3208
    %v3245 = vpack.c.b16 %v3212, %v3209
    %v3246 = vpack.c.b16 %v3216, %v3213
    %v3247 = vpack.c.b16 %v3217, %v3214
    %v3248 = vpack.c.b16 %v3218, %v3215
    %v3249 = vpack.c.b16 %v3222, %v3219
    %v3250 = vpack.c.b16 %v3223, %v3220
    %v3251 = vpack.c.b16 %v3224, %v3221
    %v3252 = vpack.c.b16 %v3228, %v3225
    %v3253 = vpack.c.b16 %v3229, %v3226
    %v3254 = vpack.c.b16 %v3230, %v3227
    %3279 = vmatprep.subr.bf16.mxu0 %v3232
    %3280 = vmatpush1.bf16.msra.mxu0 %v3231
    %3281 = vmatprep.subr.bf16.mxu0 %v3235
    %3282 = vmatpush1.bf16.msra.mxu0 %v3234
    %3283 = vmatprep.subr.bf16.mxu0 %v3238
    %3284 = vmatpush1.bf16.msra.mxu0 %v3237
    %3285 = vmatprep.subr.bf16.mxu0 %v3241
    %3286 = vmatpush1.bf16.msra.mxu0 %v3240
    %3287 = vmatprep.subr.bf16.mxu0 %v3244
    %3288 = vmatpush1.bf16.msra.mxu0 %v3243
    %3289 = vmatprep.subr.bf16.mxu0 %v3247
    %3290 = vmatpush1.bf16.msra.mxu0 %v3246
    %3291 = vmatprep.subr.bf16.mxu0 %v3250
    %3292 = vmatpush1.bf16.msra.mxu0 %v3249
    %3293 = vmatprep.subr.bf16.mxu0 %v3253
    %3294 = vmatpush1.bf16.msra.mxu0 %v3252
    %3295 = vmatprep.subr.bf16.mxu0 0
    %3296 = vmatpush1.bf16.msra.mxu0 0
    %3297 = vmatprep.subr.bf16.mxu0 0
    %3298 = vmatpush1.bf16.msra.mxu0 0
    %3299 = vmatprep.subr.bf16.mxu0 0
    %3300 = vmatpush1.bf16.msra.mxu0 0
    %3301 = vmatprep.subr.bf16.mxu0 0
    %3302 = vmatpush1.bf16.msra.mxu0 0
    %3303 = vmatprep.subr.bf16.mxu0 0
    %3304 = vmatpush1.bf16.msra.mxu0 0
    %3305 = vmatprep.subr.bf16.mxu0 0
    %3306 = vmatpush1.bf16.msra.mxu0 0
    %3307 = vmatprep.subr.bf16.mxu0 0
    %3308 = vmatpush1.bf16.msra.mxu0 0
    %3309 = vmatprep.subr.bf16.mxu0 0
    %3310 = vmatpush1.bf16.msra.mxu0 0
    %3311 = vmatprep.mubr.bf16.mxu0 0
    %3312 = vmatmul.mubr.bf16.gmra.mrb[0].mxu0 %v3131
    %v3313 = vpop.f32.mrb[0].mxu0
    %v3314 = vadd.f32 %v3139, %v3313
    %v3315 = vpop.f32.mrb[0].mxu0
    %v3316 = vadd.f32 %v3143, %v3315
    %v3317 = vpop.f32.mrb[0].mxu0
    %v3318 = vadd.f32 %v3139, %v3317
    %v3319 = vpop.f32.mrb[0].mxu0
    %v3320 = vadd.f32 %v3143, %v3319
    %3321 = vmatprep.mubr.bf16.mxu0 0
    %3322 = vmatmul.mubr.bf16.gmra.mrb[0].mxu0 %v3132
    %v3323 = vpop.f32.mrb[0].mxu0
    %v3324 = vadd.f32 %v3139, %v3323
    %v3325 = vpop.f32.mrb[0].mxu0
    %v3326 = vadd.f32 %v3143, %v3325
    %v3327 = vpop.f32.mrb[0].mxu0
    %v3328 = vadd.f32 %v3139, %v3327
    %v3329 = vpop.f32.mrb[0].mxu0
    %v3330 = vadd.f32 %v3143, %v3329
    %3331 = vdwg.mxu0
    %3332 = vmatprep.subr.bf16.mxu0 0
    %3333 = vmatpush1.bf16.msra.mxu0 %v3233
    %3334 = vmatprep.subr.bf16.mxu0 0
    %3335 = vmatpush1.bf16.msra.mxu0 %v3236
    %3336 = vmatprep.subr.bf16.mxu0 0
    %3337 = vmatpush1.bf16.msra.mxu0 %v3239
    %3338 = vmatprep.subr.bf16.mxu0 0
    %3339 = vmatpush1.bf16.msra.mxu0 %v3242
    %3340 = vmatprep.subr.bf16.mxu0 0
    %3341 = vmatpush1.bf16.msra.mxu0 %v3245
    %3342 = vmatprep.subr.bf16.mxu0 0
    %3343 = vmatpush1.bf16.msra.mxu0 %v3248
    %3344 = vmatprep.subr.bf16.mxu0 0
    %3345 = vmatpush1.bf16.msra.mxu0 %v3251
    %3346 = vmatprep.subr.bf16.mxu0 0
    %3347 = vmatpush1.bf16.msra.mxu0 %v3254
    %3348 = vmatprep.subr.bf16.mxu0 0
    %3349 = vmatpush1.bf16.msra.mxu0 0
    %3350 = vmatprep.subr.bf16.mxu0 0
    %3351 = vmatpush1.bf16.msra.mxu0 0
    %3352 = vmatprep.subr.bf16.mxu0 0
    %3353 = vmatpush1.bf16.msra.mxu0 0
    %3354 = vmatprep.subr.bf16.mxu0 0
    %3355 = vmatpush1.bf16.msra.mxu0 0
    %3356 = vmatprep.subr.bf16.mxu0 0
    %3357 = vmatpush1.bf16.msra.mxu0 0
    %3358 = vmatprep.subr.bf16.mxu0 0
    %3359 = vmatpush1.bf16.msra.mxu0 0
    %3360 = vmatprep.subr.bf16.mxu0 0
    %3361 = vmatpush1.bf16.msra.mxu0 0
    %3362 = vmatprep.subr.bf16.mxu0 0
    %3363 = vmatpush1.bf16.msra.mxu0 0
    %3364 = vmatprep.mubr.bf16.mxu0 0
    %3365 = vmatmul.mubr.bf16.gmra.mrb[0].mxu0 %v3131
    %v3366 = vpop.f32.mrb[0].mxu0
    %v3367 = vadd.f32 %v3147, %v3366
    %v3368 = vpop.f32.mrb[0].mxu0
    %v3369 = vpop.f32.mrb[0].mxu0
    %v3370 = vadd.f32 %v3147, %v3369
    %v3371 = vpop.f32.mrb[0].mxu0
    %3372 = vmatprep.mubr.bf16.mxu0 0
    %3373 = vmatmul.mubr.bf16.gmra.mrb[0].mxu0 %v3132
    %v3374 = vpop.f32.mrb[0].mxu0
    %v3375 = vadd.f32 %v3147, %v3374
    %v3376 = vpop.f32.mrb[0].mxu0
    %v3377 = vpop.f32.mrb[0].mxu0
    %v3378 = vadd.f32 %v3147, %v3377
    %v3379 = vpop.f32.mrb[0].mxu0
    %3380 = vdwg.mxu0
    %v3381 = vpack.c.bf16 %v3318, %v3314
    %v3382 = vpack.c.bf16 %v3328, %v3324
    %v3383 = vpack.c.bf16 %v3320, %v3316
    %v3384 = vpack.c.bf16 %v3330, %v3326
    %v3386 = vsel %vm1390, %v3381, 0
    %v3389 = vsel %vm1390, %v3383, 0
    %3391 = vmatprep.subr.bf16.mxu0 0
    %3392 = vmatpush1.bf16.xpose.msra.mxu0 %v3389
    %3393 = vmatprep.subr.bf16.mxu0 0
    %3394 = vmatpush1.bf16.xpose.msra.mxu0 0
    %3395 = vmatprep.subr.bf16.mxu0 0
    %3396 = vmatpush1.bf16.xpose.msra.mxu0 0
    %3397 = vmatprep.subr.bf16.mxu0 0
    %3398 = vmatpush1.bf16.xpose.msra.mxu0 0
    %3399 = vmatprep.subr.bf16.mxu0 0
    %3400 = vmatpush1.bf16.xpose.msra.mxu0 0
    %3401 = vmatprep.subr.bf16.mxu0 0
    %3402 = vmatpush1.bf16.xpose.msra.mxu0 0
    %3403 = vmatprep.subr.bf16.mxu0 0
    %3404 = vmatpush1.bf16.xpose.msra.mxu0 0
    %3405 = vmatprep.subr.bf16.mxu0 0
    %3406 = vmatpush1.bf16.xpose.msra.mxu0 0
    %3407 = vmatprep.subr.bf16.mxu0 0
    %3408 = vmatpush1.bf16.xpose.msra.mxu0 0
    %3409 = vmatprep.subr.bf16.mxu0 0
    %3410 = vmatpush1.bf16.xpose.msra.mxu0 0
    %3411 = vmatprep.subr.bf16.mxu0 0
    %3412 = vmatpush1.bf16.xpose.msra.mxu0 0
    %3413 = vmatprep.subr.bf16.mxu0 0
    %3414 = vmatpush1.bf16.xpose.msra.mxu0 0
    %3415 = vmatprep.subr.bf16.mxu0 0
    %3416 = vmatpush1.bf16.xpose.msra.mxu0 0
    %3417 = vmatprep.subr.bf16.mxu0 0
    %3418 = vmatpush1.bf16.xpose.msra.mxu0 0
    %3419 = vmatprep.subr.bf16.mxu0 0
    %3420 = vmatpush1.bf16.xpose.msra.mxu0 0
    %3421 = vmatprep.subr.bf16.mxu0 0
    %3422 = vmatpush1.bf16.xpose.msra.mxu0 0
    %3423 = vmatprep.mubr.bf16.mxu0 0
    %3424 = vmatmul.mubr.bf16.gmra.mrb[0].mxu0 %v3386
    %v3425 = vpop.f32.mrb[0].mxu0
    %v3426 = vadd.f32 0.0, %v3425
    %v3427 = vpop.f32.mrb[0].mxu0
    %v3428 = vpop.f32.mrb[0].mxu0
    %v3429 = vadd.f32 0.0, %v3428
    %v3430 = vpop.f32.mrb[0].mxu0
    %3431 = vdwg.mxu0
    %v3433 = vsel %vm1390, %v3382, 0
    %v3436 = vsel %vm1390, %v3384, 0
    %3438 = vmatprep.subr.bf16.mxu0 0
    %3439 = vmatpush1.bf16.xpose.msra.mxu0 %v3436
    %3440 = vmatprep.subr.bf16.mxu0 0
    %3441 = vmatpush1.bf16.xpose.msra.mxu0 0
    %3442 = vmatprep.subr.bf16.mxu0 0
    %3443 = vmatpush1.bf16.xpose.msra.mxu0 0
    %3444 = vmatprep.subr.bf16.mxu0 0
    %3445 = vmatpush1.bf16.xpose.msra.mxu0 0
    %3446 = vmatprep.subr.bf16.mxu0 0
    %3447 = vmatpush1.bf16.xpose.msra.mxu0 0
    %3448 = vmatprep.subr.bf16.mxu0 0
    %3449 = vmatpush1.bf16.xpose.msra.mxu0 0
    %3450 = vmatprep.subr.bf16.mxu0 0
    %3451 = vmatpush1.bf16.xpose.msra.mxu0 0
    %3452 = vmatprep.subr.bf16.mxu0 0
    %3453 = vmatpush1.bf16.xpose.msra.mxu0 0
    %3454 = vmatprep.subr.bf16.mxu0 0
    %3455 = vmatpush1.bf16.xpose.msra.mxu0 0
    %3456 = vmatprep.subr.bf16.mxu0 0
    %3457 = vmatpush1.bf16.xpose.msra.mxu0 0
    %3458 = vmatprep.subr.bf16.mxu0 0
    %3459 = vmatpush1.bf16.xpose.msra.mxu0 0
    %3460 = vmatprep.subr.bf16.mxu0 0
    %3461 = vmatpush1.bf16.xpose.msra.mxu0 0
    %3462 = vmatprep.subr.bf16.mxu0 0
    %3463 = vmatpush1.bf16.xpose.msra.mxu0 0
    %3464 = vmatprep.subr.bf16.mxu0 0
    %3465 = vmatpush1.bf16.xpose.msra.mxu0 0
    %3466 = vmatprep.subr.bf16.mxu0 0
    %3467 = vmatpush1.bf16.xpose.msra.mxu0 0
    %3468 = vmatprep.subr.bf16.mxu0 0
    %3469 = vmatpush1.bf16.xpose.msra.mxu0 0
    %3470 = vmatprep.mubr.bf16.mxu0 0
    %3471 = vmatmul.mubr.bf16.gmra.mrb[0].mxu0 %v3433
    %v3472 = vpop.f32.mrb[0].mxu0
    %v3473 = vadd.f32 0.0, %v3472
    %v3474 = vpop.f32.mrb[0].mxu0
    %v3475 = vpop.f32.mrb[0].mxu0
    %v3476 = vadd.f32 0.0, %v3475
    %v3477 = vpop.f32.mrb[0].mxu0
    %3478 = vdwg.mxu0
    %v3479 = vmul.f32 %v3426, 0.17677669
    %v3480 = vmul.f32 %v3429, 0.17677669
    %v3481 = vmul.f32 %v3473, 0.17677669
    %v3482 = vmul.f32 %v3476, 0.17677669
    %v3483 = vadd.f32 %v3479, %v1097
    %v3484 = vadd.f32 %v3480, %v1097
    %v3485 = vadd.f32 %v3481, %v1101
    %v3486 = vadd.f32 %v3482, %v1101
    %v3487 = vsel %vm1493, %v3483, -inf
    %3488 = vmax.xlane.f32.xlu0 %v3487
    %v3489 = vpop.xlane.xlu0 %3488
    %v3490 = vsel %vm1493, %v3484, -inf
    %3491 = vmax.xlane.f32.xlu0 %v3490
    %v3492 = vpop.xlane.xlu0 %3491
    %v3493 = vsel %vm1493, %v3485, -inf
    %3494 = vmax.xlane.f32.xlu0 %v3493
    %v3495 = vpop.xlane.xlu0 %3494
    %v3496 = vsel %vm1493, %v3486, -inf
    %3497 = vmax.xlane.f32.xlu0 %v3496
    %v3498 = vpop.xlane.xlu0 %3497
    %v3499 = vsub.f32 %v3483, %v3489
    %v3500 = vsub.f32 %v3484, %v3492
    %v3501 = vsub.f32 %v3485, %v3495
    %v3502 = vsub.f32 %v3486, %v3498
    %v3503 = vmul.f32 %v3499, 1.442695
    %v3504 = vpow.pop %v3503
    %v3505 = vmul.f32 %v3500, 1.442695
    %v3506 = vpow.pop %v3505
    %v3507 = vmul.f32 %v3501, 1.442695
    %v3508 = vpow.pop %v3507
    %v3509 = vmul.f32 %v3502, 1.442695
    %v3510 = vpow.pop %v3509
    %v3511 = vsel %vm1493, %v3504, 0.0
    %3512 = vadd.xlane.f32.xlu0 %v3511
    %v3513 = vpop.xlane.xlu0 %3512
    %v3514 = vsel %vm1493, %v3506, 0.0
    %3515 = vadd.xlane.f32.xlu0 %v3514
    %v3516 = vpop.xlane.xlu0 %3515
    %v3517 = vsel %vm1493, %v3508, 0.0
    %3518 = vadd.xlane.f32.xlu0 %v3517
    %v3519 = vpop.xlane.xlu0 %3518
    %v3520 = vsel %vm1493, %v3510, 0.0
    %3521 = vadd.xlane.f32.xlu0 %v3520
    %v3522 = vpop.xlane.xlu0 %3521
    %v3523 = vrcp.pop %v3513
    %v3524 = vrcp.pop %v3516
    %v3525 = vrcp.pop %v3519
    %v3526 = vrcp.pop %v3522
    %v3527 = vmul.f32 %v3504, %v3523
    %v3528 = vmul.f32 %v3506, %v3524
    %v3529 = vmul.f32 %v3508, %v3525
    %v3530 = vmul.f32 %v3510, %v3526
    %v3531 = vpack.c.bf16 %v3528, %v3527
    %v3532 = vpack.c.bf16 %v3530, %v3529
    %v3533 = vpack.c.bf16 %v3370, %v3367
    %v3534 = vpack.c.bf16 %v3378, %v3375
    %v3536 = vsel %vm1493, %v3531, 0
    %3538 = vmatprep.subr.bf16.mxu0 0
    %3539 = vmatpush1.bf16.msra.mxu0 %v3533
    %3540 = vmatprep.subr.bf16.mxu0 0
    %3541 = vmatpush1.bf16.msra.mxu0 0
    %3542 = vmatprep.subr.bf16.mxu0 0
    %3543 = vmatpush1.bf16.msra.mxu0 0
    %3544 = vmatprep.subr.bf16.mxu0 0
    %3545 = vmatpush1.bf16.msra.mxu0 0
    %3546 = vmatprep.subr.bf16.mxu0 0
    %3547 = vmatpush1.bf16.msra.mxu0 0
    %3548 = vmatprep.subr.bf16.mxu0 0
    %3549 = vmatpush1.bf16.msra.mxu0 0
    %3550 = vmatprep.subr.bf16.mxu0 0
    %3551 = vmatpush1.bf16.msra.mxu0 0
    %3552 = vmatprep.subr.bf16.mxu0 0
    %3553 = vmatpush1.bf16.msra.mxu0 0
    %3554 = vmatprep.subr.bf16.mxu0 0
    %3555 = vmatpush1.bf16.msra.mxu0 0
    %3556 = vmatprep.subr.bf16.mxu0 0
    %3557 = vmatpush1.bf16.msra.mxu0 0
    %3558 = vmatprep.subr.bf16.mxu0 0
    %3559 = vmatpush1.bf16.msra.mxu0 0
    %3560 = vmatprep.subr.bf16.mxu0 0
    %3561 = vmatpush1.bf16.msra.mxu0 0
    %3562 = vmatprep.subr.bf16.mxu0 0
    %3563 = vmatpush1.bf16.msra.mxu0 0
    %3564 = vmatprep.subr.bf16.mxu0 0
    %3565 = vmatpush1.bf16.msra.mxu0 0
    %3566 = vmatprep.subr.bf16.mxu0 0
    %3567 = vmatpush1.bf16.msra.mxu0 0
    %3568 = vmatprep.subr.bf16.mxu0 0
    %3569 = vmatpush1.bf16.msra.mxu0 0
    %3570 = vmatprep.mubr.bf16.mxu0 0
    %3571 = vmatmul.mubr.bf16.gmra.mrb[0].mxu0 %v3536
    %v3572 = vpop.f32.mrb[0].mxu0
    %v3573 = vadd.f32 0.0, %v3572
    %v3574 = vpop.f32.mrb[0].mxu0
    %v3575 = vpop.f32.mrb[0].mxu0
    %v3576 = vadd.f32 0.0, %v3575
    %v3577 = vpop.f32.mrb[0].mxu0
    %3578 = vdwg.mxu0
    %v3580 = vsel %vm1493, %v3532, 0
    %3582 = vmatprep.subr.bf16.mxu0 0
    %3583 = vmatpush1.bf16.msra.mxu0 %v3534
    %3584 = vmatprep.subr.bf16.mxu0 0
    %3585 = vmatpush1.bf16.msra.mxu0 0
    %3586 = vmatprep.subr.bf16.mxu0 0
    %3587 = vmatpush1.bf16.msra.mxu0 0
    %3588 = vmatprep.subr.bf16.mxu0 0
    %3589 = vmatpush1.bf16.msra.mxu0 0
    %3590 = vmatprep.subr.bf16.mxu0 0
    %3591 = vmatpush1.bf16.msra.mxu0 0
    %3592 = vmatprep.subr.bf16.mxu0 0
    %3593 = vmatpush1.bf16.msra.mxu0 0
    %3594 = vmatprep.subr.bf16.mxu0 0
    %3595 = vmatpush1.bf16.msra.mxu0 0
    %3596 = vmatprep.subr.bf16.mxu0 0
    %3597 = vmatpush1.bf16.msra.mxu0 0
    %3598 = vmatprep.subr.bf16.mxu0 0
    %3599 = vmatpush1.bf16.msra.mxu0 0
    %3600 = vmatprep.subr.bf16.mxu0 0
    %3601 = vmatpush1.bf16.msra.mxu0 0
    %3602 = vmatprep.subr.bf16.mxu0 0
    %3603 = vmatpush1.bf16.msra.mxu0 0
    %3604 = vmatprep.subr.bf16.mxu0 0
    %3605 = vmatpush1.bf16.msra.mxu0 0
    %3606 = vmatprep.subr.bf16.mxu0 0
    %3607 = vmatpush1.bf16.msra.mxu0 0
    %3608 = vmatprep.subr.bf16.mxu0 0
    %3609 = vmatpush1.bf16.msra.mxu0 0
    %3610 = vmatprep.subr.bf16.mxu0 0
    %3611 = vmatpush1.bf16.msra.mxu0 0
    %3612 = vmatprep.subr.bf16.mxu0 0
    %3613 = vmatpush1.bf16.msra.mxu0 0
    %3614 = vmatprep.mubr.bf16.mxu0 0
    %3615 = vmatmul.mubr.bf16.gmra.mrb[0].mxu0 %v3580
    %v3616 = vpop.f32.mrb[0].mxu0
    %v3617 = vadd.f32 0.0, %v3616
    %v3618 = vpop.f32.mrb[0].mxu0
    %v3619 = vpop.f32.mrb[0].mxu0
    %v3620 = vadd.f32 0.0, %v3619
    %v3621 = vpop.f32.mrb[0].mxu0
    %3622 = vdwg.mxu0
    %3624 = vrot.lane.b32.xlu0 %v3381, 96
    %v3625 = vpop.permute.xlu0 %3624
    %3627 = vrot.lane.b32.xlu0 %v3383, 96
    %v3628 = vpop.permute.xlu0 %3627
    %v3630 = vsel %vm1390, %v3625, 0
    %v3633 = vsel %vm1390, %v3628, 0
    %3635 = vmatprep.subr.bf16.mxu0 0
    %3636 = vmatpush1.bf16.xpose.msra.mxu0 %v3633
    %3637 = vmatprep.subr.bf16.mxu0 0
    %3638 = vmatpush1.bf16.xpose.msra.mxu0 0
    %3639 = vmatprep.subr.bf16.mxu0 0
    %3640 = vmatpush1.bf16.xpose.msra.mxu0 0
    %3641 = vmatprep.subr.bf16.mxu0 0
    %3642 = vmatpush1.bf16.xpose.msra.mxu0 0
    %3643 = vmatprep.subr.bf16.mxu0 0
    %3644 = vmatpush1.bf16.xpose.msra.mxu0 0
    %3645 = vmatprep.subr.bf16.mxu0 0
    %3646 = vmatpush1.bf16.xpose.msra.mxu0 0
    %3647 = vmatprep.subr.bf16.mxu0 0
    %3648 = vmatpush1.bf16.xpose.msra.mxu0 0
    %3649 = vmatprep.subr.bf16.mxu0 0
    %3650 = vmatpush1.bf16.xpose.msra.mxu0 0
    %3651 = vmatprep.subr.bf16.mxu0 0
    %3652 = vmatpush1.bf16.xpose.msra.mxu0 0
    %3653 = vmatprep.subr.bf16.mxu0 0
    %3654 = vmatpush1.bf16.xpose.msra.mxu0 0
    %3655 = vmatprep.subr.bf16.mxu0 0
    %3656 = vmatpush1.bf16.xpose.msra.mxu0 0
    %3657 = vmatprep.subr.bf16.mxu0 0
    %3658 = vmatpush1.bf16.xpose.msra.mxu0 0
    %3659 = vmatprep.subr.bf16.mxu0 0
    %3660 = vmatpush1.bf16.xpose.msra.mxu0 0
    %3661 = vmatprep.subr.bf16.mxu0 0
    %3662 = vmatpush1.bf16.xpose.msra.mxu0 0
    %3663 = vmatprep.subr.bf16.mxu0 0
    %3664 = vmatpush1.bf16.xpose.msra.mxu0 0
    %3665 = vmatprep.subr.bf16.mxu0 0
    %3666 = vmatpush1.bf16.xpose.msra.mxu0 0
    %3667 = vmatprep.mubr.bf16.mxu0 0
    %3668 = vmatmul.mubr.bf16.gmra.mrb[0].mxu0 %v3630
    %v3669 = vpop.f32.mrb[0].mxu0
    %v3670 = vadd.f32 0.0, %v3669
    %v3671 = vpop.f32.mrb[0].mxu0
    %v3672 = vpop.f32.mrb[0].mxu0
    %v3673 = vadd.f32 0.0, %v3672
    %v3674 = vpop.f32.mrb[0].mxu0
    %3675 = vdwg.mxu0
    %3677 = vrot.lane.b32.xlu0 %v3382, 96
    %v3678 = vpop.permute.xlu0 %3677
    %3680 = vrot.lane.b32.xlu0 %v3384, 96
    %v3681 = vpop.permute.xlu0 %3680
    %v3683 = vsel %vm1390, %v3678, 0
    %v3686 = vsel %vm1390, %v3681, 0
    %3688 = vmatprep.subr.bf16.mxu0 0
    %3689 = vmatpush1.bf16.xpose.msra.mxu0 %v3686
    %3690 = vmatprep.subr.bf16.mxu0 0
    %3691 = vmatpush1.bf16.xpose.msra.mxu0 0
    %3692 = vmatprep.subr.bf16.mxu0 0
    %3693 = vmatpush1.bf16.xpose.msra.mxu0 0
    %3694 = vmatprep.subr.bf16.mxu0 0
    %3695 = vmatpush1.bf16.xpose.msra.mxu0 0
    %3696 = vmatprep.subr.bf16.mxu0 0
    %3697 = vmatpush1.bf16.xpose.msra.mxu0 0
    %3698 = vmatprep.subr.bf16.mxu0 0
    %3699 = vmatpush1.bf16.xpose.msra.mxu0 0
    %3700 = vmatprep.subr.bf16.mxu0 0
    %3701 = vmatpush1.bf16.xpose.msra.mxu0 0
    %3702 = vmatprep.subr.bf16.mxu0 0
    %3703 = vmatpush1.bf16.xpose.msra.mxu0 0
    %3704 = vmatprep.subr.bf16.mxu0 0
    %3705 = vmatpush1.bf16.xpose.msra.mxu0 0
    %3706 = vmatprep.subr.bf16.mxu0 0
    %3707 = vmatpush1.bf16.xpose.msra.mxu0 0
    %3708 = vmatprep.subr.bf16.mxu0 0
    %3709 = vmatpush1.bf16.xpose.msra.mxu0 0
    %3710 = vmatprep.subr.bf16.mxu0 0
    %3711 = vmatpush1.bf16.xpose.msra.mxu0 0
    %3712 = vmatprep.subr.bf16.mxu0 0
    %3713 = vmatpush1.bf16.xpose.msra.mxu0 0
    %3714 = vmatprep.subr.bf16.mxu0 0
    %3715 = vmatpush1.bf16.xpose.msra.mxu0 0
    %3716 = vmatprep.subr.bf16.mxu0 0
    %3717 = vmatpush1.bf16.xpose.msra.mxu0 0
    %3718 = vmatprep.subr.bf16.mxu0 0
    %3719 = vmatpush1.bf16.xpose.msra.mxu0 0
    %3720 = vmatprep.mubr.bf16.mxu0 0
    %3721 = vmatmul.mubr.bf16.gmra.mrb[0].mxu0 %v3683
    %v3722 = vpop.f32.mrb[0].mxu0
    %v3723 = vadd.f32 0.0, %v3722
    %v3724 = vpop.f32.mrb[0].mxu0
    %v3725 = vpop.f32.mrb[0].mxu0
    %v3726 = vadd.f32 0.0, %v3725
    %v3727 = vpop.f32.mrb[0].mxu0
    %3728 = vdwg.mxu0
    %v3729 = vmul.f32 %v3670, 0.17677669
    %v3730 = vmul.f32 %v3673, 0.17677669
    %v3731 = vmul.f32 %v3723, 0.17677669
    %v3732 = vmul.f32 %v3726, 0.17677669
    %v3733 = vadd.f32 %v3729, %v1097
    %v3734 = vadd.f32 %v3730, %v1097
    %v3735 = vadd.f32 %v3731, %v1101
    %v3736 = vadd.f32 %v3732, %v1101
    %v3737 = vsel %vm1493, %v3733, -inf
    %3738 = vmax.xlane.f32.xlu0 %v3737
    %v3739 = vpop.xlane.xlu0 %3738
    %v3740 = vsel %vm1493, %v3734, -inf
    %3741 = vmax.xlane.f32.xlu0 %v3740
    %v3742 = vpop.xlane.xlu0 %3741
    %v3743 = vsel %vm1493, %v3735, -inf
    %3744 = vmax.xlane.f32.xlu0 %v3743
    %v3745 = vpop.xlane.xlu0 %3744
    %v3746 = vsel %vm1493, %v3736, -inf
    %3747 = vmax.xlane.f32.xlu0 %v3746
    %v3748 = vpop.xlane.xlu0 %3747
    %v3749 = vsub.f32 %v3733, %v3739
    %v3750 = vsub.f32 %v3734, %v3742
    %v3751 = vsub.f32 %v3735, %v3745
    %v3752 = vsub.f32 %v3736, %v3748
    %v3753 = vmul.f32 %v3749, 1.442695
    %v3754 = vpow.pop %v3753
    %v3755 = vmul.f32 %v3750, 1.442695
    %v3756 = vpow.pop %v3755
    %v3757 = vmul.f32 %v3751, 1.442695
    %v3758 = vpow.pop %v3757
    %v3759 = vmul.f32 %v3752, 1.442695
    %v3760 = vpow.pop %v3759
    %v3761 = vsel %vm1493, %v3754, 0.0
    %3762 = vadd.xlane.f32.xlu0 %v3761
    %v3763 = vpop.xlane.xlu0 %3762
    %v3764 = vsel %vm1493, %v3756, 0.0
    %3765 = vadd.xlane.f32.xlu0 %v3764
    %v3766 = vpop.xlane.xlu0 %3765
    %v3767 = vsel %vm1493, %v3758, 0.0
    %3768 = vadd.xlane.f32.xlu0 %v3767
    %v3769 = vpop.xlane.xlu0 %3768
    %v3770 = vsel %vm1493, %v3760, 0.0
    %3771 = vadd.xlane.f32.xlu0 %v3770
    %v3772 = vpop.xlane.xlu0 %3771
    %v3773 = vrcp.pop %v3763
    %v3774 = vrcp.pop %v3766
    %v3775 = vrcp.pop %v3769
    %v3776 = vrcp.pop %v3772
    %v3777 = vmul.f32 %v3754, %v3773
    %v3778 = vmul.f32 %v3756, %v3774
    %v3779 = vmul.f32 %v3758, %v3775
    %v3780 = vmul.f32 %v3760, %v3776
    %v3781 = vpack.c.bf16 %v3778, %v3777
    %v3782 = vpack.c.bf16 %v3780, %v3779
    %3784 = vrot.lane.b32.xlu0 %v3533, 96
    %v3785 = vpop.permute.xlu0 %3784
    %v3788 = vsel %vm1493, %v3781, 0
    %3790 = vmatprep.subr.bf16.mxu0 0
    %3791 = vmatpush1.bf16.msra.mxu0 %v3785
    %3792 = vmatprep.subr.bf16.mxu0 0
    %3793 = vmatpush1.bf16.msra.mxu0 0
    %3794 = vmatprep.subr.bf16.mxu0 0
    %3795 = vmatpush1.bf16.msra.mxu0 0
    %3796 = vmatprep.subr.bf16.mxu0 0
    %3797 = vmatpush1.bf16.msra.mxu0 0
    %3798 = vmatprep.subr.bf16.mxu0 0
    %3799 = vmatpush1.bf16.msra.mxu0 0
    %3800 = vmatprep.subr.bf16.mxu0 0
    %3801 = vmatpush1.bf16.msra.mxu0 0
    %3802 = vmatprep.subr.bf16.mxu0 0
    %3803 = vmatpush1.bf16.msra.mxu0 0
    %3804 = vmatprep.subr.bf16.mxu0 0
    %3805 = vmatpush1.bf16.msra.mxu0 0
    %3806 = vmatprep.subr.bf16.mxu0 0
    %3807 = vmatpush1.bf16.msra.mxu0 0
    %3808 = vmatprep.subr.bf16.mxu0 0
    %3809 = vmatpush1.bf16.msra.mxu0 0
    %3810 = vmatprep.subr.bf16.mxu0 0
    %3811 = vmatpush1.bf16.msra.mxu0 0
    %3812 = vmatprep.subr.bf16.mxu0 0
    %3813 = vmatpush1.bf16.msra.mxu0 0
    %3814 = vmatprep.subr.bf16.mxu0 0
    %3815 = vmatpush1.bf16.msra.mxu0 0
    %3816 = vmatprep.subr.bf16.mxu0 0
    %3817 = vmatpush1.bf16.msra.mxu0 0
    %3818 = vmatprep.subr.bf16.mxu0 0
    %3819 = vmatpush1.bf16.msra.mxu0 0
    %3820 = vmatprep.subr.bf16.mxu0 0
    %3821 = vmatpush1.bf16.msra.mxu0 0
    %3822 = vmatprep.mubr.bf16.mxu0 0
    %3823 = vmatmul.mubr.bf16.gmra.mrb[0].mxu0 %v3788
    %v3824 = vpop.f32.mrb[0].mxu0
    %v3825 = vadd.f32 0.0, %v3824
    %v3826 = vpop.f32.mrb[0].mxu0
    %v3827 = vpop.f32.mrb[0].mxu0
    %v3828 = vadd.f32 0.0, %v3827
    %v3829 = vpop.f32.mrb[0].mxu0
    %3830 = vdwg.mxu0
    %3832 = vrot.lane.b32.xlu0 %v3534, 96
    %v3833 = vpop.permute.xlu0 %3832
    %v3836 = vsel %vm1493, %v3782, 0
    %3838 = vmatprep.subr.bf16.mxu0 0
    %3839 = vmatpush1.bf16.msra.mxu0 %v3833
    %3840 = vmatprep.subr.bf16.mxu0 0
    %3841 = vmatpush1.bf16.msra.mxu0 0
    %3842 = vmatprep.subr.bf16.mxu0 0
    %3843 = vmatpush1.bf16.msra.mxu0 0
    %3844 = vmatprep.subr.bf16.mxu0 0
    %3845 = vmatpush1.bf16.msra.mxu0 0
    %3846 = vmatprep.subr.bf16.mxu0 0
    %3847 = vmatpush1.bf16.msra.mxu0 0
    %3848 = vmatprep.subr.bf16.mxu0 0
    %3849 = vmatpush1.bf16.msra.mxu0 0
    %3850 = vmatprep.subr.bf16.mxu0 0
    %3851 = vmatpush1.bf16.msra.mxu0 0
    %3852 = vmatprep.subr.bf16.mxu0 0
    %3853 = vmatpush1.bf16.msra.mxu0 0
    %3854 = vmatprep.subr.bf16.mxu0 0
    %3855 = vmatpush1.bf16.msra.mxu0 0
    %3856 = vmatprep.subr.bf16.mxu0 0
    %3857 = vmatpush1.bf16.msra.mxu0 0
    %3858 = vmatprep.subr.bf16.mxu0 0
    %3859 = vmatpush1.bf16.msra.mxu0 0
    %3860 = vmatprep.subr.bf16.mxu0 0
    %3861 = vmatpush1.bf16.msra.mxu0 0
    %3862 = vmatprep.subr.bf16.mxu0 0
    %3863 = vmatpush1.bf16.msra.mxu0 0
    %3864 = vmatprep.subr.bf16.mxu0 0
    %3865 = vmatpush1.bf16.msra.mxu0 0
    %3866 = vmatprep.subr.bf16.mxu0 0
    %3867 = vmatpush1.bf16.msra.mxu0 0
    %3868 = vmatprep.subr.bf16.mxu0 0
    %3869 = vmatpush1.bf16.msra.mxu0 0
    %3870 = vmatprep.mubr.bf16.mxu0 0
    %3871 = vmatmul.mubr.bf16.gmra.mrb[0].mxu0 %v3836
    %v3872 = vpop.f32.mrb[0].mxu0
    %v3873 = vadd.f32 0.0, %v3872
    %v3874 = vpop.f32.mrb[0].mxu0
    %v3875 = vpop.f32.mrb[0].mxu0
    %v3876 = vadd.f32 0.0, %v3875
    %v3877 = vpop.f32.mrb[0].mxu0
    %3878 = vdwg.mxu0
    %3879 = vrot.lane.b32.xlu0 %v3381, 64
    %v3880 = vpop.permute.xlu0 %3879
    %3881 = vrot.lane.b32.xlu0 %v3383, 64
    %v3882 = vpop.permute.xlu0 %3881
    %v3884 = vsel %vm1390, %v3880, 0
    %v3887 = vsel %vm1390, %v3882, 0
    %3889 = vmatprep.subr.bf16.mxu0 0
    %3890 = vmatpush1.bf16.xpose.msra.mxu0 %v3887
    %3891 = vmatprep.subr.bf16.mxu0 0
    %3892 = vmatpush1.bf16.xpose.msra.mxu0 0
    %3893 = vmatprep.subr.bf16.mxu0 0
    %3894 = vmatpush1.bf16.xpose.msra.mxu0 0
    %3895 = vmatprep.subr.bf16.mxu0 0
    %3896 = vmatpush1.bf16.xpose.msra.mxu0 0
    %3897 = vmatprep.subr.bf16.mxu0 0
    %3898 = vmatpush1.bf16.xpose.msra.mxu0 0
    %3899 = vmatprep.subr.bf16.mxu0 0
    %3900 = vmatpush1.bf16.xpose.msra.mxu0 0
    %3901 = vmatprep.subr.bf16.mxu0 0
    %3902 = vmatpush1.bf16.xpose.msra.mxu0 0
    %3903 = vmatprep.subr.bf16.mxu0 0
    %3904 = vmatpush1.bf16.xpose.msra.mxu0 0
    %3905 = vmatprep.subr.bf16.mxu0 0
    %3906 = vmatpush1.bf16.xpose.msra.mxu0 0
    %3907 = vmatprep.subr.bf16.mxu0 0
    %3908 = vmatpush1.bf16.xpose.msra.mxu0 0
    %3909 = vmatprep.subr.bf16.mxu0 0
    %3910 = vmatpush1.bf16.xpose.msra.mxu0 0
    %3911 = vmatprep.subr.bf16.mxu0 0
    %3912 = vmatpush1.bf16.xpose.msra.mxu0 0
    %3913 = vmatprep.subr.bf16.mxu0 0
    %3914 = vmatpush1.bf16.xpose.msra.mxu0 0
    %3915 = vmatprep.subr.bf16.mxu0 0
    %3916 = vmatpush1.bf16.xpose.msra.mxu0 0
    %3917 = vmatprep.subr.bf16.mxu0 0
    %3918 = vmatpush1.bf16.xpose.msra.mxu0 0
    %3919 = vmatprep.subr.bf16.mxu0 0
    %3920 = vmatpush1.bf16.xpose.msra.mxu0 0
    %3921 = vmatprep.mubr.bf16.mxu0 0
    %3922 = vmatmul.mubr.bf16.gmra.mrb[0].mxu0 %v3884
    %v3923 = vpop.f32.mrb[0].mxu0
    %v3924 = vadd.f32 0.0, %v3923
    %v3925 = vpop.f32.mrb[0].mxu0
    %v3926 = vpop.f32.mrb[0].mxu0
    %v3927 = vadd.f32 0.0, %v3926
    %v3928 = vpop.f32.mrb[0].mxu0
    %3929 = vdwg.mxu0
    %3930 = vrot.lane.b32.xlu0 %v3382, 64
    %v3931 = vpop.permute.xlu0 %3930
    %3932 = vrot.lane.b32.xlu0 %v3384, 64
    %v3933 = vpop.permute.xlu0 %3932
    %v3935 = vsel %vm1390, %v3931, 0
    %v3938 = vsel %vm1390, %v3933, 0
    %3940 = vmatprep.subr.bf16.mxu0 0
    %3941 = vmatpush1.bf16.xpose.msra.mxu0 %v3938
    %3942 = vmatprep.subr.bf16.mxu0 0
    %3943 = vmatpush1.bf16.xpose.msra.mxu0 0
    %3944 = vmatprep.subr.bf16.mxu0 0
    %3945 = vmatpush1.bf16.xpose.msra.mxu0 0
    %3946 = vmatprep.subr.bf16.mxu0 0
    %3947 = vmatpush1.bf16.xpose.msra.mxu0 0
    %3948 = vmatprep.subr.bf16.mxu0 0
    %3949 = vmatpush1.bf16.xpose.msra.mxu0 0
    %3950 = vmatprep.subr.bf16.mxu0 0
    %3951 = vmatpush1.bf16.xpose.msra.mxu0 0
    %3952 = vmatprep.subr.bf16.mxu0 0
    %3953 = vmatpush1.bf16.xpose.msra.mxu0 0
    %3954 = vmatprep.subr.bf16.mxu0 0
    %3955 = vmatpush1.bf16.xpose.msra.mxu0 0
    %3956 = vmatprep.subr.bf16.mxu0 0
    %3957 = vmatpush1.bf16.xpose.msra.mxu0 0
    %3958 = vmatprep.subr.bf16.mxu0 0
    %3959 = vmatpush1.bf16.xpose.msra.mxu0 0
    %3960 = vmatprep.subr.bf16.mxu0 0
    %3961 = vmatpush1.bf16.xpose.msra.mxu0 0
    %3962 = vmatprep.subr.bf16.mxu0 0
    %3963 = vmatpush1.bf16.xpose.msra.mxu0 0
    %3964 = vmatprep.subr.bf16.mxu0 0
    %3965 = vmatpush1.bf16.xpose.msra.mxu0 0
    %3966 = vmatprep.subr.bf16.mxu0 0
    %3967 = vmatpush1.bf16.xpose.msra.mxu0 0
    %3968 = vmatprep.subr.bf16.mxu0 0
    %3969 = vmatpush1.bf16.xpose.msra.mxu0 0
    %3970 = vmatprep.subr.bf16.mxu0 0
    %3971 = vmatpush1.bf16.xpose.msra.mxu0 0
    %3972 = vmatprep.mubr.bf16.mxu0 0
    %3973 = vmatmul.mubr.bf16.gmra.mrb[0].mxu0 %v3935
    %v3974 = vpop.f32.mrb[0].mxu0
    %v3975 = vadd.f32 0.0, %v3974
    %v3976 = vpop.f32.mrb[0].mxu0
    %v3977 = vpop.f32.mrb[0].mxu0
    %v3978 = vadd.f32 0.0, %v3977
    %v3979 = vpop.f32.mrb[0].mxu0
    %3980 = vdwg.mxu0
    %v3981 = vmul.f32 %v3924, 0.17677669
    %v3982 = vmul.f32 %v3927, 0.17677669
    %v3983 = vmul.f32 %v3975, 0.17677669
    %v3984 = vmul.f32 %v3978, 0.17677669
    %v3985 = vadd.f32 %v3981, %v1097
    %v3986 = vadd.f32 %v3982, %v1097
    %v3987 = vadd.f32 %v3983, %v1101
    %v3988 = vadd.f32 %v3984, %v1101
    %v3989 = vsel %vm1493, %v3985, -inf
    %3990 = vmax.xlane.f32.xlu0 %v3989
    %v3991 = vpop.xlane.xlu0 %3990
    %v3992 = vsel %vm1493, %v3986, -inf
    %3993 = vmax.xlane.f32.xlu0 %v3992
    %v3994 = vpop.xlane.xlu0 %3993
    %v3995 = vsel %vm1493, %v3987, -inf
    %3996 = vmax.xlane.f32.xlu0 %v3995
    %v3997 = vpop.xlane.xlu0 %3996
    %v3998 = vsel %vm1493, %v3988, -inf
    %3999 = vmax.xlane.f32.xlu0 %v3998
    %v4000 = vpop.xlane.xlu0 %3999
    %v4001 = vsub.f32 %v3985, %v3991
    %v4002 = vsub.f32 %v3986, %v3994
    %v4003 = vsub.f32 %v3987, %v3997
    %v4004 = vsub.f32 %v3988, %v4000
    %v4005 = vmul.f32 %v4001, 1.442695
    %v4006 = vpow.pop %v4005
    %v4007 = vmul.f32 %v4002, 1.442695
    %v4008 = vpow.pop %v4007
    %v4009 = vmul.f32 %v4003, 1.442695
    %v4010 = vpow.pop %v4009
    %v4011 = vmul.f32 %v4004, 1.442695
    %v4012 = vpow.pop %v4011
    %v4013 = vsel %vm1493, %v4006, 0.0
    %4014 = vadd.xlane.f32.xlu0 %v4013
    %v4015 = vpop.xlane.xlu0 %4014
    %v4016 = vsel %vm1493, %v4008, 0.0
    %4017 = vadd.xlane.f32.xlu0 %v4016
    %v4018 = vpop.xlane.xlu0 %4017
    %v4019 = vsel %vm1493, %v4010, 0.0
    %4020 = vadd.xlane.f32.xlu0 %v4019
    %v4021 = vpop.xlane.xlu0 %4020
    %v4022 = vsel %vm1493, %v4012, 0.0
    %4023 = vadd.xlane.f32.xlu0 %v4022
    %v4024 = vpop.xlane.xlu0 %4023
    %v4025 = vrcp.pop %v4015
    %v4026 = vrcp.pop %v4018
    %v4027 = vrcp.pop %v4021
    %v4028 = vrcp.pop %v4024
    %v4029 = vmul.f32 %v4006, %v4025
    %v4030 = vmul.f32 %v4008, %v4026
    %v4031 = vmul.f32 %v4010, %v4027
    %v4032 = vmul.f32 %v4012, %v4028
    %v4033 = vpack.c.bf16 %v4030, %v4029
    %v4034 = vpack.c.bf16 %v4032, %v4031
    %4035 = vrot.lane.b32.xlu0 %v3533, 64
    %v4036 = vpop.permute.xlu0 %4035
    %v4039 = vsel %vm1493, %v4033, 0
    %4041 = vmatprep.subr.bf16.mxu0 0
    %4042 = vmatpush1.bf16.msra.mxu0 %v4036
    %4043 = vmatprep.subr.bf16.mxu0 0
    %4044 = vmatpush1.bf16.msra.mxu0 0
    %4045 = vmatprep.subr.bf16.mxu0 0
    %4046 = vmatpush1.bf16.msra.mxu0 0
    %4047 = vmatprep.subr.bf16.mxu0 0
    %4048 = vmatpush1.bf16.msra.mxu0 0
    %4049 = vmatprep.subr.bf16.mxu0 0
    %4050 = vmatpush1.bf16.msra.mxu0 0
    %4051 = vmatprep.subr.bf16.mxu0 0
    %4052 = vmatpush1.bf16.msra.mxu0 0
    %4053 = vmatprep.subr.bf16.mxu0 0
    %4054 = vmatpush1.bf16.msra.mxu0 0
    %4055 = vmatprep.subr.bf16.mxu0 0
    %4056 = vmatpush1.bf16.msra.mxu0 0
    %4057 = vmatprep.subr.bf16.mxu0 0
    %4058 = vmatpush1.bf16.msra.mxu0 0
    %4059 = vmatprep.subr.bf16.mxu0 0
    %4060 = vmatpush1.bf16.msra.mxu0 0
    %4061 = vmatprep.subr.bf16.mxu0 0
    %4062 = vmatpush1.bf16.msra.mxu0 0
    %4063 = vmatprep.subr.bf16.mxu0 0
    %4064 = vmatpush1.bf16.msra.mxu0 0
    %4065 = vmatprep.subr.bf16.mxu0 0
    %4066 = vmatpush1.bf16.msra.mxu0 0
    %4067 = vmatprep.subr.bf16.mxu0 0
    %4068 = vmatpush1.bf16.msra.mxu0 0
    %4069 = vmatprep.subr.bf16.mxu0 0
    %4070 = vmatpush1.bf16.msra.mxu0 0
    %4071 = vmatprep.subr.bf16.mxu0 0
    %4072 = vmatpush1.bf16.msra.mxu0 0
    %4073 = vmatprep.mubr.bf16.mxu0 0
    %4074 = vmatmul.mubr.bf16.gmra.mrb[0].mxu0 %v4039
    %v4075 = vpop.f32.mrb[0].mxu0
    %v4076 = vadd.f32 0.0, %v4075
    %v4077 = vpop.f32.mrb[0].mxu0
    %v4078 = vpop.f32.mrb[0].mxu0
    %v4079 = vadd.f32 0.0, %v4078
    %v4080 = vpop.f32.mrb[0].mxu0
    %4081 = vdwg.mxu0
    %4082 = vrot.lane.b32.xlu0 %v3534, 64
    %v4083 = vpop.permute.xlu0 %4082
    %v4086 = vsel %vm1493, %v4034, 0
    %4088 = vmatprep.subr.bf16.mxu0 0
    %4089 = vmatpush1.bf16.msra.mxu0 %v4083
    %4090 = vmatprep.subr.bf16.mxu0 0
    %4091 = vmatpush1.bf16.msra.mxu0 0
    %4092 = vmatprep.subr.bf16.mxu0 0
    %4093 = vmatpush1.bf16.msra.mxu0 0
    %4094 = vmatprep.subr.bf16.mxu0 0
    %4095 = vmatpush1.bf16.msra.mxu0 0
    %4096 = vmatprep.subr.bf16.mxu0 0
    %4097 = vmatpush1.bf16.msra.mxu0 0
    %4098 = vmatprep.subr.bf16.mxu0 0
    %4099 = vmatpush1.bf16.msra.mxu0 0
    %4100 = vmatprep.subr.bf16.mxu0 0
    %4101 = vmatpush1.bf16.msra.mxu0 0
    %4102 = vmatprep.subr.bf16.mxu0 0
    %4103 = vmatpush1.bf16.msra.mxu0 0
    %4104 = vmatprep.subr.bf16.mxu0 0
    %4105 = vmatpush1.bf16.msra.mxu0 0
    %4106 = vmatprep.subr.bf16.mxu0 0
    %4107 = vmatpush1.bf16.msra.mxu0 0
    %4108 = vmatprep.subr.bf16.mxu0 0
    %4109 = vmatpush1.bf16.msra.mxu0 0
    %4110 = vmatprep.subr.bf16.mxu0 0
    %4111 = vmatpush1.bf16.msra.mxu0 0
    %4112 = vmatprep.subr.bf16.mxu0 0
    %4113 = vmatpush1.bf16.msra.mxu0 0
    %4114 = vmatprep.subr.bf16.mxu0 0
    %4115 = vmatpush1.bf16.msra.mxu0 0
    %4116 = vmatprep.subr.bf16.mxu0 0
    %4117 = vmatpush1.bf16.msra.mxu0 0
    %4118 = vmatprep.subr.bf16.mxu0 0
    %4119 = vmatpush1.bf16.msra.mxu0 0
    %4120 = vmatprep.mubr.bf16.mxu0 0
    %4121 = vmatmul.mubr.bf16.gmra.mrb[0].mxu0 %v4086
    %v4122 = vpop.f32.mrb[0].mxu0
    %v4123 = vadd.f32 0.0, %v4122
    %v4124 = vpop.f32.mrb[0].mxu0
    %v4125 = vpop.f32.mrb[0].mxu0
    %v4126 = vadd.f32 0.0, %v4125
    %v4127 = vpop.f32.mrb[0].mxu0
    %4128 = vdwg.mxu0
    %4129 = vrot.lane.b32.xlu0 %v3381, 32
    %v4130 = vpop.permute.xlu0 %4129
    %4131 = vrot.lane.b32.xlu0 %v3383, 32
    %v4132 = vpop.permute.xlu0 %4131
    %v4134 = vsel %vm1390, %v4130, 0
    %v4137 = vsel %vm1390, %v4132, 0
    %4139 = vmatprep.subr.bf16.mxu0 0
    %4140 = vmatpush1.bf16.xpose.msra.mxu0 %v4137
    %4141 = vmatprep.subr.bf16.mxu0 0
    %4142 = vmatpush1.bf16.xpose.msra.mxu0 0
    %4143 = vmatprep.subr.bf16.mxu0 0
    %4144 = vmatpush1.bf16.xpose.msra.mxu0 0
    %4145 = vmatprep.subr.bf16.mxu0 0
    %4146 = vmatpush1.bf16.xpose.msra.mxu0 0
    %4147 = vmatprep.subr.bf16.mxu0 0
    %4148 = vmatpush1.bf16.xpose.msra.mxu0 0
    %4149 = vmatprep.subr.bf16.mxu0 0
    %4150 = vmatpush1.bf16.xpose.msra.mxu0 0
    %4151 = vmatprep.subr.bf16.mxu0 0
    %4152 = vmatpush1.bf16.xpose.msra.mxu0 0
    %4153 = vmatprep.subr.bf16.mxu0 0
    %4154 = vmatpush1.bf16.xpose.msra.mxu0 0
    %4155 = vmatprep.subr.bf16.mxu0 0
    %4156 = vmatpush1.bf16.xpose.msra.mxu0 0
    %4157 = vmatprep.subr.bf16.mxu0 0
    %4158 = vmatpush1.bf16.xpose.msra.mxu0 0
    %4159 = vmatprep.subr.bf16.mxu0 0
    %4160 = vmatpush1.bf16.xpose.msra.mxu0 0
    %4161 = vmatprep.subr.bf16.mxu0 0
    %4162 = vmatpush1.bf16.xpose.msra.mxu0 0
    %4163 = vmatprep.subr.bf16.mxu0 0
    %4164 = vmatpush1.bf16.xpose.msra.mxu0 0
    %4165 = vmatprep.subr.bf16.mxu0 0
    %4166 = vmatpush1.bf16.xpose.msra.mxu0 0
    %4167 = vmatprep.subr.bf16.mxu0 0
    %4168 = vmatpush1.bf16.xpose.msra.mxu0 0
    %4169 = vmatprep.subr.bf16.mxu0 0
    %4170 = vmatpush1.bf16.xpose.msra.mxu0 0
    %4171 = vmatprep.mubr.bf16.mxu0 0
    %4172 = vmatmul.mubr.bf16.gmra.mrb[0].mxu0 %v4134
    %v4173 = vpop.f32.mrb[0].mxu0
    %v4174 = vadd.f32 0.0, %v4173
    %v4175 = vpop.f32.mrb[0].mxu0
    %v4176 = vpop.f32.mrb[0].mxu0
    %v4177 = vadd.f32 0.0, %v4176
    %v4178 = vpop.f32.mrb[0].mxu0
    %4179 = vdwg.mxu0
    %4180 = vrot.lane.b32.xlu0 %v3382, 32
    %v4181 = vpop.permute.xlu0 %4180
    %4182 = vrot.lane.b32.xlu0 %v3384, 32
    %v4183 = vpop.permute.xlu0 %4182
    %v4185 = vsel %vm1390, %v4181, 0
    %v4188 = vsel %vm1390, %v4183, 0
    %4190 = vmatprep.subr.bf16.mxu0 0
    %4191 = vmatpush1.bf16.xpose.msra.mxu0 %v4188
    %4192 = vmatprep.subr.bf16.mxu0 0
    %4193 = vmatpush1.bf16.xpose.msra.mxu0 0
    %4194 = vmatprep.subr.bf16.mxu0 0
    %4195 = vmatpush1.bf16.xpose.msra.mxu0 0
    %4196 = vmatprep.subr.bf16.mxu0 0
    %4197 = vmatpush1.bf16.xpose.msra.mxu0 0
    %4198 = vmatprep.subr.bf16.mxu0 0
    %4199 = vmatpush1.bf16.xpose.msra.mxu0 0
    %4200 = vmatprep.subr.bf16.mxu0 0
    %4201 = vmatpush1.bf16.xpose.msra.mxu0 0
    %4202 = vmatprep.subr.bf16.mxu0 0
    %4203 = vmatpush1.bf16.xpose.msra.mxu0 0
    %4204 = vmatprep.subr.bf16.mxu0 0
    %4205 = vmatpush1.bf16.xpose.msra.mxu0 0
    %4206 = vmatprep.subr.bf16.mxu0 0
    %4207 = vmatpush1.bf16.xpose.msra.mxu0 0
    %4208 = vmatprep.subr.bf16.mxu0 0
    %4209 = vmatpush1.bf16.xpose.msra.mxu0 0
    %4210 = vmatprep.subr.bf16.mxu0 0
    %4211 = vmatpush1.bf16.xpose.msra.mxu0 0
    %4212 = vmatprep.subr.bf16.mxu0 0
    %4213 = vmatpush1.bf16.xpose.msra.mxu0 0
    %4214 = vmatprep.subr.bf16.mxu0 0
    %4215 = vmatpush1.bf16.xpose.msra.mxu0 0
    %4216 = vmatprep.subr.bf16.mxu0 0
    %4217 = vmatpush1.bf16.xpose.msra.mxu0 0
    %4218 = vmatprep.subr.bf16.mxu0 0
    %4219 = vmatpush1.bf16.xpose.msra.mxu0 0
    %4220 = vmatprep.subr.bf16.mxu0 0
    %4221 = vmatpush1.bf16.xpose.msra.mxu0 0
    %4222 = vmatprep.mubr.bf16.mxu0 0
    %4223 = vmatmul.mubr.bf16.gmra.mrb[0].mxu0 %v4185
    %v4224 = vpop.f32.mrb[0].mxu0
    %v4225 = vadd.f32 0.0, %v4224
    %v4226 = vpop.f32.mrb[0].mxu0
    %v4227 = vpop.f32.mrb[0].mxu0
    %v4228 = vadd.f32 0.0, %v4227
    %v4229 = vpop.f32.mrb[0].mxu0
    %4230 = vdwg.mxu0
    %v4231 = vmul.f32 %v4174, 0.17677669
    %v4232 = vmul.f32 %v4177, 0.17677669
    %v4233 = vmul.f32 %v4225, 0.17677669
    %v4234 = vmul.f32 %v4228, 0.17677669
    %v4235 = vadd.f32 %v4231, %v1097
    %v4236 = vadd.f32 %v4232, %v1097
    %v4237 = vadd.f32 %v4233, %v1101
    %v4238 = vadd.f32 %v4234, %v1101
    %v4239 = vsel %vm1493, %v4235, -inf
    %4240 = vmax.xlane.f32.xlu0 %v4239
    %v4241 = vpop.xlane.xlu0 %4240
    %v4242 = vsel %vm1493, %v4236, -inf
    %4243 = vmax.xlane.f32.xlu0 %v4242
    %v4244 = vpop.xlane.xlu0 %4243
    %v4245 = vsel %vm1493, %v4237, -inf
    %4246 = vmax.xlane.f32.xlu0 %v4245
    %v4247 = vpop.xlane.xlu0 %4246
    %v4248 = vsel %vm1493, %v4238, -inf
    %4249 = vmax.xlane.f32.xlu0 %v4248
    %v4250 = vpop.xlane.xlu0 %4249
    %v4251 = vsub.f32 %v4235, %v4241
    %v4252 = vsub.f32 %v4236, %v4244
    %v4253 = vsub.f32 %v4237, %v4247
    %v4254 = vsub.f32 %v4238, %v4250
    %v4255 = vmul.f32 %v4251, 1.442695
    %v4256 = vpow.pop %v4255
    %v4257 = vmul.f32 %v4252, 1.442695
    %v4258 = vpow.pop %v4257
    %v4259 = vmul.f32 %v4253, 1.442695
    %v4260 = vpow.pop %v4259
    %v4261 = vmul.f32 %v4254, 1.442695
    %v4262 = vpow.pop %v4261
    %v4263 = vsel %vm1493, %v4256, 0.0
    %4264 = vadd.xlane.f32.xlu0 %v4263
    %v4265 = vpop.xlane.xlu0 %4264
    %v4266 = vsel %vm1493, %v4258, 0.0
    %4267 = vadd.xlane.f32.xlu0 %v4266
    %v4268 = vpop.xlane.xlu0 %4267
    %v4269 = vsel %vm1493, %v4260, 0.0
    %4270 = vadd.xlane.f32.xlu0 %v4269
    %v4271 = vpop.xlane.xlu0 %4270
    %v4272 = vsel %vm1493, %v4262, 0.0
    %4273 = vadd.xlane.f32.xlu0 %v4272
    %v4274 = vpop.xlane.xlu0 %4273
    %v4275 = vrcp.pop %v4265
    %v4276 = vrcp.pop %v4268
    %v4277 = vrcp.pop %v4271
    %v4278 = vrcp.pop %v4274
    %v4279 = vmul.f32 %v4256, %v4275
    %v4280 = vmul.f32 %v4258, %v4276
    %v4281 = vmul.f32 %v4260, %v4277
    %v4282 = vmul.f32 %v4262, %v4278
    %v4283 = vpack.c.bf16 %v4280, %v4279
    %v4284 = vpack.c.bf16 %v4282, %v4281
    %4285 = vrot.lane.b32.xlu0 %v3533, 32
    %v4286 = vpop.permute.xlu0 %4285
    %v4289 = vsel %vm1493, %v4283, 0
    %4291 = vmatprep.subr.bf16.mxu0 0
    %4292 = vmatpush1.bf16.msra.mxu0 %v4286
    %4293 = vmatprep.subr.bf16.mxu0 0
    %4294 = vmatpush1.bf16.msra.mxu0 0
    %4295 = vmatprep.subr.bf16.mxu0 0
    %4296 = vmatpush1.bf16.msra.mxu0 0
    %4297 = vmatprep.subr.bf16.mxu0 0
    %4298 = vmatpush1.bf16.msra.mxu0 0
    %4299 = vmatprep.subr.bf16.mxu0 0
    %4300 = vmatpush1.bf16.msra.mxu0 0
    %4301 = vmatprep.subr.bf16.mxu0 0
    %4302 = vmatpush1.bf16.msra.mxu0 0
    %4303 = vmatprep.subr.bf16.mxu0 0
    %4304 = vmatpush1.bf16.msra.mxu0 0
    %4305 = vmatprep.subr.bf16.mxu0 0
    %4306 = vmatpush1.bf16.msra.mxu0 0
    %4307 = vmatprep.subr.bf16.mxu0 0
    %4308 = vmatpush1.bf16.msra.mxu0 0
    %4309 = vmatprep.subr.bf16.mxu0 0
    %4310 = vmatpush1.bf16.msra.mxu0 0
    %4311 = vmatprep.subr.bf16.mxu0 0
    %4312 = vmatpush1.bf16.msra.mxu0 0
    %4313 = vmatprep.subr.bf16.mxu0 0
    %4314 = vmatpush1.bf16.msra.mxu0 0
    %4315 = vmatprep.subr.bf16.mxu0 0
    %4316 = vmatpush1.bf16.msra.mxu0 0
    %4317 = vmatprep.subr.bf16.mxu0 0
    %4318 = vmatpush1.bf16.msra.mxu0 0
    %4319 = vmatprep.subr.bf16.mxu0 0
    %4320 = vmatpush1.bf16.msra.mxu0 0
    %4321 = vmatprep.subr.bf16.mxu0 0
    %4322 = vmatpush1.bf16.msra.mxu0 0
    %4323 = vmatprep.mubr.bf16.mxu0 0
    %4324 = vmatmul.mubr.bf16.gmra.mrb[0].mxu0 %v4289
    %v4325 = vpop.f32.mrb[0].mxu0
    %v4326 = vadd.f32 0.0, %v4325
    %v4327 = vpop.f32.mrb[0].mxu0
    %v4328 = vpop.f32.mrb[0].mxu0
    %v4329 = vadd.f32 0.0, %v4328
    %v4330 = vpop.f32.mrb[0].mxu0
    %4331 = vdwg.mxu0
    %4332 = vrot.lane.b32.xlu0 %v3534, 32
    %v4333 = vpop.permute.xlu0 %4332
    %v4336 = vsel %vm1493, %v4284, 0
    %4338 = vmatprep.subr.bf16.mxu0 0
    %4339 = vmatpush1.bf16.msra.mxu0 %v4333
    %4340 = vmatprep.subr.bf16.mxu0 0
    %4341 = vmatpush1.bf16.msra.mxu0 0
    %4342 = vmatprep.subr.bf16.mxu0 0
    %4343 = vmatpush1.bf16.msra.mxu0 0
    %4344 = vmatprep.subr.bf16.mxu0 0
    %4345 = vmatpush1.bf16.msra.mxu0 0
    %4346 = vmatprep.subr.bf16.mxu0 0
    %4347 = vmatpush1.bf16.msra.mxu0 0
    %4348 = vmatprep.subr.bf16.mxu0 0
    %4349 = vmatpush1.bf16.msra.mxu0 0
    %4350 = vmatprep.subr.bf16.mxu0 0
    %4351 = vmatpush1.bf16.msra.mxu0 0
    %4352 = vmatprep.subr.bf16.mxu0 0
    %4353 = vmatpush1.bf16.msra.mxu0 0
    %4354 = vmatprep.subr.bf16.mxu0 0
    %4355 = vmatpush1.bf16.msra.mxu0 0
    %4356 = vmatprep.subr.bf16.mxu0 0
    %4357 = vmatpush1.bf16.msra.mxu0 0
    %4358 = vmatprep.subr.bf16.mxu0 0
    %4359 = vmatpush1.bf16.msra.mxu0 0
    %4360 = vmatprep.subr.bf16.mxu0 0
    %4361 = vmatpush1.bf16.msra.mxu0 0
    %4362 = vmatprep.subr.bf16.mxu0 0
    %4363 = vmatpush1.bf16.msra.mxu0 0
    %4364 = vmatprep.subr.bf16.mxu0 0
    %4365 = vmatpush1.bf16.msra.mxu0 0
    %4366 = vmatprep.subr.bf16.mxu0 0
    %4367 = vmatpush1.bf16.msra.mxu0 0
    %4368 = vmatprep.subr.bf16.mxu0 0
    %4369 = vmatpush1.bf16.msra.mxu0 0
    %4370 = vmatprep.mubr.bf16.mxu0 0
    %4371 = vmatmul.mubr.bf16.gmra.mrb[0].mxu0 %v4336
    %v4372 = vpop.f32.mrb[0].mxu0
    %v4373 = vadd.f32 0.0, %v4372
    %v4374 = vpop.f32.mrb[0].mxu0
    %v4375 = vpop.f32.mrb[0].mxu0
    %v4376 = vadd.f32 0.0, %v4375
    %v4377 = vpop.f32.mrb[0].mxu0
    %4378 = vdwg.mxu0
    %4383 = vrot.lane.b32.xlu0 %v3825, 32
    %v4384 = vpop.permute.xlu0 %4383
    %4385 = vrot.lane.b32.xlu0 %v3828, 32
    %v4386 = vpop.permute.xlu0 %4385
    %4387 = vrot.lane.b32.xlu0 %v3873, 32
    %v4388 = vpop.permute.xlu0 %4387
    %4389 = vrot.lane.b32.xlu0 %v3876, 32
    %v4390 = vpop.permute.xlu0 %4389
    %4399 = vrot.lane.b32.xlu0 %v4076, 64
    %v4400 = vpop.permute.xlu0 %4399
    %4401 = vrot.lane.b32.xlu0 %v4079, 64
    %v4402 = vpop.permute.xlu0 %4401
    %4403 = vrot.lane.b32.xlu0 %v4123, 64
    %v4404 = vpop.permute.xlu0 %4403
    %4405 = vrot.lane.b32.xlu0 %v4126, 64
    %v4406 = vpop.permute.xlu0 %4405
    %4415 = vrot.lane.b32.xlu0 %v4326, 96
    %v4416 = vpop.permute.xlu0 %4415
    %4417 = vrot.lane.b32.xlu0 %v4329, 96
    %v4418 = vpop.permute.xlu0 %4417
    %4419 = vrot.lane.b32.xlu0 %v4373, 96
    %v4420 = vpop.permute.xlu0 %4419
    %4421 = vrot.lane.b32.xlu0 %v4376, 96
    %v4422 = vpop.permute.xlu0 %4421
    %v4427 = vsel %vm1390, %v3573, %v4384
    %v4428 = vsel %vm1390, %v3576, %v4386
    %v4429 = vsel %vm1390, %v3617, %v4388
    %v4430 = vsel %vm1390, %v3620, %v4390
    %v4431 = vsel %vm2438, %v4427, %v4400
    %v4432 = vsel %vm2438, %v4428, %v4402
    %v4433 = vsel %vm2438, %v4429, %v4404
    %v4434 = vsel %vm2438, %v4430, %v4406
    %v4435 = vsel %vm2443, %v4431, %v4416
    %v4436 = vsel %vm2443, %v4432, %v4418
    %v4437 = vsel %vm2443, %v4433, %v4420
    %v4438 = vsel %vm2443, %v4434, %v4422
    %v4439 = vld [vmem:[#allocation8 + $0x3c] sm:$0xf]
    %v4440 = vld [vmem:[#allocation8 + $0x84] sm:$0xf]
    %v4441 = vld [vmem:[#allocation8 + $0xcc] sm:$0xf]
    %v4442 = vld [vmem:[#allocation8 + $0x114] sm:$0xf]
    %v4443 = vld [vmem:[#allocation8 + $0x15c] sm:$0xf]
    %v4444 = vld [vmem:[#allocation8 + $0x1a4] sm:$0xf]
    %v4445 = vld [vmem:[#allocation8 + $0x1ec] sm:$0xf]
    %v4446 = vld [vmem:[#allocation8 + $0x234] sm:$0xf]
    %v4447 = vld [vmem:[#allocation8 + $0x27c] sm:$0xf]
    %v4448 = vld [vmem:[#allocation8 + $0x2c4] sm:$0xf]
    %v4449 = vld [vmem:[#allocation8 + $0x30c] sm:$0xf]
    %v4450 = vld [vmem:[#allocation8 + $0x354] sm:$0xf]
    %v4451 = vld [vmem:[#allocation8 + $0x39c] sm:$0xf]
    %v4452 = vld [vmem:[#allocation8 + $0x3e4] sm:$0xf]
    %v4453 = vld [vmem:[#allocation8 + $0x42c] sm:$0xf]
    %v4454 = vld [vmem:[#allocation8 + $0x474] sm:$0xf]
    %v4455 = vpack.c.bf16 %v4436, %v4435
    %v4456 = vpack.c.bf16 %v4438, %v4437
    %v4457 = vld [vmem:[#allocation11 + $0x33] ss:$0 sm:$0xff]
    %v4474 = vunpack.c.l.b16 %v4439
    %v4475 = vunpack.c.l.b16 %v4440
    %v4476 = vunpack.c.l.b16 %v4441
    %v4477 = vunpack.c.l.b16 %v4442
    %v4478 = vunpack.c.l.b16 %v4443
    %v4479 = vunpack.c.l.b16 %v4444
    %v4480 = vunpack.c.l.b16 %v4445
    %v4481 = vunpack.c.l.b16 %v4446
    %v4482 = vunpack.c.l.b16 %v4447
    %v4483 = vunpack.c.l.b16 %v4448
    %v4484 = vunpack.c.l.b16 %v4449
    %v4485 = vunpack.c.l.b16 %v4450
    %v4486 = vunpack.c.l.b16 %v4451
    %v4487 = vunpack.c.l.b16 %v4452
    %v4488 = vunpack.c.l.b16 %v4453
    %v4489 = vunpack.c.l.b16 %v4454
    %v4490 = vpack.c.b16 %v4475, %v4474
    %v4491 = vpack.c.b16 %v4477, %v4476
    %v4492 = vpack.c.b16 %v4479, %v4478
    %v4493 = vpack.c.b16 %v4481, %v4480
    %v4494 = vpack.c.b16 %v4483, %v4482
    %v4495 = vpack.c.b16 %v4485, %v4484
    %v4496 = vpack.c.b16 %v4487, %v4486
    %v4497 = vpack.c.b16 %v4489, %v4488
    %4506 = vmatprep.subr.bf16.mxu0 0
    %4507 = vmatpush1.bf16.msra.mxu0 %v4490
    %4508 = vmatprep.subr.bf16.mxu0 0
    %4509 = vmatpush1.bf16.msra.mxu0 %v4491
    %4510 = vmatprep.subr.bf16.mxu0 0
    %4511 = vmatpush1.bf16.msra.mxu0 %v4492
    %4512 = vmatprep.subr.bf16.mxu0 0
    %4513 = vmatpush1.bf16.msra.mxu0 %v4493
    %4514 = vmatprep.subr.bf16.mxu0 0
    %4515 = vmatpush1.bf16.msra.mxu0 %v4494
    %4516 = vmatprep.subr.bf16.mxu0 0
    %4517 = vmatpush1.bf16.msra.mxu0 %v4495
    %4518 = vmatprep.subr.bf16.mxu0 0
    %4519 = vmatpush1.bf16.msra.mxu0 %v4496
    %4520 = vmatprep.subr.bf16.mxu0 0
    %4521 = vmatpush1.bf16.msra.mxu0 %v4497
    %4522 = vmatprep.subr.bf16.mxu0 0
    %4523 = vmatpush1.bf16.msra.mxu0 0
    %4524 = vmatprep.subr.bf16.mxu0 0
    %4525 = vmatpush1.bf16.msra.mxu0 0
    %4526 = vmatprep.subr.bf16.mxu0 0
    %4527 = vmatpush1.bf16.msra.mxu0 0
    %4528 = vmatprep.subr.bf16.mxu0 0
    %4529 = vmatpush1.bf16.msra.mxu0 0
    %4530 = vmatprep.subr.bf16.mxu0 0
    %4531 = vmatpush1.bf16.msra.mxu0 0
    %4532 = vmatprep.subr.bf16.mxu0 0
    %4533 = vmatpush1.bf16.msra.mxu0 0
    %4534 = vmatprep.subr.bf16.mxu0 0
    %4535 = vmatpush1.bf16.msra.mxu0 0
    %4536 = vmatprep.subr.bf16.mxu0 0
    %4537 = vmatpush1.bf16.msra.mxu0 0
    %4538 = vmatprep.mubr.bf16.mxu0 0
    %4539 = vmatmul.mubr.bf16.gmra.mrb[0].mxu0 %v4455
    %v4540 = vpop.f32.mrb[0].mxu0
    %v4541 = vadd.f32 %v4457, %v4540
    %v4542 = vpop.f32.mrb[0].mxu0
    %v4543 = vpop.f32.mrb[0].mxu0
    %v4544 = vadd.f32 %v4457, %v4543
    %v4545 = vpop.f32.mrb[0].mxu0
    %4546 = vmatprep.mubr.bf16.mxu0 0
    %4547 = vmatmul.mubr.bf16.gmra.mrb[0].mxu0 %v4456
    %v4548 = vpop.f32.mrb[0].mxu0
    %v4549 = vadd.f32 %v4457, %v4548
    %v4550 = vpop.f32.mrb[0].mxu0
    %v4551 = vpop.f32.mrb[0].mxu0
    %v4552 = vadd.f32 %v4457, %v4551
    %v4553 = vpop.f32.mrb[0].mxu0
    %4554 = vdwg.mxu0
    %v4555 = vadd.f32 %v4541, %v3095
    %v4556 = vadd.f32 %v4544, %v3096
    %v4557 = vadd.f32 %v4549, %v3097
    %v4558 = vadd.f32 %v4552, %v3098
    %v4559 = vld [vmem:[#allocation11 + $0x34] ss:$0 sm:$0xff]
    %v4560 = vld [vmem:[#allocation11 + $0x35] ss:$0 sm:$0xff]
    %4561 = vadd.xlane.f32.xlu0 %v4555
    %v4562 = vpop.xlane.xlu0 %4561
    %4563 = vadd.xlane.f32.xlu0 %v4556
    %v4564 = vpop.xlane.xlu0 %4563
    %4565 = vadd.xlane.f32.xlu0 %v4557
    %v4566 = vpop.xlane.xlu0 %4565
    %4567 = vadd.xlane.f32.xlu0 %v4558
    %v4568 = vpop.xlane.xlu0 %4567
    %v4569 = vmul.f32 %v4562, %v2578
    %v4570 = vmul.f32 %v4564, %v2578
    %v4571 = vmul.f32 %v4566, %v2578
    %v4572 = vmul.f32 %v4568, %v2578
    %v4573 = vsub.f32 %v4555, %v4569
    %v4574 = vsub.f32 %v4556, %v4570
    %v4575 = vsub.f32 %v4557, %v4571
    %v4576 = vsub.f32 %v4558, %v4572
    %v4577 = vmul.f32 %v4573, %v4573
    %v4578 = vmul.f32 %v4574, %v4574
    %v4579 = vmul.f32 %v4575, %v4575
    %v4580 = vmul.f32 %v4576, %v4576
    %4581 = vadd.xlane.f32.xlu0 %v4577
    %v4582 = vpop.xlane.xlu0 %4581
    %4583 = vadd.xlane.f32.xlu0 %v4578
    %v4584 = vpop.xlane.xlu0 %4583
    %4585 = vadd.xlane.f32.xlu0 %v4579
    %v4586 = vpop.xlane.xlu0 %4585
    %4587 = vadd.xlane.f32.xlu0 %v4580
    %v4588 = vpop.xlane.xlu0 %4587
    %v4589 = vmul.f32 %v4582, %v2578
    %v4590 = vmul.f32 %v4584, %v2578
    %v4591 = vmul.f32 %v4586, %v2578
    %v4592 = vmul.f32 %v4588, %v2578
    %v4593 = vadd.f32 %v4589, 1e-12
    %v4594 = vadd.f32 %v4590, 1e-12
    %v4595 = vadd.f32 %v4591, 1e-12
    %v4596 = vadd.f32 %v4592, 1e-12
    %v4597 = vrsqrt.pop %v4593
    %v4598 = vrsqrt.pop %v4594
    %v4599 = vrsqrt.pop %v4595
    %v4600 = vrsqrt.pop %v4596
    %v4601 = vmul.f32 %v4573, %v4597
    %v4602 = vmul.f32 %v4574, %v4598
    %v4603 = vmul.f32 %v4575, %v4599
    %v4604 = vmul.f32 %v4576, %v4600
    %v4605 = vmul.f32 %v4601, %v4559
    %v4606 = vmul.f32 %v4602, %v4559
    %v4607 = vmul.f32 %v4603, %v4559
    %v4608 = vmul.f32 %v4604, %v4559
    %v4609 = vadd.f32 %v4605, %v4560
    %v4610 = vadd.f32 %v4606, %v4560
    %v4611 = vadd.f32 %v4607, %v4560
    %v4612 = vadd.f32 %v4608, %v4560
    %v4613 = vld [vmem:[#allocation8 + $0x40] sm:$0xff]
    %v4614 = vld [vmem:[#allocation8 + $0x88] sm:$0xff]
    %v4615 = vld [vmem:[#allocation8 + $0xd0] sm:$0xff]
    %v4616 = vld [vmem:[#allocation8 + $0x118] sm:$0xff]
    %v4617 = vld [vmem:[#allocation8 + $0x160] sm:$0xff]
    %v4618 = vld [vmem:[#allocation8 + $0x1a8] sm:$0xff]
    %v4619 = vld [vmem:[#allocation8 + $0x1f0] sm:$0xff]
    %v4620 = vld [vmem:[#allocation8 + $0x238] sm:$0xff]
    %v4621 = vld [vmem:[#allocation8 + $0x280] sm:$0xff]
    %v4622 = vld [vmem:[#allocation8 + $0x2c8] sm:$0xff]
    %v4623 = vld [vmem:[#allocation8 + $0x310] sm:$0xff]
    %v4624 = vld [vmem:[#allocation8 + $0x358] sm:$0xff]
    %v4625 = vld [vmem:[#allocation8 + $0x3a0] sm:$0xff]
    %v4626 = vld [vmem:[#allocation8 + $0x3e8] sm:$0xff]
    %v4627 = vld [vmem:[#allocation8 + $0x430] sm:$0xff]
    %v4628 = vld [vmem:[#allocation8 + $0x478] sm:$0xff]
    %v4629 = vpack.c.bf16 %v4610, %v4609
    %v4630 = vpack.c.bf16 %v4612, %v4611
    %s4631 = scalar_lea.vmem [#allocation11], 54
    %v4632 = vld [vmem:[%s4631] ss:$8 sm:$0x3]
    %v4634 = vlaneseq
    %v4635 = vshrl.u32 %v4634, 7
    %v4636 = vsub.s32 0, %v4635
    %v4637 = vrot.slane %v4632, %v4636
    %v4638 = vlaneseq
    %v4639 = vshrl.u32 %v4638, 7
    %v4640 = vsub.s32 1, %v4639
    %v4641 = vrot.slane %v4632, %v4640
    %v4660 = vunpack.c.l.b16 %v4613
    %v4661 = vunpack.c.h.b16 %v4613
    %v4662 = vunpack.c.l.b16 %v4614
    %v4663 = vunpack.c.h.b16 %v4614
    %v4664 = vunpack.c.l.b16 %v4615
    %v4665 = vunpack.c.h.b16 %v4615
    %v4666 = vunpack.c.l.b16 %v4616
    %v4667 = vunpack.c.h.b16 %v4616
    %v4668 = vunpack.c.l.b16 %v4617
    %v4669 = vunpack.c.h.b16 %v4617
    %v4670 = vunpack.c.l.b16 %v4618
    %v4671 = vunpack.c.h.b16 %v4618
    %v4672 = vunpack.c.l.b16 %v4619
    %v4673 = vunpack.c.h.b16 %v4619
    %v4674 = vunpack.c.l.b16 %v4620
    %v4675 = vunpack.c.h.b16 %v4620
    %v4676 = vunpack.c.l.b16 %v4621
    %v4677 = vunpack.c.h.b16 %v4621
    %v4678 = vunpack.c.l.b16 %v4622
    %v4679 = vunpack.c.h.b16 %v4622
    %v4680 = vunpack.c.l.b16 %v4623
    %v4681 = vunpack.c.h.b16 %v4623
    %v4682 = vunpack.c.l.b16 %v4624
    %v4683 = vunpack.c.h.b16 %v4624
    %v4684 = vunpack.c.l.b16 %v4625
    %v4685 = vunpack.c.h.b16 %v4625
    %v4686 = vunpack.c.l.b16 %v4626
    %v4687 = vunpack.c.h.b16 %v4626
    %v4688 = vunpack.c.l.b16 %v4627
    %v4689 = vunpack.c.h.b16 %v4627
    %v4690 = vunpack.c.l.b16 %v4628
    %v4691 = vunpack.c.h.b16 %v4628
    %v4692 = vpack.c.b16 %v4662, %v4660
    %v4693 = vpack.c.b16 %v4663, %v4661
    %v4694 = vpack.c.b16 %v4666, %v4664
    %v4695 = vpack.c.b16 %v4667, %v4665
    %v4696 = vpack.c.b16 %v4670, %v4668
    %v4697 = vpack.c.b16 %v4671, %v4669
    %v4698 = vpack.c.b16 %v4674, %v4672
    %v4699 = vpack.c.b16 %v4675, %v4673
    %v4700 = vpack.c.b16 %v4678, %v4676
    %v4701 = vpack.c.b16 %v4679, %v4677
    %v4702 = vpack.c.b16 %v4682, %v4680
    %v4703 = vpack.c.b16 %v4683, %v4681
    %v4704 = vpack.c.b16 %v4686, %v4684
    %v4705 = vpack.c.b16 %v4687, %v4685
    %v4706 = vpack.c.b16 %v4690, %v4688
    %v4707 = vpack.c.b16 %v4691, %v4689
    %4724 = vmatprep.subr.bf16.mxu0 %v4693
    %4725 = vmatpush1.bf16.msra.mxu0 %v4692
    %4726 = vmatprep.subr.bf16.mxu0 %v4695
    %4727 = vmatpush1.bf16.msra.mxu0 %v4694
    %4728 = vmatprep.subr.bf16.mxu0 %v4697
    %4729 = vmatpush1.bf16.msra.mxu0 %v4696
    %4730 = vmatprep.subr.bf16.mxu0 %v4699
    %4731 = vmatpush1.bf16.msra.mxu0 %v4698
    %4732 = vmatprep.subr.bf16.mxu0 %v4701
    %4733 = vmatpush1.bf16.msra.mxu0 %v4700
    %4734 = vmatprep.subr.bf16.mxu0 %v4703
    %4735 = vmatpush1.bf16.msra.mxu0 %v4702
    %4736 = vmatprep.subr.bf16.mxu0 %v4705
    %4737 = vmatpush1.bf16.msra.mxu0 %v4704
    %4738 = vmatprep.subr.bf16.mxu0 %v4707
    %4739 = vmatpush1.bf16.msra.mxu0 %v4706
    %4740 = vmatprep.subr.bf16.mxu0 0
    %4741 = vmatpush1.bf16.msra.mxu0 0
    %4742 = vmatprep.subr.bf16.mxu0 0
    %4743 = vmatpush1.bf16.msra.mxu0 0
    %4744 = vmatprep.subr.bf16.mxu0 0
    %4745 = vmatpush1.bf16.msra.mxu0 0
    %4746 = vmatprep.subr.bf16.mxu0 0
    %4747 = vmatpush1.bf16.msra.mxu0 0
    %4748 = vmatprep.subr.bf16.mxu0 0
    %4749 = vmatpush1.bf16.msra.mxu0 0
    %4750 = vmatprep.subr.bf16.mxu0 0
    %4751 = vmatpush1.bf16.msra.mxu0 0
    %4752 = vmatprep.subr.bf16.mxu0 0
    %4753 = vmatpush1.bf16.msra.mxu0 0
    %4754 = vmatprep.subr.bf16.mxu0 0
    %4755 = vmatpush1.bf16.msra.mxu0 0
    %4756 = vmatprep.mubr.bf16.mxu0 0
    %4757 = vmatmul.mubr.bf16.gmra.mrb[0].mxu0 %v4629
    %v4758 = vpop.f32.mrb[0].mxu0
    %v4759 = vadd.f32 %v4637, %v4758
    %v4760 = vpop.f32.mrb[0].mxu0
    %v4761 = vadd.f32 %v4641, %v4760
    %v4762 = vpop.f32.mrb[0].mxu0
    %v4763 = vadd.f32 %v4637, %v4762
    %v4764 = vpop.f32.mrb[0].mxu0
    %v4765 = vadd.f32 %v4641, %v4764
    %4766 = vmatprep.mubr.bf16.mxu0 0
    %4767 = vmatmul.mubr.bf16.gmra.mrb[0].mxu0 %v4630
    %v4768 = vpop.f32.mrb[0].mxu0
    %v4769 = vadd.f32 %v4637, %v4768
    %v4770 = vpop.f32.mrb[0].mxu0
    %v4771 = vadd.f32 %v4641, %v4770
    %v4772 = vpop.f32.mrb[0].mxu0
    %v4773 = vadd.f32 %v4637, %v4772
    %v4774 = vpop.f32.mrb[0].mxu0
    %v4775 = vadd.f32 %v4641, %v4774
    %4776 = vdwg.mxu0
    %v4777 = vmul.f32 %v4759, %v4759
    %v4778 = vmul.f32 %v4761, %v4761
    %v4779 = vmul.f32 %v4763, %v4763
    %v4780 = vmul.f32 %v4765, %v4765
    %v4781 = vmul.f32 %v4769, %v4769
    %v4782 = vmul.f32 %v4771, %v4771
    %v4783 = vmul.f32 %v4773, %v4773
    %v4784 = vmul.f32 %v4775, %v4775
    %v4785 = vmul.f32 %v4759, %v4777
    %v4786 = vmul.f32 %v4761, %v4778
    %v4787 = vmul.f32 %v4763, %v4779
    %v4788 = vmul.f32 %v4765, %v4780
    %v4789 = vmul.f32 %v4769, %v4781
    %v4790 = vmul.f32 %v4771, %v4782
    %v4791 = vmul.f32 %v4773, %v4783
    %v4792 = vmul.f32 %v4775, %v4784
    %v4793 = vmul.f32 %v4785, 0.044715
    %v4794 = vmul.f32 %v4786, 0.044715
    %v4795 = vmul.f32 %v4787, 0.044715
    %v4796 = vmul.f32 %v4788, 0.044715
    %v4797 = vmul.f32 %v4789, 0.044715
    %v4798 = vmul.f32 %v4790, 0.044715
    %v4799 = vmul.f32 %v4791, 0.044715
    %v4800 = vmul.f32 %v4792, 0.044715
    %v4801 = vadd.f32 %v4759, %v4793
    %v4802 = vadd.f32 %v4761, %v4794
    %v4803 = vadd.f32 %v4763, %v4795
    %v4804 = vadd.f32 %v4765, %v4796
    %v4805 = vadd.f32 %v4769, %v4797
    %v4806 = vadd.f32 %v4771, %v4798
    %v4807 = vadd.f32 %v4773, %v4799
    %v4808 = vadd.f32 %v4775, %v4800
    %v4809 = vmul.f32 %v4801, 0.7978846
    %v4810 = vmul.f32 %v4802, 0.7978846
    %v4811 = vmul.f32 %v4803, 0.7978846
    %v4812 = vmul.f32 %v4804, 0.7978846
    %v4813 = vmul.f32 %v4805, 0.7978846
    %v4814 = vmul.f32 %v4806, 0.7978846
    %v4815 = vmul.f32 %v4807, 0.7978846
    %v4816 = vmul.f32 %v4808, 0.7978846
    %v4817 = vtanh.pop %v4809
    %v4818 = vtanh.pop %v4810
    %v4819 = vtanh.pop %v4811
    %v4820 = vtanh.pop %v4812
    %v4821 = vtanh.pop %v4813
    %v4822 = vtanh.pop %v4814
    %v4823 = vtanh.pop %v4815
    %v4824 = vtanh.pop %v4816
    %v4825 = vadd.f32 %v4817, 1.0
    %v4826 = vadd.f32 %v4818, 1.0
    %v4827 = vadd.f32 %v4819, 1.0
    %v4828 = vadd.f32 %v4820, 1.0
    %v4829 = vadd.f32 %v4821, 1.0
    %v4830 = vadd.f32 %v4822, 1.0
    %v4831 = vadd.f32 %v4823, 1.0
    %v4832 = vadd.f32 %v4824, 1.0
    %v4833 = vmul.f32 %v4825, 0.5
    %v4834 = vmul.f32 %v4826, 0.5
    %v4835 = vmul.f32 %v4827, 0.5
    %v4836 = vmul.f32 %v4828, 0.5
    %v4837 = vmul.f32 %v4829, 0.5
    %v4838 = vmul.f32 %v4830, 0.5
    %v4839 = vmul.f32 %v4831, 0.5
    %v4840 = vmul.f32 %v4832, 0.5
    %v4841 = vmul.f32 %v4759, %v4833
    %v4842 = vmul.f32 %v4761, %v4834
    %v4843 = vmul.f32 %v4763, %v4835
    %v4844 = vmul.f32 %v4765, %v4836
    %v4845 = vmul.f32 %v4769, %v4837
    %v4846 = vmul.f32 %v4771, %v4838
    %v4847 = vmul.f32 %v4773, %v4839
    %v4848 = vmul.f32 %v4775, %v4840
    %v4849 = vld [vmem:[#allocation10 + $0x4] sm:$0xf]
    %v4850 = vld [vmem:[#allocation10 + $0xc] sm:$0xf]
    %v4851 = vld [vmem:[#allocation10 + $0x14] sm:$0xf]
    %v4852 = vld [vmem:[#allocation10 + $0x1c] sm:$0xf]
    %v4853 = vld [vmem:[#allocation10 + $0x24] sm:$0xf]
    %v4854 = vld [vmem:[#allocation10 + $0x2c] sm:$0xf]
    %v4855 = vld [vmem:[#allocation10 + $0x34] sm:$0xf]
    %v4856 = vld [vmem:[#allocation10 + $0x3c] sm:$0xf]
    %v4857 = vld [vmem:[#allocation10 + $0x44] sm:$0xf]
    %v4858 = vld [vmem:[#allocation10 + $0x4c] sm:$0xf]
    %v4859 = vld [vmem:[#allocation10 + $0x54] sm:$0xf]
    %v4860 = vld [vmem:[#allocation10 + $0x5c] sm:$0xf]
    %v4861 = vld [vmem:[#allocation10 + $0x64] sm:$0xf]
    %v4862 = vld [vmem:[#allocation10 + $0x6c] sm:$0xf]
    %v4863 = vld [vmem:[#allocation10 + $0x74] sm:$0xf]
    %v4864 = vld [vmem:[#allocation10 + $0x7c] sm:$0xf]
    %v4865 = vld [vmem:[#allocation10 + $0x84] sm:$0xf]
    %v4866 = vld [vmem:[#allocation10 + $0x8c] sm:$0xf]
    %v4867 = vld [vmem:[#allocation10 + $0x94] sm:$0xf]
    %v4868 = vld [vmem:[#allocation10 + $0x9c] sm:$0xf]
    %v4869 = vld [vmem:[#allocation10 + $0xa4] sm:$0xf]
    %v4870 = vld [vmem:[#allocation10 + $0xac] sm:$0xf]
    %v4871 = vld [vmem:[#allocation10 + $0xb4] sm:$0xf]
    %v4872 = vld [vmem:[#allocation10 + $0xbc] sm:$0xf]
    %v4873 = vld [vmem:[#allocation10 + $0xc4] sm:$0xf]
    %v4874 = vld [vmem:[#allocation10 + $0xcc] sm:$0xf]
    %v4875 = vld [vmem:[#allocation10 + $0xd4] sm:$0xf]
    %v4876 = vld [vmem:[#allocation10 + $0xdc] sm:$0xf]
    %v4877 = vld [vmem:[#allocation10 + $0xe4] sm:$0xf]
    %v4878 = vld [vmem:[#allocation10 + $0xec] sm:$0xf]
    %v4879 = vld [vmem:[#allocation10 + $0xf4] sm:$0xf]
    %v4880 = vld [vmem:[#allocation10 + $0xfc] sm:$0xf]
    %v4881 = vpack.c.bf16 %v4843, %v4841
    %v4882 = vpack.c.bf16 %v4844, %v4842
    %v4883 = vpack.c.bf16 %v4847, %v4845
    %v4884 = vpack.c.bf16 %v4848, %v4846
    %v4885 = vld [vmem:[#allocation11 + $0x37] ss:$0 sm:$0xff]
    %v4918 = vunpack.c.l.b16 %v4849
    %v4919 = vunpack.c.l.b16 %v4850
    %v4920 = vunpack.c.l.b16 %v4851
    %v4921 = vunpack.c.l.b16 %v4852
    %v4922 = vunpack.c.l.b16 %v4853
    %v4923 = vunpack.c.l.b16 %v4854
    %v4924 = vunpack.c.l.b16 %v4855
    %v4925 = vunpack.c.l.b16 %v4856
    %v4926 = vunpack.c.l.b16 %v4857
    %v4927 = vunpack.c.l.b16 %v4858
    %v4928 = vunpack.c.l.b16 %v4859
    %v4929 = vunpack.c.l.b16 %v4860
    %v4930 = vunpack.c.l.b16 %v4861
    %v4931 = vunpack.c.l.b16 %v4862
    %v4932 = vunpack.c.l.b16 %v4863
    %v4933 = vunpack.c.l.b16 %v4864
    %v4934 = vunpack.c.l.b16 %v4865
    %v4935 = vunpack.c.l.b16 %v4866
    %v4936 = vunpack.c.l.b16 %v4867
    %v4937 = vunpack.c.l.b16 %v4868
    %v4938 = vunpack.c.l.b16 %v4869
    %v4939 = vunpack.c.l.b16 %v4870
    %v4940 = vunpack.c.l.b16 %v4871
    %v4941 = vunpack.c.l.b16 %v4872
    %v4942 = vunpack.c.l.b16 %v4873
    %v4943 = vunpack.c.l.b16 %v4874
    %v4944 = vunpack.c.l.b16 %v4875
    %v4945 = vunpack.c.l.b16 %v4876
    %v4946 = vunpack.c.l.b16 %v4877
    %v4947 = vunpack.c.l.b16 %v4878
    %v4948 = vunpack.c.l.b16 %v4879
    %v4949 = vunpack.c.l.b16 %v4880
    %v4950 = vpack.c.b16 %v4919, %v4918
    %v4951 = vpack.c.b16 %v4921, %v4920
    %v4952 = vpack.c.b16 %v4923, %v4922
    %v4953 = vpack.c.b16 %v4925, %v4924
    %v4954 = vpack.c.b16 %v4927, %v4926
    %v4955 = vpack.c.b16 %v4929, %v4928
    %v4956 = vpack.c.b16 %v4931, %v4930
    %v4957 = vpack.c.b16 %v4933, %v4932
    %v4958 = vpack.c.b16 %v4935, %v4934
    %v4959 = vpack.c.b16 %v4937, %v4936
    %v4960 = vpack.c.b16 %v4939, %v4938
    %v4961 = vpack.c.b16 %v4941, %v4940
    %v4962 = vpack.c.b16 %v4943, %v4942
    %v4963 = vpack.c.b16 %v4945, %v4944
    %v4964 = vpack.c.b16 %v4947, %v4946
    %v4965 = vpack.c.b16 %v4949, %v4948
    %4982 = vmatprep.subr.bf16.mxu0 0
    %4983 = vmatpush1.bf16.msra.mxu0 %v4950
    %4984 = vmatprep.subr.bf16.mxu0 0
    %4985 = vmatpush1.bf16.msra.mxu0 %v4951
    %4986 = vmatprep.subr.bf16.mxu0 0
    %4987 = vmatpush1.bf16.msra.mxu0 %v4952
    %4988 = vmatprep.subr.bf16.mxu0 0
    %4989 = vmatpush1.bf16.msra.mxu0 %v4953
    %4990 = vmatprep.subr.bf16.mxu0 0
    %4991 = vmatpush1.bf16.msra.mxu0 %v4954
    %4992 = vmatprep.subr.bf16.mxu0 0
    %4993 = vmatpush1.bf16.msra.mxu0 %v4955
    %4994 = vmatprep.subr.bf16.mxu0 0
    %4995 = vmatpush1.bf16.msra.mxu0 %v4956
    %4996 = vmatprep.subr.bf16.mxu0 0
    %4997 = vmatpush1.bf16.msra.mxu0 %v4957
    %4998 = vmatprep.subr.bf16.mxu0 0
    %4999 = vmatpush1.bf16.msra.mxu0 %v4958
    %5000 = vmatprep.subr.bf16.mxu0 0
    %5001 = vmatpush1.bf16.msra.mxu0 %v4959
    %5002 = vmatprep.subr.bf16.mxu0 0
    %5003 = vmatpush1.bf16.msra.mxu0 %v4960
    %5004 = vmatprep.subr.bf16.mxu0 0
    %5005 = vmatpush1.bf16.msra.mxu0 %v4961
    %5006 = vmatprep.subr.bf16.mxu0 0
    %5007 = vmatpush1.bf16.msra.mxu0 %v4962
    %5008 = vmatprep.subr.bf16.mxu0 0
    %5009 = vmatpush1.bf16.msra.mxu0 %v4963
    %5010 = vmatprep.subr.bf16.mxu0 0
    %5011 = vmatpush1.bf16.msra.mxu0 %v4964
    %5012 = vmatprep.subr.bf16.mxu0 0
    %5013 = vmatpush1.bf16.msra.mxu0 %v4965
    %5014 = vmatprep.mubr.bf16.mxu0 %v4882
    %5015 = vmatmul.mubr.bf16.gmra.mrb[0].mxu0 %v4881
    %v5016 = vpop.f32.mrb[0].mxu0
    %v5017 = vadd.f32 %v4885, %v5016
    %v5018 = vpop.f32.mrb[0].mxu0
    %v5019 = vpop.f32.mrb[0].mxu0
    %v5020 = vadd.f32 %v4885, %v5019
    %v5021 = vpop.f32.mrb[0].mxu0
    %5022 = vmatprep.mubr.bf16.mxu0 %v4884
    %5023 = vmatmul.mubr.bf16.gmra.mrb[0].mxu0 %v4883
    %v5024 = vpop.f32.mrb[0].mxu0
    %v5025 = vadd.f32 %v4885, %v5024
    %v5026 = vpop.f32.mrb[0].mxu0
    %v5027 = vpop.f32.mrb[0].mxu0
    %v5028 = vadd.f32 %v4885, %v5027
    %v5029 = vpop.f32.mrb[0].mxu0
    %5030 = vdwg.mxu0
    %v5031 = vadd.f32 %v5017, %v4609
    %v5032 = vadd.f32 %v5020, %v4610
    %v5033 = vadd.f32 %v5025, %v4611
    %v5034 = vadd.f32 %v5028, %v4612
    %v5035 = vld [vmem:[#allocation11 + $0x48] ss:$0 sm:$0xff]
    %v5036 = vld [vmem:[#allocation11 + $0x49] ss:$0 sm:$0xff]
    %5037 = vadd.xlane.f32.xlu0 %v5031
    %v5038 = vpop.xlane.xlu0 %5037
    %5039 = vadd.xlane.f32.xlu0 %v5032
    %v5040 = vpop.xlane.xlu0 %5039
    %5041 = vadd.xlane.f32.xlu0 %v5033
    %v5042 = vpop.xlane.xlu0 %5041
    %5043 = vadd.xlane.f32.xlu0 %v5034
    %v5044 = vpop.xlane.xlu0 %5043
    %v5045 = vmul.f32 %v5038, %v2578
    %v5046 = vmul.f32 %v5040, %v2578
    %v5047 = vmul.f32 %v5042, %v2578
    %v5048 = vmul.f32 %v5044, %v2578
    %v5049 = vsub.f32 %v5031, %v5045
    %v5050 = vsub.f32 %v5032, %v5046
    %v5051 = vsub.f32 %v5033, %v5047
    %v5052 = vsub.f32 %v5034, %v5048
    %v5053 = vmul.f32 %v5049, %v5049
    %v5054 = vmul.f32 %v5050, %v5050
    %v5055 = vmul.f32 %v5051, %v5051
    %v5056 = vmul.f32 %v5052, %v5052
    %5057 = vadd.xlane.f32.xlu0 %v5053
    %v5058 = vpop.xlane.xlu0 %5057
    %5059 = vadd.xlane.f32.xlu0 %v5054
    %v5060 = vpop.xlane.xlu0 %5059
    %5061 = vadd.xlane.f32.xlu0 %v5055
    %v5062 = vpop.xlane.xlu0 %5061
    %5063 = vadd.xlane.f32.xlu0 %v5056
    %v5064 = vpop.xlane.xlu0 %5063
    %v5065 = vmul.f32 %v5058, %v2578
    %v5066 = vmul.f32 %v5060, %v2578
    %v5067 = vmul.f32 %v5062, %v2578
    %v5068 = vmul.f32 %v5064, %v2578
    %v5069 = vadd.f32 %v5065, 1e-12
    %v5070 = vadd.f32 %v5066, 1e-12
    %v5071 = vadd.f32 %v5067, 1e-12
    %v5072 = vadd.f32 %v5068, 1e-12
    %v5073 = vrsqrt.pop %v5069
    %v5074 = vrsqrt.pop %v5070
    %v5075 = vrsqrt.pop %v5071
    %v5076 = vrsqrt.pop %v5072
    %v5077 = vmul.f32 %v5049, %v5073
    %v5078 = vmul.f32 %v5050, %v5074
    %v5079 = vmul.f32 %v5051, %v5075
    %v5080 = vmul.f32 %v5052, %v5076
    %v5081 = vmul.f32 %v5077, %v5035
    %v5082 = vmul.f32 %v5078, %v5035
    %v5083 = vmul.f32 %v5079, %v5035
    %v5084 = vmul.f32 %v5080, %v5035
    %v5085 = vadd.f32 %v5081, %v5036
    %v5086 = vadd.f32 %v5082, %v5036
    %v5087 = vadd.f32 %v5083, %v5036
    %v5088 = vadd.f32 %v5084, %v5036
    %v5089 = vtanh.pop %v5085
    %v5090 = vtanh.pop %v5086
    %v5091 = vtanh.pop %v5087
    %v5092 = vtanh.pop %v5088
    %v5093 = vadd.f32 %v932, %v5089
    %v5094 = vadd.f32 %v933, %v5090
    %v5095 = vadd.f32 %v934, %v5091
    %v5096 = vadd.f32 %v935, %v5092
    %5097 = vst [vmem:[#allocation13] sm:$0xff] %v5093
    %5098 = vst [vmem:[#allocation13 + $0x8] sm:$0xff] %v5094
    %5099 = vst [vmem:[#allocation13 + $0x10] sm:$0xff] %v5095
    %5100 = vst [vmem:[#allocation13 + $0x18] sm:$0xff] %v5096
    %v5101 = vld [vmem:[#allocation8 + $0x14] sm:$0xf]
    %v5102 = vld [vmem:[#allocation8 + $0x5c] sm:$0xf]
    %v5103 = vld [vmem:[#allocation8 + $0xa4] sm:$0xf]
    %v5104 = vld [vmem:[#allocation8 + $0xec] sm:$0xf]
    %v5105 = vld [vmem:[#allocation8 + $0x134] sm:$0xf]
    %v5106 = vld [vmem:[#allocation8 + $0x17c] sm:$0xf]
    %v5107 = vld [vmem:[#allocation8 + $0x1c4] sm:$0xf]
    %v5108 = vld [vmem:[#allocation8 + $0x20c] sm:$0xf]
    %v5109 = vld [vmem:[#allocation8 + $0x254] sm:$0xf]
    %v5110 = vld [vmem:[#allocation8 + $0x29c] sm:$0xf]
    %v5111 = vld [vmem:[#allocation8 + $0x2e4] sm:$0xf]
    %v5112 = vld [vmem:[#allocation8 + $0x32c] sm:$0xf]
    %v5113 = vld [vmem:[#allocation8 + $0x374] sm:$0xf]
    %v5114 = vld [vmem:[#allocation8 + $0x3bc] sm:$0xf]
    %v5115 = vld [vmem:[#allocation8 + $0x404] sm:$0xf]
    %v5116 = vld [vmem:[#allocation8 + $0x44c] sm:$0xf]
    %v5117 = vpack.c.bf16 %v5096, %v5094
    %v5118 = vld [vmem:[#allocation11 + $0x7] ss:$0 sm:$0xff]
    %v5135 = vunpack.c.l.b16 %v5101
    %v5136 = vunpack.c.l.b16 %v5102
    %v5137 = vunpack.c.l.b16 %v5103
    %v5138 = vunpack.c.l.b16 %v5104
    %v5139 = vunpack.c.l.b16 %v5105
    %v5140 = vunpack.c.l.b16 %v5106
    %v5141 = vunpack.c.l.b16 %v5107
    %v5142 = vunpack.c.l.b16 %v5108
    %v5143 = vunpack.c.l.b16 %v5109
    %v5144 = vunpack.c.l.b16 %v5110
    %v5145 = vunpack.c.l.b16 %v5111
    %v5146 = vunpack.c.l.b16 %v5112
    %v5147 = vunpack.c.l.b16 %v5113
    %v5148 = vunpack.c.l.b16 %v5114
    %v5149 = vunpack.c.l.b16 %v5115
    %v5150 = vunpack.c.l.b16 %v5116
    %v5151 = vpack.c.b16 %v5136, %v5135
    %v5152 = vpack.c.b16 %v5138, %v5137
    %v5153 = vpack.c.b16 %v5140, %v5139
    %v5154 = vpack.c.b16 %v5142, %v5141
    %v5155 = vpack.c.b16 %v5144, %v5143
    %v5156 = vpack.c.b16 %v5146, %v5145
    %v5157 = vpack.c.b16 %v5148, %v5147
    %v5158 = vpack.c.b16 %v5150, %v5149
    %5167 = vmatprep.subr.bf16.mxu0 0
    %5168 = vmatpush1.bf16.msra.mxu0 %v5151
    %5169 = vmatprep.subr.bf16.mxu0 0
    %5170 = vmatpush1.bf16.msra.mxu0 %v5152
    %5171 = vmatprep.subr.bf16.mxu0 0
    %5172 = vmatpush1.bf16.msra.mxu0 %v5153
    %5173 = vmatprep.subr.bf16.mxu0 0
    %5174 = vmatpush1.bf16.msra.mxu0 %v5154
    %5175 = vmatprep.subr.bf16.mxu0 0
    %5176 = vmatpush1.bf16.msra.mxu0 %v5155
    %5177 = vmatprep.subr.bf16.mxu0 0
    %5178 = vmatpush1.bf16.msra.mxu0 %v5156
    %5179 = vmatprep.subr.bf16.mxu0 0
    %5180 = vmatpush1.bf16.msra.mxu0 %v5157
    %5181 = vmatprep.subr.bf16.mxu0 0
    %5182 = vmatpush1.bf16.msra.mxu0 %v5158
    %5183 = vmatprep.subr.bf16.mxu0 0
    %5184 = vmatpush1.bf16.msra.mxu0 0
    %5185 = vmatprep.subr.bf16.mxu0 0
    %5186 = vmatpush1.bf16.msra.mxu0 0
    %5187 = vmatprep.subr.bf16.mxu0 0
    %5188 = vmatpush1.bf16.msra.mxu0 0
    %5189 = vmatprep.subr.bf16.mxu0 0
    %5190 = vmatpush1.bf16.msra.mxu0 0
    %5191 = vmatprep.subr.bf16.mxu0 0
    %5192 = vmatpush1.bf16.msra.mxu0 0
    %5193 = vmatprep.subr.bf16.mxu0 0
    %5194 = vmatpush1.bf16.msra.mxu0 0
    %5195 = vmatprep.subr.bf16.mxu0 0
    %5196 = vmatpush1.bf16.msra.mxu0 0
    %5197 = vmatprep.subr.bf16.mxu0 0
    %5198 = vmatpush1.bf16.msra.mxu0 0
    %5199 = vmatprep.mubr.bf16.mxu0 0
    %5200 = vmatmul.mubr.bf16.gmra.mrb[0].mxu0 %v5117
    %v5201 = vpop.f32.mrb[0].mxu0
    %v5202 = vadd.f32 %v5118, %v5201
    %v5203 = vpop.f32.mrb[0].mxu0
    %v5204 = vpop.f32.mrb[0].mxu0
    %v5205 = vadd.f32 %v5118, %v5204
    %v5206 = vpop.f32.mrb[0].mxu0
    %5207 = vdwg.mxu0
    %vm5208 = vcmp.gt.f32.partialorder %v5202, 0.0
    %vm5209 = vcmp.gt.f32.partialorder %v5205, 0.0
    %v5210 = vmul.f32 %v5202, 1.442695
    %v5211 = vpow.pop %v5210
    %v5212 = vmul.f32 %v5205, 1.442695
    %v5213 = vpow.pop %v5212
    %v5214 = vsub.f32 %v5211, 1.0
    %v5215 = vsub.f32 %v5213, 1.0
    %v5216 = vsel %vm5208, %v5202, %v5214
    %v5217 = vsel %vm5209, %v5205, %v5215
    %v5218 = vld [vmem:[#allocation11 + $0x18] ss:$0 sm:$0xff]
    %v5219 = vmul.f32 %v5216, %v5218
    %v5220 = vmul.f32 %v5217, %v5218
    %5221 = vadd.xlane.f32.xlu0 %v5219
    %v5222 = vpop.xlane.xlu0 %5221
    %5223 = vadd.xlane.f32.xlu0 %v5220
    %v5224 = vpop.xlane.xlu0 %5223
    %v5225 = vld [vmem:[#allocation11 + $0x19] ss:$0 sm:$0xff]
    %5227 = vset.pattern.permute.xlu0 0
    %5228 = vperm.xlu0 %5227, %v5225
    %v5229 = vpop.permute.xlu0 %5228
    %v5231 = vadd.f32 %v5222, %v5229
    %v5232 = vadd.f32 %v5224, %v5229
    %v5233 = vsub.f32 0.0, %v5231
    %v5234 = vsub.f32 0.0, %v5232
    %v5235 = vmul.f32 %v5233, 1.442695
    %v5236 = vpow.pop %v5235
    %v5237 = vmul.f32 %v5234, 1.442695
    %v5238 = vpow.pop %v5237
    %v5239 = vadd.f32 %v5236, 1.0
    %v5240 = vadd.f32 %v5238, 1.0
    %v5241 = vrcp.pop %v5239
    %v5242 = vmul.f32 1.0, %v5241
    %v5243 = vrcp.pop %v5240
    %v5244 = vmul.f32 1.0, %v5243
    %5245 = vst [vmem:[#allocation16] sm:$0xf] 0.0
    %v5248 = vlaneseq
    %v5249 = vand.u32 %v5248, 127
    %v5250 = vlaneseq
    %v5251 = vshrl.u32 %v5250, 7
    %v5252 = vsub.s32 %v5249, %v5251
    %v5253 = vrot.slane %v1066, %v5252
    %v5254 = vlaneseq
    %v5255 = vshrl.u32 %v5254, 7
    %v5256 = vsub.s32 %v5249, %v5255
    %v5257 = vrot.slane %v1067, %v5256
    %vm5258 = vcmask 1041409
    %v5259 = vsel %vm5258, %v5257, %v5253
    %vm5261 = vcmask 58368
    %5262 = vst.msk [vmem:[#allocation16] sm:$0x3] %vm5261, %v5259
    %v5265 = vlaneseq
    %v5266 = vshrl.u32 %v5265, 7
    %v5267 = vsub.s32 %v5249, %v5266
    %v5268 = vrot.slane %v5242, %v5267
    %v5269 = vlaneseq
    %v5270 = vshrl.u32 %v5269, 7
    %v5271 = vsub.s32 %v5249, %v5270
    %v5272 = vrot.slane %v5244, %v5271
    %v5273 = vsel %vm5258, %v5272, %v5268
    %5275 = vst.msk [vmem:[#allocation16 + $0x2] sm:$0x3] %vm5261, %v5273
    // Predicated region
    $region54: #{tpu_custom_call.1} parent=1 // pred_check
      _
    $region55: #{tpu_custom_call.1} parent=1 // pred_check_branch
      %5277 = sbr.rel (0) target = $region57
    $region56: #{tpu_custom_call.1} parent=1 // pred_region
      %s5279 = ssub.s32 512, 512
      %5280 = vsyncadd [#allocation4], %s5279
      %s5281 = sshll.u32 [#allocation13], 4
      %s5282 = int_to_ptr.vmem [resolvable:$true] %s5281
      %5287 = dma.vmem_to_hbm [thread:$0]  %s5282, 512, %s7, [#allocation4], 128, 128, 8
    $region57: #{tpu_custom_call.1} parent=1 // pred_fallthru
      _
    // Predicated region
    $region58: #{tpu_custom_call.1} parent=1 // pred_check
      _
    $region59: #{tpu_custom_call.1} parent=1 // pred_check_branch
      %5289 = sbr.rel (0) target = $region61
    $region60: #{tpu_custom_call.1} parent=1 // pred_region
      %s5291 = ssub.s32 512, 512
      %5292 = vsyncadd [#allocation15], %s5291
      %s5293 = sshll.u32 [#allocation14], 4
      %s5294 = int_to_ptr.vmem [resolvable:$true] %s5293
      %5299 = dma.vmem_to_hbm [thread:$0]  %s5294, 512, %s8, [#allocation15], 128, 128, 8
    $region61: #{tpu_custom_call.1} parent=1 // pred_fallthru
      _
    // Predicated region
    $region62: #{tpu_custom_call.1} parent=1 // pred_check
      _
    $region63: #{tpu_custom_call.1} parent=1 // pred_check_branch
      %5301 = sbr.rel (0) target = $region65
    $region64: #{tpu_custom_call.1} parent=1 // pred_region
      %s5303 = ssub.s32 64, 64
      %5304 = vsyncadd [#allocation15], %s5303
      %s5306 = sshll.u32 [#allocation16], 4
      %s5307 = int_to_ptr.vmem [resolvable:$true] %s5306
      %5309 = dma.vmem_to_hbm [thread:$0]  %s5307, 64, %s9, [#allocation15]
    $region65: #{tpu_custom_call.1} parent=1 // pred_fallthru
      _
    // Predicated region
    $region66: #{tpu_custom_call.1} parent=1 // pred_check
      _
    $region67: #{tpu_custom_call.1} parent=1 // pred_check_branch
      %5311 = sbr.rel (0) target = $region69
    $region68: #{tpu_custom_call.1} parent=1 // pred_region
      %5312 = dma.done [#allocation4], 512
    $region69: #{tpu_custom_call.1} parent=1 // pred_fallthru
      _
    // Predicated region
    $region70: #{tpu_custom_call.1} parent=1 // pred_check
      _
    $region71: #{tpu_custom_call.1} parent=1 // pred_check_branch
      %5314 = sbr.rel (0) target = $region73
    $region72: #{tpu_custom_call.1} parent=1 // pred_region
      %5315 = dma.done [#allocation15], 512
    $region73: #{tpu_custom_call.1} parent=1 // pred_fallthru
      _
    // Predicated region
    $region74: #{tpu_custom_call.1} parent=1 // pred_check
      _
    $region75: #{tpu_custom_call.1} parent=1 // pred_check_branch
      %5317 = sbr.rel (0) target = $region77
    $region76: #{tpu_custom_call.1} parent=1 // pred_region
      %5318 = dma.done [#allocation15], 64
    $region77: #{tpu_custom_call.1} parent=1 // pred_fallthru
      _
    %5319 = vsyncpa [#allocation3], 1
    %5320 = vsyncpa [#allocation6], 1
    %5321 = vsyncpa [#allocation9], 1
    %5322 = vsyncpa [#allocation12], 1
    %5323 = vsyncpa [#allocation4], 1
    %5324 = vsyncpa [#allocation15], 1

</llo_original>
